<compile_context>
chip_gen: v6e
topology: v6e:2x2x1
jax: 0.10.0
libtpu: 0.0.40
codegen_flags: <defaults>
</compile_context>

<pallas_src>
import functools
import math

import jax
import jax.numpy as jnp
from jax.experimental import pallas as pl
from jax.experimental.pallas import tpu as pltpu


# ------------------------------ Pallas kernel ------------------------------- #

def _layer_norm_masked(x, g, b, d_real, eps=1e-5):
    """LayerNorm over the first d_real lanes of a lane-padded activation.

    Padded lanes of x are zero; g/b padded lanes are zero, so the output's padded
    lanes stay exactly zero.
    """
    inv_d = 1.0 / d_real
    mu = jnp.sum(x, axis=-1, keepdims=True) * inv_d          # zeros don't change sum
    lane = jax.lax.broadcasted_iota(jnp.int32, x.shape, 1)
    diff = jnp.where(lane < d_real, x - mu, 0.0)
    var = jnp.sum(diff * diff, axis=-1, keepdims=True) * inv_d
    return diff * jax.lax.rsqrt(var + eps) * g + b


def _critic_transformer_kernel(
        s_ref, w_fc1_ref, b_fc1_ref, pe_ref,
        w_qkv_ref, b_qkv_ref, w_o_ref, b_o_ref,
        ln1g_ref, ln1b_ref, w_ff1_ref, b_ff1_ref, w_ff2_ref, b_ff2_ref,
        ln2g_ref, ln2b_ref, w_val_ref, b_val_ref,
        o_ref, *, nhead, num_layers, d_model, dh_pad):
    """Full Critic_Transformer forward for one batch element (lane-padded layout)."""
    f32 = jnp.float32

    # fc1 + relu + positional encoding (dropout == identity).
    x = s_ref[0]                                                       # (S, SP)
    x = jnp.dot(x, w_fc1_ref[...], preferred_element_type=f32) + b_fc1_ref[...]
    x = jnp.maximum(x, 0.0) + pe_ref[...]                              # (S, DP)

    S = x.shape[0]
    row = jax.lax.broadcasted_iota(jnp.int32, (S, S), 0)
    col = jax.lax.broadcasted_iota(jnp.int32, (S, S), 1)
    causal = col <= row                                                # subsequent mask
    scale = 1.0 / math.sqrt(d_model // nhead)

    for l in range(num_layers):                                        # static unroll
        # ---- self-attention (post-LN TransformerEncoderLayer) ----
        qkv = jnp.dot(x, w_qkv_ref[l], preferred_element_type=f32) + b_qkv_ref[l]
        attn = jnp.zeros_like(x)                                       # (S, DP)
        for h in range(nhead):                                         # static unroll
            qh = qkv[:, h * dh_pad:(h + 1) * dh_pad]                   # (S, HP)
            kh = qkv[:, (nhead + h) * dh_pad:(nhead + h + 1) * dh_pad]
            vh = qkv[:, (2 * nhead + h) * dh_pad:(2 * nhead + h + 1) * dh_pad]
            sc = jnp.einsum("qd,kd->qk", qh, kh,
                            preferred_element_type=f32) * scale        # (S, S)
            sc = jnp.where(causal, sc, -1e30)
            sc = sc - jnp.max(sc, axis=-1, keepdims=True)
            p = jnp.exp(sc)
            p = p * pl.reciprocal(jnp.sum(p, axis=-1, keepdims=True), approx=True)
            av = jnp.dot(p, vh, preferred_element_type=f32)            # (S, HP)
            # per-head output projection, accumulated (replaces concat + single W_o)
            attn = attn + jnp.dot(av, w_o_ref[l * nhead + h],
                                  preferred_element_type=f32)
        attn = attn + b_o_ref[l]
        x = _layer_norm_masked(x + attn, ln1g_ref[l], ln1b_ref[l], d_model)

        # ---- feed-forward ----
        ff = jnp.dot(x, w_ff1_ref[l], preferred_element_type=f32) + b_ff1_ref[l]
        ff = jnp.maximum(ff, 0.0)                                      # default relu
        ff = jnp.dot(ff, w_ff2_ref[l], preferred_element_type=f32) + b_ff2_ref[l]
        x = _layer_norm_masked(x + ff, ln2g_ref[l], ln2b_ref[l], d_model)

    # value head -> lane-dense (S, 128); only column 0 is real.
    val = jnp.dot(x, w_val_ref[...], preferred_element_type=f32) + b_val_ref[...]
    o_ref[0] = val


# ------------------------------ JAX wrapper --------------------------------- #

def critic_transformer_forward(packed, s, *, nhead, num_layers, d_model):
    """Equivalent of Critic_Transformer.forward(s); s is (B, S, state_dim)."""
    B, S, sd = s.shape
    SP, DP = packed["w_fc1"].shape
    VP = packed["w_val"].shape[1]
    HP = packed["w_o"].shape[1]

    s_pad = jnp.zeros((B, S, SP), jnp.float32).at[:, :, :sd].set(s)
    pe = packed["pe"][:S]                                              # (S, DP)

    weights = (packed["w_fc1"], packed["b_fc1"], pe,
               packed["w_qkv"], packed["b_qkv"], packed["w_o"], packed["b_o"],
               packed["ln1_g"], packed["ln1_b"],
               packed["w_ff1"], packed["b_ff1"], packed["w_ff2"], packed["b_ff2"],
               packed["ln2_g"], packed["ln2_b"],
               packed["w_val"], packed["b_val"])

    def _const_spec(a):
        return pl.BlockSpec(a.shape, lambda b, _n=a.ndim: (0,) * _n)

    kernel = functools.partial(_critic_transformer_kernel,
                               nhead=nhead, num_layers=num_layers,
                               d_model=d_model, dh_pad=HP)

    out = pl.pallas_call(
        kernel,
        out_shape=jax.ShapeDtypeStruct((B, S, VP), jnp.float32),
        grid=(B,),
        in_specs=[pl.BlockSpec((1, S, SP), lambda b: (b, 0, 0))]
                 + [_const_spec(a) for a in weights],
        out_specs=pl.BlockSpec((1, S, VP), lambda b: (b, 0, 0)),
        compiler_params=pltpu.CompilerParams(dimension_semantics=("parallel",)),
    )(s_pad, *weights)
    return out[:, :, :1]                                               # (B, S, 1)


# --------------------------- parameter building ----------------------------- #

def make_positional_encoding(max_len, d_model):
    position = jnp.arange(max_len, dtype=jnp.float32)[:, None]
    div_term = jnp.exp(jnp.arange(0, d_model, 2, dtype=jnp.float32)
                       * (-math.log(10000.0) / d_model))
    pe = jnp.zeros((max_len, d_model), jnp.float32)
    pe = pe.at[:, 0::2].set(jnp.sin(position * div_term))
    pe = pe.at[:, 1::2].set(jnp.cos(position * div_term))
    return pe


def init_raw_params(key, state_dim, hidden_dim, ff_dim, num_layers, max_len):
    """Logical (unpadded) parameters in (in_features, out_features) layout."""
    keys = jax.random.split(key, 2 + num_layers)
    ortho = jax.nn.initializers.orthogonal

    def xavier(k, fan_in, fan_out):
        lim = math.sqrt(6.0 / (fan_in + fan_out))
        return jax.random.uniform(k, (fan_in, fan_out), jnp.float32, -lim, lim)

    raw = {
        # use_orthogonal_init: gain=0.01, zero bias for critic_fc1 / value_layer
        "w_fc1": ortho(scale=0.01)(keys[0], (hidden_dim, state_dim), jnp.float32).T,
        "b_fc1": jnp.zeros((hidden_dim,), jnp.float32),
        "w_val": ortho(scale=0.01)(keys[1], (1, hidden_dim), jnp.float32).T,
        "b_val": jnp.zeros((1,), jnp.float32),
        "pe": make_positional_encoding(max_len, hidden_dim),
        "layers": [],
    }
    for l in range(num_layers):
        lk = jax.random.split(keys[2 + l], 4)
        raw["layers"].append({
            "w_qkv": xavier(lk[0], hidden_dim, 3 * hidden_dim),   # columns: q | k | v
            "b_qkv": jnp.zeros((3 * hidden_dim,), jnp.float32),
            "w_o": xavier(lk[1], hidden_dim, hidden_dim),
            "b_o": jnp.zeros((hidden_dim,), jnp.float32),
            "ln1_g": jnp.ones((hidden_dim,), jnp.float32),
            "ln1_b": jnp.zeros((hidden_dim,), jnp.float32),
            "w_ff1": xavier(lk[2], hidden_dim, ff_dim),
            "b_ff1": jnp.zeros((ff_dim,), jnp.float32),
            "w_ff2": xavier(lk[3], ff_dim, hidden_dim),
            "b_ff2": jnp.zeros((hidden_dim,), jnp.float32),
            "ln2_g": jnp.ones((hidden_dim,), jnp.float32),
            "ln2_b": jnp.zeros((hidden_dim,), jnp.float32),
        })
    return raw


def _ceil_to(n, m):
    return ((n + m - 1) // m) * m


def _pad_to(a, shape):
    return jnp.pad(a, [(0, t - s) for s, t in zip(a.shape, shape)])


def pack_params(raw, *, nhead, lane=128):
    """Zero-pad / restructure logical params into the lane-dense kernel layout."""
    sd, D = raw["w_fc1"].shape
    F = raw["layers"][0]["w_ff1"].shape[1]
    dh = D // nhead
    SP, DP, FP, HP, VP = (_ceil_to(sd, lane), _ceil_to(D, lane),
                          _ceil_to(F, lane), _ceil_to(dh, lane), lane)

    packed = {
        "w_fc1": _pad_to(raw["w_fc1"], (SP, DP)),
        "b_fc1": _pad_to(raw["b_fc1"][None, :], (1, DP)),
        "pe": _pad_to(raw["pe"], (raw["pe"].shape[0], DP)),
        "w_val": _pad_to(raw["w_val"], (DP, VP)),
        "b_val": _pad_to(raw["b_val"][None, :], (1, VP)),
    }

    w_qkv_l, b_qkv_l, w_o_l, b_o_l = [], [], [], []
    ln1g_l, ln1b_l, ln2g_l, ln2b_l = [], [], [], []
    w_ff1_l, b_ff1_l, w_ff2_l, b_ff2_l = [], [], [], []
    for lp in raw["layers"]:
        # QKV: per-head padded column blocks: [q_0 ... q_{H-1} | k_0 ... | v_0 ...]
        wqkv = jnp.zeros((DP, 3 * nhead * HP), jnp.float32)
        bqkv = jnp.zeros((1, 3 * nhead * HP), jnp.float32)
        for kind in range(3):                                  # 0:q, 1:k, 2:v
            for h in range(nhead):
                src_c = kind * D + h * dh
                dst_c = (kind * nhead + h) * HP
                wqkv = wqkv.at[:D, dst_c:dst_c + dh].set(
                    lp["w_qkv"][:, src_c:src_c + dh])
                bqkv = bqkv.at[0, dst_c:dst_c + dh].set(
                    lp["b_qkv"][src_c:src_c + dh])
        w_qkv_l.append(wqkv)
        b_qkv_l.append(bqkv)

        # per-head output projection: W_o split by input rows, padded to (HP, DP)
        for h in range(nhead):
            woh = jnp.zeros((HP, DP), jnp.float32)
            woh = woh.at[:dh, :D].set(lp["w_o"][h * dh:(h + 1) * dh, :])
            w_o_l.append(woh)
        b_o_l.append(_pad_to(lp["b_o"][None, :], (1, DP)))

        ln1g_l.append(_pad_to(lp["ln1_g"][None, :], (1, DP)))
        ln1b_l.append(_pad_to(lp["ln1_b"][None, :], (1, DP)))
        ln2g_l.append(_pad_to(lp["ln2_g"][None, :], (1, DP)))
        ln2b_l.append(_pad_to(lp["ln2_b"][None, :], (1, DP)))
        w_ff1_l.append(_pad_to(lp["w_ff1"], (DP, FP)))
        b_ff1_l.append(_pad_to(lp["b_ff1"][None, :], (1, FP)))
        w_ff2_l.append(_pad_to(lp["w_ff2"], (FP, DP)))
        b_ff2_l.append(_pad_to(lp["b_ff2"][None, :], (1, DP)))

    packed.update({
        "w_qkv": jnp.stack(w_qkv_l),         # (L, DP, 3*nhead*HP)
        "b_qkv": jnp.stack(b_qkv_l),         # (L, 1, 3*nhead*HP)
        "w_o": jnp.stack(w_o_l),             # (L*nhead, HP, DP)
        "b_o": jnp.stack(b_o_l),             # (L, 1, DP)
        "ln1_g": jnp.stack(ln1g_l), "ln1_b": jnp.stack(ln1b_l),
        "ln2_g": jnp.stack(ln2g_l), "ln2_b": jnp.stack(ln2b_l),
        "w_ff1": jnp.stack(w_ff1_l), "b_ff1": jnp.stack(b_ff1_l),
        "w_ff2": jnp.stack(w_ff2_l), "b_ff2": jnp.stack(b_ff2_l),
    })
    return packed


# --------------------------- pure-JAX reference ------------------------------ #

def _layer_norm_ref(x, g, b, eps=1e-5):
    mu = jnp.mean(x, axis=-1, keepdims=True)
    var = jnp.mean((x - mu) ** 2, axis=-1, keepdims=True)
    return (x - mu) * jax.lax.rsqrt(var + eps) * g + b


def critic_transformer_reference(raw, s, *, nhead):
    hp = jax.lax.Precision.HIGHEST
    B, S, _ = s.shape
    D = raw["w_fc1"].shape[1]
    dh = D // nhead
    x = jnp.maximum(jnp.einsum("bsi,io->bso", s, raw["w_fc1"], precision=hp)
                    + raw["b_fc1"], 0.0)
    x = x + raw["pe"][:S][None]
    row = jnp.arange(S)[:, None]
    col = jnp.arange(S)[None, :]
    causal = col <= row
    for lp in raw["layers"]:
        qkv = jnp.einsum("bsi,io->bso", x, lp["w_qkv"], precision=hp) + lp["b_qkv"]
        q, k, v = qkv[..., :D], qkv[..., D:2 * D], qkv[..., 2 * D:]
        split = lambda t: t.reshape(B, S, nhead, dh).transpose(0, 2, 1, 3)
        qh, kh, vh = split(q), split(k), split(v)
        sc = jnp.einsum("bhqd,bhkd->bhqk", qh, kh, precision=hp) / math.sqrt(dh)
        sc = jnp.where(causal, sc, -1e30)
        p = jax.nn.softmax(sc, axis=-1)
        av = jnp.einsum("bhqk,bhkd->bhqd", p, vh, precision=hp)
        av = av.transpose(0, 2, 1, 3).reshape(B, S, D)
        attn = jnp.einsum("bsi,io->bso", av, lp["w_o"], precision=hp) + lp["b_o"]
        x = _layer_norm_ref(x + attn, lp["ln1_g"], lp["ln1_b"])
        ff = jnp.maximum(jnp.einsum("bsi,io->bso", x, lp["w_ff1"], precision=hp)
                         + lp["b_ff1"], 0.0)
        ff = jnp.einsum("bsi,io->bso", ff, lp["w_ff2"], precision=hp) + lp["b_ff2"]
        x = _layer_norm_ref(x + ff, lp["ln2_g"], lp["ln2_b"])
    return jnp.einsum("bsi,io->bso", x, raw["w_val"], precision=hp) + raw["b_val"]


# ----------------------------------- main ------------------------------------ #

if __name__ == "__main__":
    B, S = 2, 8                       # batch, seq_len
    state_dim = 12
    hidden_dim = 32                   # args.hidden_dim (d_model)
    nhead = 4                         # args.transformer_nhead
    ff_dim = 64                       # args.transformer_dim_feedforward
    num_layers = 2                    # args.transformer_num_layers
    max_len = 64                      # args.transformer_max_len

    key = jax.random.PRNGKey(0)
    pkey, skey = jax.random.split(key)
    raw = init_raw_params(pkey, state_dim, hidden_dim, ff_dim, num_layers, max_len)
    packed = pack_params(raw, nhead=nhead)
    s = jax.random.normal(skey, (B, S, state_dim), jnp.float32)

    value = critic_transformer_forward(packed, s, nhead=nhead,
                                       num_layers=num_layers, d_model=hidden_dim)
    value = jax.block_until_ready(value)

    assert value.shape == (B, S, 1)
    assert bool(jnp.all(jnp.isfinite(value)))

    # numerical sanity check against a plain-JAX reference on the unpadded params
    value_ref = critic_transformer_reference(raw, s, nhead=nhead)
    max_err = float(jnp.max(jnp.abs(value - value_ref)))
    assert max_err <= 2e-3, f"max abs err vs reference: {max_err}"

    print("KERNEL_OK")
</pallas_src>

<mosaic_0001>
module attributes {stable_mosaic.version = 11 : i64} {
  func.func @_critic_transformer_kernel(%arg0: i32, %arg1: memref<1x8x128xf32, #tpu.memory_space<vmem>>, %arg2: memref<128x128xf32, #tpu.memory_space<vmem>>, %arg3: memref<1x128xf32, #tpu.memory_space<vmem>>, %arg4: memref<8x128xf32, #tpu.memory_space<vmem>>, %arg5: memref<2x128x1536xf32, #tpu.memory_space<vmem>>, %arg6: memref<2x1x1536xf32, #tpu.memory_space<vmem>>, %arg7: memref<8x128x128xf32, #tpu.memory_space<vmem>>, %arg8: memref<2x1x128xf32, #tpu.memory_space<vmem>>, %arg9: memref<2x1x128xf32, #tpu.memory_space<vmem>>, %arg10: memref<2x1x128xf32, #tpu.memory_space<vmem>>, %arg11: memref<2x128x128xf32, #tpu.memory_space<vmem>>, %arg12: memref<2x1x128xf32, #tpu.memory_space<vmem>>, %arg13: memref<2x128x128xf32, #tpu.memory_space<vmem>>, %arg14: memref<2x1x128xf32, #tpu.memory_space<vmem>>, %arg15: memref<2x1x128xf32, #tpu.memory_space<vmem>>, %arg16: memref<2x1x128xf32, #tpu.memory_space<vmem>>, %arg17: memref<128x128xf32, #tpu.memory_space<vmem>>, %arg18: memref<1x128xf32, #tpu.memory_space<vmem>>, %arg19: memref<1x8x128xf32, #tpu.memory_space<vmem>>) attributes {dimension_semantics = [#tpu.dimension_semantics<parallel>], iteration_bounds = array<i64: 2>, scalar_prefetch = 0 : i64, scratch_operands = 0 : i64, tpu.core_type = #tpu.core_type<tc>, window_params = [{transform_indices = @transform_0, window_bounds = array<i64: 1, 8, 128>}, {pipeline_mode = #tpu.pipeline_mode<synchronous>, transform_indices = @transform_1, window_bounds = array<i64: 128, 128>}, {pipeline_mode = #tpu.pipeline_mode<synchronous>, transform_indices = @transform_2, window_bounds = array<i64: 1, 128>}, {pipeline_mode = #tpu.pipeline_mode<synchronous>, transform_indices = @transform_3, window_bounds = array<i64: 8, 128>}, {pipeline_mode = #tpu.pipeline_mode<synchronous>, transform_indices = @transform_4, window_bounds = array<i64: 2, 128, 1536>}, {pipeline_mode = #tpu.pipeline_mode<synchronous>, transform_indices = @transform_5, window_bounds = array<i64: 2, 1, 1536>}, {pipeline_mode = #tpu.pipeline_mode<synchronous>, transform_indices = @transform_6, window_bounds = array<i64: 8, 128, 128>}, {pipeline_mode = #tpu.pipeline_mode<synchronous>, transform_indices = @transform_7, window_bounds = array<i64: 2, 1, 128>}, {pipeline_mode = #tpu.pipeline_mode<synchronous>, transform_indices = @transform_8, window_bounds = array<i64: 2, 1, 128>}, {pipeline_mode = #tpu.pipeline_mode<synchronous>, transform_indices = @transform_9, window_bounds = array<i64: 2, 1, 128>}, {pipeline_mode = #tpu.pipeline_mode<synchronous>, transform_indices = @transform_10, window_bounds = array<i64: 2, 128, 128>}, {pipeline_mode = #tpu.pipeline_mode<synchronous>, transform_indices = @transform_11, window_bounds = array<i64: 2, 1, 128>}, {pipeline_mode = #tpu.pipeline_mode<synchronous>, transform_indices = @transform_12, window_bounds = array<i64: 2, 128, 128>}, {pipeline_mode = #tpu.pipeline_mode<synchronous>, transform_indices = @transform_13, window_bounds = array<i64: 2, 1, 128>}, {pipeline_mode = #tpu.pipeline_mode<synchronous>, transform_indices = @transform_14, window_bounds = array<i64: 2, 1, 128>}, {pipeline_mode = #tpu.pipeline_mode<synchronous>, transform_indices = @transform_15, window_bounds = array<i64: 2, 1, 128>}, {pipeline_mode = #tpu.pipeline_mode<synchronous>, transform_indices = @transform_16, window_bounds = array<i64: 128, 128>}, {pipeline_mode = #tpu.pipeline_mode<synchronous>, transform_indices = @transform_17, window_bounds = array<i64: 1, 128>}, {transform_indices = @transform_18, window_bounds = array<i64: 1, 8, 128>}]} {
    %c0 = arith.constant 0 : index
    %c0_0 = arith.constant 0 : index
    %c0_1 = arith.constant 0 : index
    %0 = vector.load %arg1[%c0, %c0_0, %c0_1] : memref<1x8x128xf32, #tpu.memory_space<vmem>>, vector<1x8x128xf32>
    %1 = vector.shape_cast %0 : vector<1x8x128xf32> to vector<8x128xf32>
    %c0_2 = arith.constant 0 : index
    %c0_3 = arith.constant 0 : index
    %2 = vector.load %arg2[%c0_2, %c0_3] : memref<128x128xf32, #tpu.memory_space<vmem>>, vector<128x128xf32>
    %cst = arith.constant dense<0.000000e+00> : vector<8x128xf32>
    %3 = tpu.matmul %1, %2, %cst {dimension_numbers = #tpu.dot_dimension_numbers<[1], [0], [0], [1], [0, 0, 1, 1], [], []>} : vector<8x128xf32>, vector<128x128xf32>, vector<8x128xf32> -> vector<8x128xf32>
    %c0_4 = arith.constant 0 : index
    %c0_5 = arith.constant 0 : index
    %4 = vector.load %arg3[%c0_4, %c0_5] : memref<1x128xf32, #tpu.memory_space<vmem>>, vector<1x128xf32>
    %5 = vector.broadcast %4 : vector<1x128xf32> to vector<8x128xf32>
    %6 = arith.addf %3, %5 : vector<8x128xf32>
    %cst_6 = arith.constant 0.000000e+00 : f32
    %7 = vector.broadcast %cst_6 : f32 to vector<8x128xf32>
    %8 = arith.maximumf %6, %7 : vector<8x128xf32>
    %c0_7 = arith.constant 0 : index
    %c0_8 = arith.constant 0 : index
    %9 = vector.load %arg4[%c0_7, %c0_8] : memref<8x128xf32, #tpu.memory_space<vmem>>, vector<8x128xf32>
    %10 = arith.addf %8, %9 : vector<8x128xf32>
    %11 = tpu.iota {dimensions = array<i32: 0>} : vector<8x8xi32>
    %12 = tpu.iota {dimensions = array<i32: 1>} : vector<8x8xi32>
    %13 = arith.cmpi sle, %12, %11 : vector<8x8xi32>
    %c0_9 = arith.constant 0 : index
    %c0_10 = arith.constant 0 : index
    %c0_11 = arith.constant 0 : index
    %14 = vector.load %arg5[%c0_9, %c0_10, %c0_11] : memref<2x128x1536xf32, #tpu.memory_space<vmem>>, vector<1x128x1536xf32>
    %15 = vector.shape_cast %14 : vector<1x128x1536xf32> to vector<128x1536xf32>
    %cst_12 = arith.constant dense<0.000000e+00> : vector<8x1536xf32>
    %16 = tpu.matmul %10, %15, %cst_12 {dimension_numbers = #tpu.dot_dimension_numbers<[1], [0], [0], [1], [0, 0, 1, 1], [], []>} : vector<8x128xf32>, vector<128x1536xf32>, vector<8x1536xf32> -> vector<8x1536xf32>
    %c0_13 = arith.constant 0 : index
    %c0_14 = arith.constant 0 : index
    %c0_15 = arith.constant 0 : index
    %17 = vector.load %arg6[%c0_13, %c0_14, %c0_15] : memref<2x1x1536xf32, #tpu.memory_space<vmem>>, vector<1x1x1536xf32>
    %18 = vector.shape_cast %17 : vector<1x1x1536xf32> to vector<1x1536xf32>
    %19 = vector.broadcast %18 : vector<1x1536xf32> to vector<8x1536xf32>
    %20 = arith.addf %16, %19 : vector<8x1536xf32>
    %cst_16 = arith.constant 0.000000e+00 : f32
    %21 = vector.broadcast %cst_16 : f32 to vector<8x128xf32>
    %22 = vector.extract_strided_slice %20 {offsets = [0, 0], sizes = [8, 128], strides = [1, 1]} : vector<8x1536xf32> to vector<8x128xf32>
    %23 = vector.extract_strided_slice %20 {offsets = [0, 512], sizes = [8, 128], strides = [1, 1]} : vector<8x1536xf32> to vector<8x128xf32>
    %24 = vector.extract_strided_slice %20 {offsets = [0, 1024], sizes = [8, 128], strides = [1, 1]} : vector<8x1536xf32> to vector<8x128xf32>
    "tpu.trace_start"() <{level = 10 : i32, message = "qd,kd->qk"}> : () -> ()
    %cst_17 = arith.constant dense<0.000000e+00> : vector<8x8xf32>
    %25 = tpu.matmul %22, %23, %cst_17 {dimension_numbers = #tpu.dot_dimension_numbers<[1], [1], [0], [0], [0, 0, 1, 0], [], []>} : vector<8x128xf32>, vector<8x128xf32>, vector<8x8xf32> -> vector<8x8xf32>
    "tpu.trace_stop"() : () -> ()
    %cst_18 = arith.constant 0.353553385 : f32
    %26 = vector.broadcast %cst_18 : f32 to vector<8x8xf32>
    %27 = arith.mulf %25, %26 : vector<8x8xf32>
    %cst_19 = arith.constant -1.000000e+30 : f32
    %28 = vector.broadcast %cst_19 : f32 to vector<8x8xf32>
    %29 = arith.select %13, %27, %28 : vector<8x8xi1>, vector<8x8xf32>
    %cst_20 = arith.constant dense<0xFF800000> : vector<8xf32>
    %30 = vector.multi_reduction <maximumf>, %29, %cst_20 [1] : vector<8x8xf32> to vector<8xf32>
    %31 = vector.shape_cast %30 : vector<8xf32> to vector<8x1xf32>
    %32 = vector.broadcast %31 : vector<8x1xf32> to vector<8x8xf32>
    %33 = arith.subf %29, %32 : vector<8x8xf32>
    %34 = math.exp %33 : vector<8x8xf32>
    %cst_21 = arith.constant dense<0.000000e+00> : vector<8xf32>
    %35 = vector.multi_reduction <add>, %34, %cst_21 [1] : vector<8x8xf32> to vector<8xf32>
    %36 = vector.shape_cast %35 : vector<8xf32> to vector<8x1xf32>
    %37 = tpu.reciprocal %36 {approx = true} : vector<8x1xf32> -> vector<8x1xf32>
    %38 = vector.broadcast %37 : vector<8x1xf32> to vector<8x8xf32>
    %39 = arith.mulf %34, %38 : vector<8x8xf32>
    %cst_22 = arith.constant dense<0.000000e+00> : vector<8x128xf32>
    %40 = tpu.matmul %39, %24, %cst_22 {dimension_numbers = #tpu.dot_dimension_numbers<[1], [0], [0], [1], [0, 0, 1, 1], [], []>} : vector<8x8xf32>, vector<8x128xf32>, vector<8x128xf32> -> vector<8x128xf32>
    %c0_23 = arith.constant 0 : index
    %c0_24 = arith.constant 0 : index
    %c0_25 = arith.constant 0 : index
    %41 = vector.load %arg7[%c0_23, %c0_24, %c0_25] : memref<8x128x128xf32, #tpu.memory_space<vmem>>, vector<1x128x128xf32>
    %42 = vector.shape_cast %41 : vector<1x128x128xf32> to vector<128x128xf32>
    %cst_26 = arith.constant dense<0.000000e+00> : vector<8x128xf32>
    %43 = tpu.matmul %40, %42, %cst_26 {dimension_numbers = #tpu.dot_dimension_numbers<[1], [0], [0], [1], [0, 0, 1, 1], [], []>} : vector<8x128xf32>, vector<128x128xf32>, vector<8x128xf32> -> vector<8x128xf32>
    %44 = arith.addf %21, %43 : vector<8x128xf32>
    %45 = vector.extract_strided_slice %20 {offsets = [0, 128], sizes = [8, 128], strides = [1, 1]} : vector<8x1536xf32> to vector<8x128xf32>
    %46 = vector.extract_strided_slice %20 {offsets = [0, 640], sizes = [8, 128], strides = [1, 1]} : vector<8x1536xf32> to vector<8x128xf32>
    %47 = vector.extract_strided_slice %20 {offsets = [0, 1152], sizes = [8, 128], strides = [1, 1]} : vector<8x1536xf32> to vector<8x128xf32>
    "tpu.trace_start"() <{level = 10 : i32, message = "qd,kd->qk"}> : () -> ()
    %cst_27 = arith.constant dense<0.000000e+00> : vector<8x8xf32>
    %48 = tpu.matmul %45, %46, %cst_27 {dimension_numbers = #tpu.dot_dimension_numbers<[1], [1], [0], [0], [0, 0, 1, 0], [], []>} : vector<8x128xf32>, vector<8x128xf32>, vector<8x8xf32> -> vector<8x8xf32>
    "tpu.trace_stop"() : () -> ()
    %cst_28 = arith.constant 0.353553385 : f32
    %49 = vector.broadcast %cst_28 : f32 to vector<8x8xf32>
    %50 = arith.mulf %48, %49 : vector<8x8xf32>
    %cst_29 = arith.constant -1.000000e+30 : f32
    %51 = vector.broadcast %cst_29 : f32 to vector<8x8xf32>
    %52 = arith.select %13, %50, %51 : vector<8x8xi1>, vector<8x8xf32>
    %cst_30 = arith.constant dense<0xFF800000> : vector<8xf32>
    %53 = vector.multi_reduction <maximumf>, %52, %cst_30 [1] : vector<8x8xf32> to vector<8xf32>
    %54 = vector.shape_cast %53 : vector<8xf32> to vector<8x1xf32>
    %55 = vector.broadcast %54 : vector<8x1xf32> to vector<8x8xf32>
    %56 = arith.subf %52, %55 : vector<8x8xf32>
    %57 = math.exp %56 : vector<8x8xf32>
    %cst_31 = arith.constant dense<0.000000e+00> : vector<8xf32>
    %58 = vector.multi_reduction <add>, %57, %cst_31 [1] : vector<8x8xf32> to vector<8xf32>
    %59 = vector.shape_cast %58 : vector<8xf32> to vector<8x1xf32>
    %60 = tpu.reciprocal %59 {approx = true} : vector<8x1xf32> -> vector<8x1xf32>
    %61 = vector.broadcast %60 : vector<8x1xf32> to vector<8x8xf32>
    %62 = arith.mulf %57, %61 : vector<8x8xf32>
    %cst_32 = arith.constant dense<0.000000e+00> : vector<8x128xf32>
    %63 = tpu.matmul %62, %47, %cst_32 {dimension_numbers = #tpu.dot_dimension_numbers<[1], [0], [0], [1], [0, 0, 1, 1], [], []>} : vector<8x8xf32>, vector<8x128xf32>, vector<8x128xf32> -> vector<8x128xf32>
    %c1 = arith.constant 1 : index
    %c0_33 = arith.constant 0 : index
    %c0_34 = arith.constant 0 : index
    %64 = vector.load %arg7[%c1, %c0_33, %c0_34] : memref<8x128x128xf32, #tpu.memory_space<vmem>>, vector<1x128x128xf32>
    %65 = vector.shape_cast %64 : vector<1x128x128xf32> to vector<128x128xf32>
    %cst_35 = arith.constant dense<0.000000e+00> : vector<8x128xf32>
    %66 = tpu.matmul %63, %65, %cst_35 {dimension_numbers = #tpu.dot_dimension_numbers<[1], [0], [0], [1], [0, 0, 1, 1], [], []>} : vector<8x128xf32>, vector<128x128xf32>, vector<8x128xf32> -> vector<8x128xf32>
    %67 = arith.addf %44, %66 : vector<8x128xf32>
    %68 = vector.extract_strided_slice %20 {offsets = [0, 256], sizes = [8, 128], strides = [1, 1]} : vector<8x1536xf32> to vector<8x128xf32>
    %69 = vector.extract_strided_slice %20 {offsets = [0, 768], sizes = [8, 128], strides = [1, 1]} : vector<8x1536xf32> to vector<8x128xf32>
    %70 = vector.extract_strided_slice %20 {offsets = [0, 1280], sizes = [8, 128], strides = [1, 1]} : vector<8x1536xf32> to vector<8x128xf32>
    "tpu.trace_start"() <{level = 10 : i32, message = "qd,kd->qk"}> : () -> ()
    %cst_36 = arith.constant dense<0.000000e+00> : vector<8x8xf32>
    %71 = tpu.matmul %68, %69, %cst_36 {dimension_numbers = #tpu.dot_dimension_numbers<[1], [1], [0], [0], [0, 0, 1, 0], [], []>} : vector<8x128xf32>, vector<8x128xf32>, vector<8x8xf32> -> vector<8x8xf32>
    "tpu.trace_stop"() : () -> ()
    %cst_37 = arith.constant 0.353553385 : f32
    %72 = vector.broadcast %cst_37 : f32 to vector<8x8xf32>
    %73 = arith.mulf %71, %72 : vector<8x8xf32>
    %cst_38 = arith.constant -1.000000e+30 : f32
    %74 = vector.broadcast %cst_38 : f32 to vector<8x8xf32>
    %75 = arith.select %13, %73, %74 : vector<8x8xi1>, vector<8x8xf32>
    %cst_39 = arith.constant dense<0xFF800000> : vector<8xf32>
    %76 = vector.multi_reduction <maximumf>, %75, %cst_39 [1] : vector<8x8xf32> to vector<8xf32>
    %77 = vector.shape_cast %76 : vector<8xf32> to vector<8x1xf32>
    %78 = vector.broadcast %77 : vector<8x1xf32> to vector<8x8xf32>
    %79 = arith.subf %75, %78 : vector<8x8xf32>
    %80 = math.exp %79 : vector<8x8xf32>
    %cst_40 = arith.constant dense<0.000000e+00> : vector<8xf32>
    %81 = vector.multi_reduction <add>, %80, %cst_40 [1] : vector<8x8xf32> to vector<8xf32>
    %82 = vector.shape_cast %81 : vector<8xf32> to vector<8x1xf32>
    %83 = tpu.reciprocal %82 {approx = true} : vector<8x1xf32> -> vector<8x1xf32>
    %84 = vector.broadcast %83 : vector<8x1xf32> to vector<8x8xf32>
    %85 = arith.mulf %80, %84 : vector<8x8xf32>
    %cst_41 = arith.constant dense<0.000000e+00> : vector<8x128xf32>
    %86 = tpu.matmul %85, %70, %cst_41 {dimension_numbers = #tpu.dot_dimension_numbers<[1], [0], [0], [1], [0, 0, 1, 1], [], []>} : vector<8x8xf32>, vector<8x128xf32>, vector<8x128xf32> -> vector<8x128xf32>
    %c2 = arith.constant 2 : index
    %c0_42 = arith.constant 0 : index
    %c0_43 = arith.constant 0 : index
    %87 = vector.load %arg7[%c2, %c0_42, %c0_43] : memref<8x128x128xf32, #tpu.memory_space<vmem>>, vector<1x128x128xf32>
    %88 = vector.shape_cast %87 : vector<1x128x128xf32> to vector<128x128xf32>
    %cst_44 = arith.constant dense<0.000000e+00> : vector<8x128xf32>
    %89 = tpu.matmul %86, %88, %cst_44 {dimension_numbers = #tpu.dot_dimension_numbers<[1], [0], [0], [1], [0, 0, 1, 1], [], []>} : vector<8x128xf32>, vector<128x128xf32>, vector<8x128xf32> -> vector<8x128xf32>
    %90 = arith.addf %67, %89 : vector<8x128xf32>
    %91 = vector.extract_strided_slice %20 {offsets = [0, 384], sizes = [8, 128], strides = [1, 1]} : vector<8x1536xf32> to vector<8x128xf32>
    %92 = vector.extract_strided_slice %20 {offsets = [0, 896], sizes = [8, 128], strides = [1, 1]} : vector<8x1536xf32> to vector<8x128xf32>
    %93 = vector.extract_strided_slice %20 {offsets = [0, 1408], sizes = [8, 128], strides = [1, 1]} : vector<8x1536xf32> to vector<8x128xf32>
    "tpu.trace_start"() <{level = 10 : i32, message = "qd,kd->qk"}> : () -> ()
    %cst_45 = arith.constant dense<0.000000e+00> : vector<8x8xf32>
    %94 = tpu.matmul %91, %92, %cst_45 {dimension_numbers = #tpu.dot_dimension_numbers<[1], [1], [0], [0], [0, 0, 1, 0], [], []>} : vector<8x128xf32>, vector<8x128xf32>, vector<8x8xf32> -> vector<8x8xf32>
    "tpu.trace_stop"() : () -> ()
    %cst_46 = arith.constant 0.353553385 : f32
    %95 = vector.broadcast %cst_46 : f32 to vector<8x8xf32>
    %96 = arith.mulf %94, %95 : vector<8x8xf32>
    %cst_47 = arith.constant -1.000000e+30 : f32
    %97 = vector.broadcast %cst_47 : f32 to vector<8x8xf32>
    %98 = arith.select %13, %96, %97 : vector<8x8xi1>, vector<8x8xf32>
    %cst_48 = arith.constant dense<0xFF800000> : vector<8xf32>
    %99 = vector.multi_reduction <maximumf>, %98, %cst_48 [1] : vector<8x8xf32> to vector<8xf32>
    %100 = vector.shape_cast %99 : vector<8xf32> to vector<8x1xf32>
    %101 = vector.broadcast %100 : vector<8x1xf32> to vector<8x8xf32>
    %102 = arith.subf %98, %101 : vector<8x8xf32>
    %103 = math.exp %102 : vector<8x8xf32>
    %cst_49 = arith.constant dense<0.000000e+00> : vector<8xf32>
    %104 = vector.multi_reduction <add>, %103, %cst_49 [1] : vector<8x8xf32> to vector<8xf32>
    %105 = vector.shape_cast %104 : vector<8xf32> to vector<8x1xf32>
    %106 = tpu.reciprocal %105 {approx = true} : vector<8x1xf32> -> vector<8x1xf32>
    %107 = vector.broadcast %106 : vector<8x1xf32> to vector<8x8xf32>
    %108 = arith.mulf %103, %107 : vector<8x8xf32>
    %cst_50 = arith.constant dense<0.000000e+00> : vector<8x128xf32>
    %109 = tpu.matmul %108, %93, %cst_50 {dimension_numbers = #tpu.dot_dimension_numbers<[1], [0], [0], [1], [0, 0, 1, 1], [], []>} : vector<8x8xf32>, vector<8x128xf32>, vector<8x128xf32> -> vector<8x128xf32>
    %c3 = arith.constant 3 : index
    %c0_51 = arith.constant 0 : index
    %c0_52 = arith.constant 0 : index
    %110 = vector.load %arg7[%c3, %c0_51, %c0_52] : memref<8x128x128xf32, #tpu.memory_space<vmem>>, vector<1x128x128xf32>
    %111 = vector.shape_cast %110 : vector<1x128x128xf32> to vector<128x128xf32>
    %cst_53 = arith.constant dense<0.000000e+00> : vector<8x128xf32>
    %112 = tpu.matmul %109, %111, %cst_53 {dimension_numbers = #tpu.dot_dimension_numbers<[1], [0], [0], [1], [0, 0, 1, 1], [], []>} : vector<8x128xf32>, vector<128x128xf32>, vector<8x128xf32> -> vector<8x128xf32>
    %113 = arith.addf %90, %112 : vector<8x128xf32>
    %c0_54 = arith.constant 0 : index
    %c0_55 = arith.constant 0 : index
    %c0_56 = arith.constant 0 : index
    %114 = vector.load %arg8[%c0_54, %c0_55, %c0_56] : memref<2x1x128xf32, #tpu.memory_space<vmem>>, vector<1x1x128xf32>
    %115 = vector.shape_cast %114 : vector<1x1x128xf32> to vector<1x128xf32>
    %116 = vector.broadcast %115 : vector<1x128xf32> to vector<8x128xf32>
    %117 = arith.addf %113, %116 : vector<8x128xf32>
    %118 = arith.addf %10, %117 : vector<8x128xf32>
    %c0_57 = arith.constant 0 : index
    %c0_58 = arith.constant 0 : index
    %c0_59 = arith.constant 0 : index
    %119 = vector.load %arg9[%c0_57, %c0_58, %c0_59] : memref<2x1x128xf32, #tpu.memory_space<vmem>>, vector<1x1x128xf32>
    %120 = vector.shape_cast %119 : vector<1x1x128xf32> to vector<1x128xf32>
    %c0_60 = arith.constant 0 : index
    %c0_61 = arith.constant 0 : index
    %c0_62 = arith.constant 0 : index
    %121 = vector.load %arg10[%c0_60, %c0_61, %c0_62] : memref<2x1x128xf32, #tpu.memory_space<vmem>>, vector<1x1x128xf32>
    %122 = vector.shape_cast %121 : vector<1x1x128xf32> to vector<1x128xf32>
    %cst_63 = arith.constant dense<0.000000e+00> : vector<8xf32>
    %123 = vector.multi_reduction <add>, %118, %cst_63 [1] : vector<8x128xf32> to vector<8xf32>
    %124 = vector.shape_cast %123 : vector<8xf32> to vector<8x1xf32>
    %cst_64 = arith.constant 3.125000e-02 : f32
    %125 = vector.broadcast %cst_64 : f32 to vector<8x1xf32>
    %126 = arith.mulf %124, %125 : vector<8x1xf32>
    %127 = tpu.iota {dimensions = array<i32: 1>} : vector<8x128xi32>
    %c32_i32 = arith.constant 32 : i32
    %128 = vector.broadcast %c32_i32 : i32 to vector<8x128xi32>
    %129 = arith.cmpi slt, %127, %128 : vector<8x128xi32>
    %130 = vector.broadcast %126 : vector<8x1xf32> to vector<8x128xf32>
    %131 = arith.subf %118, %130 : vector<8x128xf32>
    %cst_65 = arith.constant 0.000000e+00 : f32
    %132 = vector.broadcast %cst_65 : f32 to vector<8x128xf32>
    %133 = arith.select %129, %131, %132 : vector<8x128xi1>, vector<8x128xf32>
    %134 = arith.mulf %133, %133 : vector<8x128xf32>
    %cst_66 = arith.constant dense<0.000000e+00> : vector<8xf32>
    %135 = vector.multi_reduction <add>, %134, %cst_66 [1] : vector<8x128xf32> to vector<8xf32>
    %136 = vector.shape_cast %135 : vector<8xf32> to vector<8x1xf32>
    %cst_67 = arith.constant 3.125000e-02 : f32
    %137 = vector.broadcast %cst_67 : f32 to vector<8x1xf32>
    %138 = arith.mulf %136, %137 : vector<8x1xf32>
    %cst_68 = arith.constant 9.99999974E-6 : f32
    %139 = vector.broadcast %cst_68 : f32 to vector<8x1xf32>
    %140 = arith.addf %138, %139 : vector<8x1xf32>
    %141 = math.rsqrt %140 : vector<8x1xf32>
    %142 = vector.broadcast %141 : vector<8x1xf32> to vector<8x128xf32>
    %143 = arith.mulf %133, %142 : vector<8x128xf32>
    %144 = vector.broadcast %120 : vector<1x128xf32> to vector<8x128xf32>
    %145 = arith.mulf %143, %144 : vector<8x128xf32>
    %146 = vector.broadcast %122 : vector<1x128xf32> to vector<8x128xf32>
    %147 = arith.addf %145, %146 : vector<8x128xf32>
    %c0_69 = arith.constant 0 : index
    %c0_70 = arith.constant 0 : index
    %c0_71 = arith.constant 0 : index
    %148 = vector.load %arg11[%c0_69, %c0_70, %c0_71] : memref<2x128x128xf32, #tpu.memory_space<vmem>>, vector<1x128x128xf32>
    %149 = vector.shape_cast %148 : vector<1x128x128xf32> to vector<128x128xf32>
    %cst_72 = arith.constant dense<0.000000e+00> : vector<8x128xf32>
    %150 = tpu.matmul %147, %149, %cst_72 {dimension_numbers = #tpu.dot_dimension_numbers<[1], [0], [0], [1], [0, 0, 1, 1], [], []>} : vector<8x128xf32>, vector<128x128xf32>, vector<8x128xf32> -> vector<8x128xf32>
    %c0_73 = arith.constant 0 : index
    %c0_74 = arith.constant 0 : index
    %c0_75 = arith.constant 0 : index
    %151 = vector.load %arg12[%c0_73, %c0_74, %c0_75] : memref<2x1x128xf32, #tpu.memory_space<vmem>>, vector<1x1x128xf32>
    %152 = vector.shape_cast %151 : vector<1x1x128xf32> to vector<1x128xf32>
    %153 = vector.broadcast %152 : vector<1x128xf32> to vector<8x128xf32>
    %154 = arith.addf %150, %153 : vector<8x128xf32>
    %cst_76 = arith.constant 0.000000e+00 : f32
    %155 = vector.broadcast %cst_76 : f32 to vector<8x128xf32>
    %156 = arith.maximumf %154, %155 : vector<8x128xf32>
    %c0_77 = arith.constant 0 : index
    %c0_78 = arith.constant 0 : index
    %c0_79 = arith.constant 0 : index
    %157 = vector.load %arg13[%c0_77, %c0_78, %c0_79] : memref<2x128x128xf32, #tpu.memory_space<vmem>>, vector<1x128x128xf32>
    %158 = vector.shape_cast %157 : vector<1x128x128xf32> to vector<128x128xf32>
    %cst_80 = arith.constant dense<0.000000e+00> : vector<8x128xf32>
    %159 = tpu.matmul %156, %158, %cst_80 {dimension_numbers = #tpu.dot_dimension_numbers<[1], [0], [0], [1], [0, 0, 1, 1], [], []>} : vector<8x128xf32>, vector<128x128xf32>, vector<8x128xf32> -> vector<8x128xf32>
    %c0_81 = arith.constant 0 : index
    %c0_82 = arith.constant 0 : index
    %c0_83 = arith.constant 0 : index
    %160 = vector.load %arg14[%c0_81, %c0_82, %c0_83] : memref<2x1x128xf32, #tpu.memory_space<vmem>>, vector<1x1x128xf32>
    %161 = vector.shape_cast %160 : vector<1x1x128xf32> to vector<1x128xf32>
    %162 = vector.broadcast %161 : vector<1x128xf32> to vector<8x128xf32>
    %163 = arith.addf %159, %162 : vector<8x128xf32>
    %164 = arith.addf %147, %163 : vector<8x128xf32>
    %c0_84 = arith.constant 0 : index
    %c0_85 = arith.constant 0 : index
    %c0_86 = arith.constant 0 : index
    %165 = vector.load %arg15[%c0_84, %c0_85, %c0_86] : memref<2x1x128xf32, #tpu.memory_space<vmem>>, vector<1x1x128xf32>
    %166 = vector.shape_cast %165 : vector<1x1x128xf32> to vector<1x128xf32>
    %c0_87 = arith.constant 0 : index
    %c0_88 = arith.constant 0 : index
    %c0_89 = arith.constant 0 : index
    %167 = vector.load %arg16[%c0_87, %c0_88, %c0_89] : memref<2x1x128xf32, #tpu.memory_space<vmem>>, vector<1x1x128xf32>
    %168 = vector.shape_cast %167 : vector<1x1x128xf32> to vector<1x128xf32>
    %cst_90 = arith.constant dense<0.000000e+00> : vector<8xf32>
    %169 = vector.multi_reduction <add>, %164, %cst_90 [1] : vector<8x128xf32> to vector<8xf32>
    %170 = vector.shape_cast %169 : vector<8xf32> to vector<8x1xf32>
    %cst_91 = arith.constant 3.125000e-02 : f32
    %171 = vector.broadcast %cst_91 : f32 to vector<8x1xf32>
    %172 = arith.mulf %170, %171 : vector<8x1xf32>
    %173 = tpu.iota {dimensions = array<i32: 1>} : vector<8x128xi32>
    %c32_i32_92 = arith.constant 32 : i32
    %174 = vector.broadcast %c32_i32_92 : i32 to vector<8x128xi32>
    %175 = arith.cmpi slt, %173, %174 : vector<8x128xi32>
    %176 = vector.broadcast %172 : vector<8x1xf32> to vector<8x128xf32>
    %177 = arith.subf %164, %176 : vector<8x128xf32>
    %cst_93 = arith.constant 0.000000e+00 : f32
    %178 = vector.broadcast %cst_93 : f32 to vector<8x128xf32>
    %179 = arith.select %175, %177, %178 : vector<8x128xi1>, vector<8x128xf32>
    %180 = arith.mulf %179, %179 : vector<8x128xf32>
    %cst_94 = arith.constant dense<0.000000e+00> : vector<8xf32>
    %181 = vector.multi_reduction <add>, %180, %cst_94 [1] : vector<8x128xf32> to vector<8xf32>
    %182 = vector.shape_cast %181 : vector<8xf32> to vector<8x1xf32>
    %cst_95 = arith.constant 3.125000e-02 : f32
    %183 = vector.broadcast %cst_95 : f32 to vector<8x1xf32>
    %184 = arith.mulf %182, %183 : vector<8x1xf32>
    %cst_96 = arith.constant 9.99999974E-6 : f32
    %185 = vector.broadcast %cst_96 : f32 to vector<8x1xf32>
    %186 = arith.addf %184, %185 : vector<8x1xf32>
    %187 = math.rsqrt %186 : vector<8x1xf32>
    %188 = vector.broadcast %187 : vector<8x1xf32> to vector<8x128xf32>
    %189 = arith.mulf %179, %188 : vector<8x128xf32>
    %190 = vector.broadcast %166 : vector<1x128xf32> to vector<8x128xf32>
    %191 = arith.mulf %189, %190 : vector<8x128xf32>
    %192 = vector.broadcast %168 : vector<1x128xf32> to vector<8x128xf32>
    %193 = arith.addf %191, %192 : vector<8x128xf32>
    %c1_97 = arith.constant 1 : index
    %c0_98 = arith.constant 0 : index
    %c0_99 = arith.constant 0 : index
    %194 = vector.load %arg5[%c1_97, %c0_98, %c0_99] : memref<2x128x1536xf32, #tpu.memory_space<vmem>>, vector<1x128x1536xf32>
    %195 = vector.shape_cast %194 : vector<1x128x1536xf32> to vector<128x1536xf32>
    %cst_100 = arith.constant dense<0.000000e+00> : vector<8x1536xf32>
    %196 = tpu.matmul %193, %195, %cst_100 {dimension_numbers = #tpu.dot_dimension_numbers<[1], [0], [0], [1], [0, 0, 1, 1], [], []>} : vector<8x128xf32>, vector<128x1536xf32>, vector<8x1536xf32> -> vector<8x1536xf32>
    %c1_101 = arith.constant 1 : index
    %c0_102 = arith.constant 0 : index
    %c0_103 = arith.constant 0 : index
    %197 = vector.load %arg6[%c1_101, %c0_102, %c0_103] : memref<2x1x1536xf32, #tpu.memory_space<vmem>>, vector<1x1x1536xf32>
    %198 = vector.shape_cast %197 : vector<1x1x1536xf32> to vector<1x1536xf32>
    %199 = vector.broadcast %198 : vector<1x1536xf32> to vector<8x1536xf32>
    %200 = arith.addf %196, %199 : vector<8x1536xf32>
    %cst_104 = arith.constant 0.000000e+00 : f32
    %201 = vector.broadcast %cst_104 : f32 to vector<8x128xf32>
    %202 = vector.extract_strided_slice %200 {offsets = [0, 0], sizes = [8, 128], strides = [1, 1]} : vector<8x1536xf32> to vector<8x128xf32>
    %203 = vector.extract_strided_slice %200 {offsets = [0, 512], sizes = [8, 128], strides = [1, 1]} : vector<8x1536xf32> to vector<8x128xf32>
    %204 = vector.extract_strided_slice %200 {offsets = [0, 1024], sizes = [8, 128], strides = [1, 1]} : vector<8x1536xf32> to vector<8x128xf32>
    "tpu.trace_start"() <{level = 10 : i32, message = "qd,kd->qk"}> : () -> ()
    %cst_105 = arith.constant dense<0.000000e+00> : vector<8x8xf32>
    %205 = tpu.matmul %202, %203, %cst_105 {dimension_numbers = #tpu.dot_dimension_numbers<[1], [1], [0], [0], [0, 0, 1, 0], [], []>} : vector<8x128xf32>, vector<8x128xf32>, vector<8x8xf32> -> vector<8x8xf32>
    "tpu.trace_stop"() : () -> ()
    %cst_106 = arith.constant 0.353553385 : f32
    %206 = vector.broadcast %cst_106 : f32 to vector<8x8xf32>
    %207 = arith.mulf %205, %206 : vector<8x8xf32>
    %cst_107 = arith.constant -1.000000e+30 : f32
    %208 = vector.broadcast %cst_107 : f32 to vector<8x8xf32>
    %209 = arith.select %13, %207, %208 : vector<8x8xi1>, vector<8x8xf32>
    %cst_108 = arith.constant dense<0xFF800000> : vector<8xf32>
    %210 = vector.multi_reduction <maximumf>, %209, %cst_108 [1] : vector<8x8xf32> to vector<8xf32>
    %211 = vector.shape_cast %210 : vector<8xf32> to vector<8x1xf32>
    %212 = vector.broadcast %211 : vector<8x1xf32> to vector<8x8xf32>
    %213 = arith.subf %209, %212 : vector<8x8xf32>
    %214 = math.exp %213 : vector<8x8xf32>
    %cst_109 = arith.constant dense<0.000000e+00> : vector<8xf32>
    %215 = vector.multi_reduction <add>, %214, %cst_109 [1] : vector<8x8xf32> to vector<8xf32>
    %216 = vector.shape_cast %215 : vector<8xf32> to vector<8x1xf32>
    %217 = tpu.reciprocal %216 {approx = true} : vector<8x1xf32> -> vector<8x1xf32>
    %218 = vector.broadcast %217 : vector<8x1xf32> to vector<8x8xf32>
    %219 = arith.mulf %214, %218 : vector<8x8xf32>
    %cst_110 = arith.constant dense<0.000000e+00> : vector<8x128xf32>
    %220 = tpu.matmul %219, %204, %cst_110 {dimension_numbers = #tpu.dot_dimension_numbers<[1], [0], [0], [1], [0, 0, 1, 1], [], []>} : vector<8x8xf32>, vector<8x128xf32>, vector<8x128xf32> -> vector<8x128xf32>
    %c4 = arith.constant 4 : index
    %c0_111 = arith.constant 0 : index
    %c0_112 = arith.constant 0 : index
    %221 = vector.load %arg7[%c4, %c0_111, %c0_112] : memref<8x128x128xf32, #tpu.memory_space<vmem>>, vector<1x128x128xf32>
    %222 = vector.shape_cast %221 : vector<1x128x128xf32> to vector<128x128xf32>
    %cst_113 = arith.constant dense<0.000000e+00> : vector<8x128xf32>
    %223 = tpu.matmul %220, %222, %cst_113 {dimension_numbers = #tpu.dot_dimension_numbers<[1], [0], [0], [1], [0, 0, 1, 1], [], []>} : vector<8x128xf32>, vector<128x128xf32>, vector<8x128xf32> -> vector<8x128xf32>
    %224 = arith.addf %201, %223 : vector<8x128xf32>
    %225 = vector.extract_strided_slice %200 {offsets = [0, 128], sizes = [8, 128], strides = [1, 1]} : vector<8x1536xf32> to vector<8x128xf32>
    %226 = vector.extract_strided_slice %200 {offsets = [0, 640], sizes = [8, 128], strides = [1, 1]} : vector<8x1536xf32> to vector<8x128xf32>
    %227 = vector.extract_strided_slice %200 {offsets = [0, 1152], sizes = [8, 128], strides = [1, 1]} : vector<8x1536xf32> to vector<8x128xf32>
    "tpu.trace_start"() <{level = 10 : i32, message = "qd,kd->qk"}> : () -> ()
    %cst_114 = arith.constant dense<0.000000e+00> : vector<8x8xf32>
    %228 = tpu.matmul %225, %226, %cst_114 {dimension_numbers = #tpu.dot_dimension_numbers<[1], [1], [0], [0], [0, 0, 1, 0], [], []>} : vector<8x128xf32>, vector<8x128xf32>, vector<8x8xf32> -> vector<8x8xf32>
    "tpu.trace_stop"() : () -> ()
    %cst_115 = arith.constant 0.353553385 : f32
    %229 = vector.broadcast %cst_115 : f32 to vector<8x8xf32>
    %230 = arith.mulf %228, %229 : vector<8x8xf32>
    %cst_116 = arith.constant -1.000000e+30 : f32
    %231 = vector.broadcast %cst_116 : f32 to vector<8x8xf32>
    %232 = arith.select %13, %230, %231 : vector<8x8xi1>, vector<8x8xf32>
    %cst_117 = arith.constant dense<0xFF800000> : vector<8xf32>
    %233 = vector.multi_reduction <maximumf>, %232, %cst_117 [1] : vector<8x8xf32> to vector<8xf32>
    %234 = vector.shape_cast %233 : vector<8xf32> to vector<8x1xf32>
    %235 = vector.broadcast %234 : vector<8x1xf32> to vector<8x8xf32>
    %236 = arith.subf %232, %235 : vector<8x8xf32>
    %237 = math.exp %236 : vector<8x8xf32>
    %cst_118 = arith.constant dense<0.000000e+00> : vector<8xf32>
    %238 = vector.multi_reduction <add>, %237, %cst_118 [1] : vector<8x8xf32> to vector<8xf32>
    %239 = vector.shape_cast %238 : vector<8xf32> to vector<8x1xf32>
    %240 = tpu.reciprocal %239 {approx = true} : vector<8x1xf32> -> vector<8x1xf32>
    %241 = vector.broadcast %240 : vector<8x1xf32> to vector<8x8xf32>
    %242 = arith.mulf %237, %241 : vector<8x8xf32>
    %cst_119 = arith.constant dense<0.000000e+00> : vector<8x128xf32>
    %243 = tpu.matmul %242, %227, %cst_119 {dimension_numbers = #tpu.dot_dimension_numbers<[1], [0], [0], [1], [0, 0, 1, 1], [], []>} : vector<8x8xf32>, vector<8x128xf32>, vector<8x128xf32> -> vector<8x128xf32>
    %c5 = arith.constant 5 : index
    %c0_120 = arith.constant 0 : index
    %c0_121 = arith.constant 0 : index
    %244 = vector.load %arg7[%c5, %c0_120, %c0_121] : memref<8x128x128xf32, #tpu.memory_space<vmem>>, vector<1x128x128xf32>
    %245 = vector.shape_cast %244 : vector<1x128x128xf32> to vector<128x128xf32>
    %cst_122 = arith.constant dense<0.000000e+00> : vector<8x128xf32>
    %246 = tpu.matmul %243, %245, %cst_122 {dimension_numbers = #tpu.dot_dimension_numbers<[1], [0], [0], [1], [0, 0, 1, 1], [], []>} : vector<8x128xf32>, vector<128x128xf32>, vector<8x128xf32> -> vector<8x128xf32>
    %247 = arith.addf %224, %246 : vector<8x128xf32>
    %248 = vector.extract_strided_slice %200 {offsets = [0, 256], sizes = [8, 128], strides = [1, 1]} : vector<8x1536xf32> to vector<8x128xf32>
    %249 = vector.extract_strided_slice %200 {offsets = [0, 768], sizes = [8, 128], strides = [1, 1]} : vector<8x1536xf32> to vector<8x128xf32>
    %250 = vector.extract_strided_slice %200 {offsets = [0, 1280], sizes = [8, 128], strides = [1, 1]} : vector<8x1536xf32> to vector<8x128xf32>
    "tpu.trace_start"() <{level = 10 : i32, message = "qd,kd->qk"}> : () -> ()
    %cst_123 = arith.constant dense<0.000000e+00> : vector<8x8xf32>
    %251 = tpu.matmul %248, %249, %cst_123 {dimension_numbers = #tpu.dot_dimension_numbers<[1], [1], [0], [0], [0, 0, 1, 0], [], []>} : vector<8x128xf32>, vector<8x128xf32>, vector<8x8xf32> -> vector<8x8xf32>
    "tpu.trace_stop"() : () -> ()
    %cst_124 = arith.constant 0.353553385 : f32
    %252 = vector.broadcast %cst_124 : f32 to vector<8x8xf32>
    %253 = arith.mulf %251, %252 : vector<8x8xf32>
    %cst_125 = arith.constant -1.000000e+30 : f32
    %254 = vector.broadcast %cst_125 : f32 to vector<8x8xf32>
    %255 = arith.select %13, %253, %254 : vector<8x8xi1>, vector<8x8xf32>
    %cst_126 = arith.constant dense<0xFF800000> : vector<8xf32>
    %256 = vector.multi_reduction <maximumf>, %255, %cst_126 [1] : vector<8x8xf32> to vector<8xf32>
    %257 = vector.shape_cast %256 : vector<8xf32> to vector<8x1xf32>
    %258 = vector.broadcast %257 : vector<8x1xf32> to vector<8x8xf32>
    %259 = arith.subf %255, %258 : vector<8x8xf32>
    %260 = math.exp %259 : vector<8x8xf32>
    %cst_127 = arith.constant dense<0.000000e+00> : vector<8xf32>
    %261 = vector.multi_reduction <add>, %260, %cst_127 [1] : vector<8x8xf32> to vector<8xf32>
    %262 = vector.shape_cast %261 : vector<8xf32> to vector<8x1xf32>
    %263 = tpu.reciprocal %262 {approx = true} : vector<8x1xf32> -> vector<8x1xf32>
    %264 = vector.broadcast %263 : vector<8x1xf32> to vector<8x8xf32>
    %265 = arith.mulf %260, %264 : vector<8x8xf32>
    %cst_128 = arith.constant dense<0.000000e+00> : vector<8x128xf32>
    %266 = tpu.matmul %265, %250, %cst_128 {dimension_numbers = #tpu.dot_dimension_numbers<[1], [0], [0], [1], [0, 0, 1, 1], [], []>} : vector<8x8xf32>, vector<8x128xf32>, vector<8x128xf32> -> vector<8x128xf32>
    %c6 = arith.constant 6 : index
    %c0_129 = arith.constant 0 : index
    %c0_130 = arith.constant 0 : index
    %267 = vector.load %arg7[%c6, %c0_129, %c0_130] : memref<8x128x128xf32, #tpu.memory_space<vmem>>, vector<1x128x128xf32>
    %268 = vector.shape_cast %267 : vector<1x128x128xf32> to vector<128x128xf32>
    %cst_131 = arith.constant dense<0.000000e+00> : vector<8x128xf32>
    %269 = tpu.matmul %266, %268, %cst_131 {dimension_numbers = #tpu.dot_dimension_numbers<[1], [0], [0], [1], [0, 0, 1, 1], [], []>} : vector<8x128xf32>, vector<128x128xf32>, vector<8x128xf32> -> vector<8x128xf32>
    %270 = arith.addf %247, %269 : vector<8x128xf32>
    %271 = vector.extract_strided_slice %200 {offsets = [0, 384], sizes = [8, 128], strides = [1, 1]} : vector<8x1536xf32> to vector<8x128xf32>
    %272 = vector.extract_strided_slice %200 {offsets = [0, 896], sizes = [8, 128], strides = [1, 1]} : vector<8x1536xf32> to vector<8x128xf32>
    %273 = vector.extract_strided_slice %200 {offsets = [0, 1408], sizes = [8, 128], strides = [1, 1]} : vector<8x1536xf32> to vector<8x128xf32>
    "tpu.trace_start"() <{level = 10 : i32, message = "qd,kd->qk"}> : () -> ()
    %cst_132 = arith.constant dense<0.000000e+00> : vector<8x8xf32>
    %274 = tpu.matmul %271, %272, %cst_132 {dimension_numbers = #tpu.dot_dimension_numbers<[1], [1], [0], [0], [0, 0, 1, 0], [], []>} : vector<8x128xf32>, vector<8x128xf32>, vector<8x8xf32> -> vector<8x8xf32>
    "tpu.trace_stop"() : () -> ()
    %cst_133 = arith.constant 0.353553385 : f32
    %275 = vector.broadcast %cst_133 : f32 to vector<8x8xf32>
    %276 = arith.mulf %274, %275 : vector<8x8xf32>
    %cst_134 = arith.constant -1.000000e+30 : f32
    %277 = vector.broadcast %cst_134 : f32 to vector<8x8xf32>
    %278 = arith.select %13, %276, %277 : vector<8x8xi1>, vector<8x8xf32>
    %cst_135 = arith.constant dense<0xFF800000> : vector<8xf32>
    %279 = vector.multi_reduction <maximumf>, %278, %cst_135 [1] : vector<8x8xf32> to vector<8xf32>
    %280 = vector.shape_cast %279 : vector<8xf32> to vector<8x1xf32>
    %281 = vector.broadcast %280 : vector<8x1xf32> to vector<8x8xf32>
    %282 = arith.subf %278, %281 : vector<8x8xf32>
    %283 = math.exp %282 : vector<8x8xf32>
    %cst_136 = arith.constant dense<0.000000e+00> : vector<8xf32>
    %284 = vector.multi_reduction <add>, %283, %cst_136 [1] : vector<8x8xf32> to vector<8xf32>
    %285 = vector.shape_cast %284 : vector<8xf32> to vector<8x1xf32>
    %286 = tpu.reciprocal %285 {approx = true} : vector<8x1xf32> -> vector<8x1xf32>
    %287 = vector.broadcast %286 : vector<8x1xf32> to vector<8x8xf32>
    %288 = arith.mulf %283, %287 : vector<8x8xf32>
    %cst_137 = arith.constant dense<0.000000e+00> : vector<8x128xf32>
    %289 = tpu.matmul %288, %273, %cst_137 {dimension_numbers = #tpu.dot_dimension_numbers<[1], [0], [0], [1], [0, 0, 1, 1], [], []>} : vector<8x8xf32>, vector<8x128xf32>, vector<8x128xf32> -> vector<8x128xf32>
    %c7 = arith.constant 7 : index
    %c0_138 = arith.constant 0 : index
    %c0_139 = arith.constant 0 : index
    %290 = vector.load %arg7[%c7, %c0_138, %c0_139] : memref<8x128x128xf32, #tpu.memory_space<vmem>>, vector<1x128x128xf32>
    %291 = vector.shape_cast %290 : vector<1x128x128xf32> to vector<128x128xf32>
    %cst_140 = arith.constant dense<0.000000e+00> : vector<8x128xf32>
    %292 = tpu.matmul %289, %291, %cst_140 {dimension_numbers = #tpu.dot_dimension_numbers<[1], [0], [0], [1], [0, 0, 1, 1], [], []>} : vector<8x128xf32>, vector<128x128xf32>, vector<8x128xf32> -> vector<8x128xf32>
    %293 = arith.addf %270, %292 : vector<8x128xf32>
    %c1_141 = arith.constant 1 : index
    %c0_142 = arith.constant 0 : index
    %c0_143 = arith.constant 0 : index
    %294 = vector.load %arg8[%c1_141, %c0_142, %c0_143] : memref<2x1x128xf32, #tpu.memory_space<vmem>>, vector<1x1x128xf32>
    %295 = vector.shape_cast %294 : vector<1x1x128xf32> to vector<1x128xf32>
    %296 = vector.broadcast %295 : vector<1x128xf32> to vector<8x128xf32>
    %297 = arith.addf %293, %296 : vector<8x128xf32>
    %298 = arith.addf %193, %297 : vector<8x128xf32>
    %c1_144 = arith.constant 1 : index
    %c0_145 = arith.constant 0 : index
    %c0_146 = arith.constant 0 : index
    %299 = vector.load %arg9[%c1_144, %c0_145, %c0_146] : memref<2x1x128xf32, #tpu.memory_space<vmem>>, vector<1x1x128xf32>
    %300 = vector.shape_cast %299 : vector<1x1x128xf32> to vector<1x128xf32>
    %c1_147 = arith.constant 1 : index
    %c0_148 = arith.constant 0 : index
    %c0_149 = arith.constant 0 : index
    %301 = vector.load %arg10[%c1_147, %c0_148, %c0_149] : memref<2x1x128xf32, #tpu.memory_space<vmem>>, vector<1x1x128xf32>
    %302 = vector.shape_cast %301 : vector<1x1x128xf32> to vector<1x128xf32>
    %cst_150 = arith.constant dense<0.000000e+00> : vector<8xf32>
    %303 = vector.multi_reduction <add>, %298, %cst_150 [1] : vector<8x128xf32> to vector<8xf32>
    %304 = vector.shape_cast %303 : vector<8xf32> to vector<8x1xf32>
    %cst_151 = arith.constant 3.125000e-02 : f32
    %305 = vector.broadcast %cst_151 : f32 to vector<8x1xf32>
    %306 = arith.mulf %304, %305 : vector<8x1xf32>
    %307 = tpu.iota {dimensions = array<i32: 1>} : vector<8x128xi32>
    %c32_i32_152 = arith.constant 32 : i32
    %308 = vector.broadcast %c32_i32_152 : i32 to vector<8x128xi32>
    %309 = arith.cmpi slt, %307, %308 : vector<8x128xi32>
    %310 = vector.broadcast %306 : vector<8x1xf32> to vector<8x128xf32>
    %311 = arith.subf %298, %310 : vector<8x128xf32>
    %cst_153 = arith.constant 0.000000e+00 : f32
    %312 = vector.broadcast %cst_153 : f32 to vector<8x128xf32>
    %313 = arith.select %309, %311, %312 : vector<8x128xi1>, vector<8x128xf32>
    %314 = arith.mulf %313, %313 : vector<8x128xf32>
    %cst_154 = arith.constant dense<0.000000e+00> : vector<8xf32>
    %315 = vector.multi_reduction <add>, %314, %cst_154 [1] : vector<8x128xf32> to vector<8xf32>
    %316 = vector.shape_cast %315 : vector<8xf32> to vector<8x1xf32>
    %cst_155 = arith.constant 3.125000e-02 : f32
    %317 = vector.broadcast %cst_155 : f32 to vector<8x1xf32>
    %318 = arith.mulf %316, %317 : vector<8x1xf32>
    %cst_156 = arith.constant 9.99999974E-6 : f32
    %319 = vector.broadcast %cst_156 : f32 to vector<8x1xf32>
    %320 = arith.addf %318, %319 : vector<8x1xf32>
    %321 = math.rsqrt %320 : vector<8x1xf32>
    %322 = vector.broadcast %321 : vector<8x1xf32> to vector<8x128xf32>
    %323 = arith.mulf %313, %322 : vector<8x128xf32>
    %324 = vector.broadcast %300 : vector<1x128xf32> to vector<8x128xf32>
    %325 = arith.mulf %323, %324 : vector<8x128xf32>
    %326 = vector.broadcast %302 : vector<1x128xf32> to vector<8x128xf32>
    %327 = arith.addf %325, %326 : vector<8x128xf32>
    %c1_157 = arith.constant 1 : index
    %c0_158 = arith.constant 0 : index
    %c0_159 = arith.constant 0 : index
    %328 = vector.load %arg11[%c1_157, %c0_158, %c0_159] : memref<2x128x128xf32, #tpu.memory_space<vmem>>, vector<1x128x128xf32>
    %329 = vector.shape_cast %328 : vector<1x128x128xf32> to vector<128x128xf32>
    %cst_160 = arith.constant dense<0.000000e+00> : vector<8x128xf32>
    %330 = tpu.matmul %327, %329, %cst_160 {dimension_numbers = #tpu.dot_dimension_numbers<[1], [0], [0], [1], [0, 0, 1, 1], [], []>} : vector<8x128xf32>, vector<128x128xf32>, vector<8x128xf32> -> vector<8x128xf32>
    %c1_161 = arith.constant 1 : index
    %c0_162 = arith.constant 0 : index
    %c0_163 = arith.constant 0 : index
    %331 = vector.load %arg12[%c1_161, %c0_162, %c0_163] : memref<2x1x128xf32, #tpu.memory_space<vmem>>, vector<1x1x128xf32>
    %332 = vector.shape_cast %331 : vector<1x1x128xf32> to vector<1x128xf32>
    %333 = vector.broadcast %332 : vector<1x128xf32> to vector<8x128xf32>
    %334 = arith.addf %330, %333 : vector<8x128xf32>
    %cst_164 = arith.constant 0.000000e+00 : f32
    %335 = vector.broadcast %cst_164 : f32 to vector<8x128xf32>
    %336 = arith.maximumf %334, %335 : vector<8x128xf32>
    %c1_165 = arith.constant 1 : index
    %c0_166 = arith.constant 0 : index
    %c0_167 = arith.constant 0 : index
    %337 = vector.load %arg13[%c1_165, %c0_166, %c0_167] : memref<2x128x128xf32, #tpu.memory_space<vmem>>, vector<1x128x128xf32>
    %338 = vector.shape_cast %337 : vector<1x128x128xf32> to vector<128x128xf32>
    %cst_168 = arith.constant dense<0.000000e+00> : vector<8x128xf32>
    %339 = tpu.matmul %336, %338, %cst_168 {dimension_numbers = #tpu.dot_dimension_numbers<[1], [0], [0], [1], [0, 0, 1, 1], [], []>} : vector<8x128xf32>, vector<128x128xf32>, vector<8x128xf32> -> vector<8x128xf32>
    %c1_169 = arith.constant 1 : index
    %c0_170 = arith.constant 0 : index
    %c0_171 = arith.constant 0 : index
    %340 = vector.load %arg14[%c1_169, %c0_170, %c0_171] : memref<2x1x128xf32, #tpu.memory_space<vmem>>, vector<1x1x128xf32>
    %341 = vector.shape_cast %340 : vector<1x1x128xf32> to vector<1x128xf32>
    %342 = vector.broadcast %341 : vector<1x128xf32> to vector<8x128xf32>
    %343 = arith.addf %339, %342 : vector<8x128xf32>
    %344 = arith.addf %327, %343 : vector<8x128xf32>
    %c1_172 = arith.constant 1 : index
    %c0_173 = arith.constant 0 : index
    %c0_174 = arith.constant 0 : index
    %345 = vector.load %arg15[%c1_172, %c0_173, %c0_174] : memref<2x1x128xf32, #tpu.memory_space<vmem>>, vector<1x1x128xf32>
    %346 = vector.shape_cast %345 : vector<1x1x128xf32> to vector<1x128xf32>
    %c1_175 = arith.constant 1 : index
    %c0_176 = arith.constant 0 : index
    %c0_177 = arith.constant 0 : index
    %347 = vector.load %arg16[%c1_175, %c0_176, %c0_177] : memref<2x1x128xf32, #tpu.memory_space<vmem>>, vector<1x1x128xf32>
    %348 = vector.shape_cast %347 : vector<1x1x128xf32> to vector<1x128xf32>
    %cst_178 = arith.constant dense<0.000000e+00> : vector<8xf32>
    %349 = vector.multi_reduction <add>, %344, %cst_178 [1] : vector<8x128xf32> to vector<8xf32>
    %350 = vector.shape_cast %349 : vector<8xf32> to vector<8x1xf32>
    %cst_179 = arith.constant 3.125000e-02 : f32
    %351 = vector.broadcast %cst_179 : f32 to vector<8x1xf32>
    %352 = arith.mulf %350, %351 : vector<8x1xf32>
    %353 = tpu.iota {dimensions = array<i32: 1>} : vector<8x128xi32>
    %c32_i32_180 = arith.constant 32 : i32
    %354 = vector.broadcast %c32_i32_180 : i32 to vector<8x128xi32>
    %355 = arith.cmpi slt, %353, %354 : vector<8x128xi32>
    %356 = vector.broadcast %352 : vector<8x1xf32> to vector<8x128xf32>
    %357 = arith.subf %344, %356 : vector<8x128xf32>
    %cst_181 = arith.constant 0.000000e+00 : f32
    %358 = vector.broadcast %cst_181 : f32 to vector<8x128xf32>
    %359 = arith.select %355, %357, %358 : vector<8x128xi1>, vector<8x128xf32>
    %360 = arith.mulf %359, %359 : vector<8x128xf32>
    %cst_182 = arith.constant dense<0.000000e+00> : vector<8xf32>
    %361 = vector.multi_reduction <add>, %360, %cst_182 [1] : vector<8x128xf32> to vector<8xf32>
    %362 = vector.shape_cast %361 : vector<8xf32> to vector<8x1xf32>
    %cst_183 = arith.constant 3.125000e-02 : f32
    %363 = vector.broadcast %cst_183 : f32 to vector<8x1xf32>
    %364 = arith.mulf %362, %363 : vector<8x1xf32>
    %cst_184 = arith.constant 9.99999974E-6 : f32
    %365 = vector.broadcast %cst_184 : f32 to vector<8x1xf32>
    %366 = arith.addf %364, %365 : vector<8x1xf32>
    %367 = math.rsqrt %366 : vector<8x1xf32>
    %368 = vector.broadcast %367 : vector<8x1xf32> to vector<8x128xf32>
    %369 = arith.mulf %359, %368 : vector<8x128xf32>
    %370 = vector.broadcast %346 : vector<1x128xf32> to vector<8x128xf32>
    %371 = arith.mulf %369, %370 : vector<8x128xf32>
    %372 = vector.broadcast %348 : vector<1x128xf32> to vector<8x128xf32>
    %373 = arith.addf %371, %372 : vector<8x128xf32>
    %c0_185 = arith.constant 0 : index
    %c0_186 = arith.constant 0 : index
    %374 = vector.load %arg17[%c0_185, %c0_186] : memref<128x128xf32, #tpu.memory_space<vmem>>, vector<128x128xf32>
    %cst_187 = arith.constant dense<0.000000e+00> : vector<8x128xf32>
    %375 = tpu.matmul %373, %374, %cst_187 {dimension_numbers = #tpu.dot_dimension_numbers<[1], [0], [0], [1], [0, 0, 1, 1], [], []>} : vector<8x128xf32>, vector<128x128xf32>, vector<8x128xf32> -> vector<8x128xf32>
    %c0_188 = arith.constant 0 : index
    %c0_189 = arith.constant 0 : index
    %376 = vector.load %arg18[%c0_188, %c0_189] : memref<1x128xf32, #tpu.memory_space<vmem>>, vector<1x128xf32>
    %377 = vector.broadcast %376 : vector<1x128xf32> to vector<8x128xf32>
    %378 = arith.addf %375, %377 : vector<8x128xf32>
    %c0_190 = arith.constant 0 : index
    %c0_191 = arith.constant 0 : index
    %c0_192 = arith.constant 0 : index
    %379 = vector.load %arg19[%c0_190, %c0_191, %c0_192] : memref<1x8x128xf32, #tpu.memory_space<vmem>>, vector<1x8x128xf32>
    %380 = vector.shape_cast %379 : vector<1x8x128xf32> to vector<8x128xf32>
    %381 = vector.shape_cast %378 : vector<8x128xf32> to vector<1x8x128xf32>
    tpu.vector_store %arg19[%c0_190, %c0_191, %c0_192], %381 {strides = array<i32>} : memref<1x8x128xf32, #tpu.memory_space<vmem>>, vector<1x8x128xf32>,
    return
  }
  func.func @transform_0(%arg0: i32) -> (i32, i32, i32) {
    %c0_i32 = arith.constant 0 : i32
    %c0_i32_0 = arith.constant 0 : i32
    %c0_i32_1 = arith.constant 0 : i32
    return %arg0, %c0_i32, %c0_i32_0 : i32, i32, i32
  }
  func.func @transform_1(%arg0: i32) -> (i32, i32) {
    %c0_i32 = arith.constant 0 : i32
    %c0_i32_0 = arith.constant 0 : i32
    %c0_i32_1 = arith.constant 0 : i32
    return %c0_i32, %c0_i32_0 : i32, i32
  }
  func.func @transform_2(%arg0: i32) -> (i32, i32) {
    %c0_i32 = arith.constant 0 : i32
    %c0_i32_0 = arith.constant 0 : i32
    %c0_i32_1 = arith.constant 0 : i32
    return %c0_i32, %c0_i32_0 : i32, i32
  }
  func.func @transform_3(%arg0: i32) -> (i32, i32) {
    %c0_i32 = arith.constant 0 : i32
    %c0_i32_0 = arith.constant 0 : i32
    %c0_i32_1 = arith.constant 0 : i32
    return %c0_i32, %c0_i32_0 : i32, i32
  }
  func.func @transform_4(%arg0: i32) -> (i32, i32, i32) {
    %c0_i32 = arith.constant 0 : i32
    %c0_i32_0 = arith.constant 0 : i32
    %c0_i32_1 = arith.constant 0 : i32
    %c0_i32_2 = arith.constant 0 : i32
    return %c0_i32, %c0_i32_0, %c0_i32_1 : i32, i32, i32
  }
  func.func @transform_5(%arg0: i32) -> (i32, i32, i32) {
    %c0_i32 = arith.constant 0 : i32
    %c0_i32_0 = arith.constant 0 : i32
    %c0_i32_1 = arith.constant 0 : i32
    %c0_i32_2 = arith.constant 0 : i32
    return %c0_i32, %c0_i32_0, %c0_i32_1 : i32, i32, i32
  }
  func.func @transform_6(%arg0: i32) -> (i32, i32, i32) {
    %c0_i32 = arith.constant 0 : i32
    %c0_i32_0 = arith.constant 0 : i32
    %c0_i32_1 = arith.constant 0 : i32
    %c0_i32_2 = arith.constant 0 : i32
    return %c0_i32, %c0_i32_0, %c0_i32_1 : i32, i32, i32
  }
  func.func @transform_7(%arg0: i32) -> (i32, i32, i32) {
    %c0_i32 = arith.constant 0 : i32
    %c0_i32_0 = arith.constant 0 : i32
    %c0_i32_1 = arith.constant 0 : i32
    %c0_i32_2 = arith.constant 0 : i32
    return %c0_i32, %c0_i32_0, %c0_i32_1 : i32, i32, i32
  }
  func.func @transform_8(%arg0: i32) -> (i32, i32, i32) {
    %c0_i32 = arith.constant 0 : i32
    %c0_i32_0 = arith.constant 0 : i32
    %c0_i32_1 = arith.constant 0 : i32
    %c0_i32_2 = arith.constant 0 : i32
    return %c0_i32, %c0_i32_0, %c0_i32_1 : i32, i32, i32
  }
  func.func @transform_9(%arg0: i32) -> (i32, i32, i32) {
    %c0_i32 = arith.constant 0 : i32
    %c0_i32_0 = arith.constant 0 : i32
    %c0_i32_1 = arith.constant 0 : i32
    %c0_i32_2 = arith.constant 0 : i32
    return %c0_i32, %c0_i32_0, %c0_i32_1 : i32, i32, i32
  }
  func.func @transform_10(%arg0: i32) -> (i32, i32, i32) {
    %c0_i32 = arith.constant 0 : i32
    %c0_i32_0 = arith.constant 0 : i32
    %c0_i32_1 = arith.constant 0 : i32
    %c0_i32_2 = arith.constant 0 : i32
    return %c0_i32, %c0_i32_0, %c0_i32_1 : i32, i32, i32
  }
  func.func @transform_11(%arg0: i32) -> (i32, i32, i32) {
    %c0_i32 = arith.constant 0 : i32
    %c0_i32_0 = arith.constant 0 : i32
    %c0_i32_1 = arith.constant 0 : i32
    %c0_i32_2 = arith.constant 0 : i32
    return %c0_i32, %c0_i32_0, %c0_i32_1 : i32, i32, i32
  }
  func.func @transform_12(%arg0: i32) -> (i32, i32, i32) {
    %c0_i32 = arith.constant 0 : i32
    %c0_i32_0 = arith.constant 0 : i32
    %c0_i32_1 = arith.constant 0 : i32
    %c0_i32_2 = arith.constant 0 : i32
    return %c0_i32, %c0_i32_0, %c0_i32_1 : i32, i32, i32
  }
  func.func @transform_13(%arg0: i32) -> (i32, i32, i32) {
    %c0_i32 = arith.constant 0 : i32
    %c0_i32_0 = arith.constant 0 : i32
    %c0_i32_1 = arith.constant 0 : i32
    %c0_i32_2 = arith.constant 0 : i32
    return %c0_i32, %c0_i32_0, %c0_i32_1 : i32, i32, i32
  }
  func.func @transform_14(%arg0: i32) -> (i32, i32, i32) {
    %c0_i32 = arith.constant 0 : i32
    %c0_i32_0 = arith.constant 0 : i32
    %c0_i32_1 = arith.constant 0 : i32
    %c0_i32_2 = arith.constant 0 : i32
    return %c0_i32, %c0_i32_0, %c0_i32_1 : i32, i32, i32
  }
  func.func @transform_15(%arg0: i32) -> (i32, i32, i32) {
    %c0_i32 = arith.constant 0 : i32
    %c0_i32_0 = arith.constant 0 : i32
    %c0_i32_1 = arith.constant 0 : i32
    %c0_i32_2 = arith.constant 0 : i32
    return %c0_i32, %c0_i32_0, %c0_i32_1 : i32, i32, i32
  }
  func.func @transform_16(%arg0: i32) -> (i32, i32) {
    %c0_i32 = arith.constant 0 : i32
    %c0_i32_0 = arith.constant 0 : i32
    %c0_i32_1 = arith.constant 0 : i32
    return %c0_i32, %c0_i32_0 : i32, i32
  }
  func.func @transform_17(%arg0: i32) -> (i32, i32) {
    %c0_i32 = arith.constant 0 : i32
    %c0_i32_0 = arith.constant 0 : i32
    %c0_i32_1 = arith.constant 0 : i32
    return %c0_i32, %c0_i32_0 : i32, i32
  }
  func.func @transform_18(%arg0: i32) -> (i32, i32, i32) {
    %c0_i32 = arith.constant 0 : i32
    %c0_i32_0 = arith.constant 0 : i32
    %c0_i32_1 = arith.constant 0 : i32
    return %arg0, %c0_i32, %c0_i32_0 : i32, i32, i32
  }
}

</mosaic_0001>

<llo_original>
// kernel: tpu_custom_call.1
$region0: #{tpu_custom_call.1}
  #allocation0 [shape = 'u32[]', space=smem, size = 0x4, offset = 0x4, fixed_abs, tag = 'smem constant byte address 0x4 - core index']
  #allocation1 [shape = 'u32[144,128]{1,0:T(1,128)}', space=vmem, size = 0x12000, scoped, tag = 'internal scratch']
  %s0 = inlined_call_operand.hbm [shape: f32[2,8,128], index: 0, kind: input, shape index: {}]
  %s1 = inlined_call_operand.hbm [shape: f32[128,128], index: 1, kind: input, shape index: {}]
  %s2 = inlined_call_operand.hbm [shape: f32[1,128], index: 2, kind: input, shape index: {}]
  %s3 = inlined_call_operand.hbm [shape: f32[8,128], index: 3, kind: input, shape index: {}]
  %s4 = inlined_call_operand.hbm [shape: f32[2,128,1536], index: 4, kind: input, shape index: {}]
  %s5 = inlined_call_operand.hbm [shape: f32[2,1,1536], index: 5, kind: input, shape index: {}]
  %s6 = inlined_call_operand.hbm [shape: f32[8,128,128], index: 6, kind: input, shape index: {}]
  %s7 = inlined_call_operand.hbm [shape: f32[2,1,128], index: 7, kind: input, shape index: {}]
  %s8 = inlined_call_operand.hbm [shape: f32[2,1,128], index: 8, kind: input, shape index: {}]
  %s9 = inlined_call_operand.hbm [shape: f32[2,1,128], index: 9, kind: input, shape index: {}]
  %s10 = inlined_call_operand.hbm [shape: f32[2,128,128], index: 10, kind: input, shape index: {}]
  %s11 = inlined_call_operand.hbm [shape: f32[2,1,128], index: 11, kind: input, shape index: {}]
  %s12 = inlined_call_operand.hbm [shape: f32[2,128,128], index: 12, kind: input, shape index: {}]
  %s13 = inlined_call_operand.hbm [shape: f32[2,1,128], index: 13, kind: input, shape index: {}]
  %s14 = inlined_call_operand.hbm [shape: f32[2,1,128], index: 14, kind: input, shape index: {}]
  %s15 = inlined_call_operand.hbm [shape: f32[2,1,128], index: 15, kind: input, shape index: {}]
  %s16 = inlined_call_operand.hbm [shape: f32[128,128], index: 16, kind: input, shape index: {}]
  %s17 = inlined_call_operand.hbm [shape: f32[1,128], index: 17, kind: input, shape index: {}]
  %s18 = inlined_call_operand.hbm [shape: f32[2,8,128], index: 18, kind: output, shape index: {}]
  %s19 = sld [smem:[#allocation0]]
  $region177: #{tpu_custom_call.1} parent=0
    _
  %s21 = ssub.s32 1, %s19
  %s22 = scalar_select 0, %s21, %s19
  $region1: #{tpu_custom_call.1} parent=0
    #allocation2 [shape = 'u8[8192]{0}', space=vmem, size = 0x2000, scoped, tag = 'input window, operand 0']
    #allocation3 [shape = 's32[2]{0}', space=sflag, size = 0x8, scoped, tag = 'scoped memory for tpu_custom_call.1']
    #allocation4 [shape = 's32[2]{0}', space=sflag, size = 0x8, scoped, tag = 'scoped memory for tpu_custom_call.1']
    #allocation5 [shape = 'u8[65536]{0}', space=vmem, size = 0x10000, scoped, tag = 'input window, operand 1, single buffered']
    #allocation6 [shape = 's32[1]{0}', space=sflag, size = 0x4, scoped, tag = 'scoped memory for tpu_custom_call.1']
    #allocation7 [shape = 'u8[512]{0}', space=vmem, size = 0x400, scoped, tag = 'input window, operand 2, single buffered']
    #allocation8 [shape = 'u8[4096]{0}', space=vmem, size = 0x1000, scoped, tag = 'input window, operand 3, single buffered']
    #allocation9 [shape = 's32[1]{0}', space=sflag, size = 0x4, scoped, tag = 'scoped memory for tpu_custom_call.1']
    #allocation10 [shape = 'u8[1572864]{0}', space=vmem, size = 0x180000, scoped, tag = 'input window, operand 4, single buffered']
    #allocation11 [shape = 'u8[12288]{0}', space=vmem, size = 0x3000, scoped, tag = 'input window, operand 5, single buffered']
    #allocation12 [shape = 's32[1]{0}', space=sflag, size = 0x4, scoped, tag = 'scoped memory for tpu_custom_call.1']
    #allocation13 [shape = 'u8[524288]{0}', space=vmem, size = 0x80000, scoped, tag = 'input window, operand 6, single buffered']
    #allocation14 [shape = 'u8[1024]{0}', space=vmem, size = 0x400, scoped, tag = 'input window, operand 7, single buffered']
    #allocation15 [shape = 's32[1]{0}', space=sflag, size = 0x4, scoped, tag = 'scoped memory for tpu_custom_call.1']
    #allocation16 [shape = 'u8[1024]{0}', space=vmem, size = 0x400, scoped, tag = 'input window, operand 8, single buffered']
    #allocation17 [shape = 'u8[1024]{0}', space=vmem, size = 0x400, scoped, tag = 'input window, operand 9, single buffered']
    #allocation18 [shape = 's32[1]{0}', space=sflag, size = 0x4, scoped, tag = 'scoped memory for tpu_custom_call.1']
    #allocation19 [shape = 'u8[131072]{0}', space=vmem, size = 0x20000, scoped, tag = 'input window, operand 10, single buffered']
    #allocation20 [shape = 'u8[1024]{0}', space=vmem, size = 0x400, scoped, tag = 'input window, operand 11, single buffered']
    #allocation21 [shape = 's32[1]{0}', space=sflag, size = 0x4, scoped, tag = 'scoped memory for tpu_custom_call.1']
    #allocation22 [shape = 'u8[131072]{0}', space=vmem, size = 0x20000, scoped, tag = 'input window, operand 12, single buffered']
    #allocation23 [shape = 'u8[1024]{0}', space=vmem, size = 0x400, scoped, tag = 'input window, operand 13, single buffered']
    #allocation24 [shape = 's32[1]{0}', space=sflag, size = 0x4, scoped, tag = 'scoped memory for tpu_custom_call.1']
    #allocation25 [shape = 'u8[1024]{0}', space=vmem, size = 0x400, scoped, tag = 'input window, operand 14, single buffered']
    #allocation26 [shape = 'u8[1024]{0}', space=vmem, size = 0x400, scoped, tag = 'input window, operand 15, single buffered']
    #allocation27 [shape = 's32[1]{0}', space=sflag, size = 0x4, scoped, tag = 'scoped memory for tpu_custom_call.1']
    #allocation28 [shape = 'u8[65536]{0}', space=vmem, size = 0x10000, scoped, tag = 'input window, operand 16, single buffered']
    #allocation29 [shape = 'u8[512]{0}', space=vmem, size = 0x400, scoped, tag = 'input window, operand 17, single buffered']
    #allocation30 [shape = 's32[1]{0}', space=sflag, size = 0x4, scoped, tag = 'scoped memory for tpu_custom_call.1']
    #allocation31 [shape = 'u8[8192]{0}', space=vmem, size = 0x2000, scoped, tag = 'output window, operand 0']
    %23 = vsyncpa [#allocation3], 0
    %s24 = scalar_lea.sflag [#allocation3], 1
    %25 = vsyncpa %s24, 0
    %26 = vsyncpa [#allocation6], 0
    %27 = vsyncpa [#allocation9], 0
    %28 = vsyncpa [#allocation12], 0
    %29 = vsyncpa [#allocation15], 0
    %30 = vsyncpa [#allocation18], 0
    %31 = vsyncpa [#allocation21], 0
    %32 = vsyncpa [#allocation24], 0
    %33 = vsyncpa [#allocation27], 0
    %34 = vsyncpa [#allocation30], 0
    %35 = vsyncpa [#allocation4], 0
    %s36 = scalar_lea.sflag [#allocation4], 1
    %37 = vsyncpa %s36, 0
    loop: start=0, step=1, limit=4
    $region2: #{tpu_custom_call.1} parent=1 // loop_pre_header
      _
    $region3: #{tpu_custom_call.1} parent=1 // loop_header
      %s39 = sphi 0, %s43
      %p40 = scmp.ge.s32.totalorder %s39, 4
      %s49 = sphi 0, %s51
      %s52 = sphi 0, %s49
      %s53 = sphi 0, %s52
      %s69 = sphi 0, %s53
      %s73 = sphi 0, %s73
      %s75 = sphi 0, %s73
      %s76 = sphi 0, %s75
      %s90 = sphi 0, %s76
      %s94 = sphi 0, %s94
      %s96 = sphi 0, %s94
      %s97 = sphi 0, %s96
      %s111 = sphi 0, %s97
      %s115 = sphi 0, %s115
      %s117 = sphi 0, %s115
      %s118 = sphi 0, %s117
      %s132 = sphi 0, %s118
      %s136 = sphi 0, %s136
      %s138 = sphi 0, %s136
      %s139 = sphi 0, %s138
      %s153 = sphi 0, %s139
      %s157 = sphi 0, %s157
      %s159 = sphi 0, %s157
      %s160 = sphi 0, %s159
      %s174 = sphi 0, %s160
      %s178 = sphi 0, %s178
      %s180 = sphi 0, %s178
      %s181 = sphi 0, %s180
      %s195 = sphi 0, %s181
      %s199 = sphi 0, %s199
      %s201 = sphi 0, %s199
      %s202 = sphi 0, %s201
      %s216 = sphi 0, %s202
      %s220 = sphi 0, %s220
      %s222 = sphi 0, %s220
      %s223 = sphi 0, %s222
      %s237 = sphi 0, %s223
      %s241 = sphi 0, %s241
      %s243 = sphi 0, %s241
      %s244 = sphi 0, %s243
      %s258 = sphi 0, %s244
      %s262 = sphi 0, %s262
      %s264 = sphi 0, %s262
      %s265 = sphi 0, %s264
      %s279 = sphi 0, %s265
      %s283 = sphi 0, %s283
      %s285 = sphi 0, %s283
      %s286 = sphi 0, %s285
      %s300 = sphi 0, %s286
      %s304 = sphi 0, %s304
      %s306 = sphi 0, %s304
      %s307 = sphi 0, %s306
      %s321 = sphi 0, %s307
      %s325 = sphi 0, %s325
      %s327 = sphi 0, %s325
      %s328 = sphi 0, %s327
      %s342 = sphi 0, %s328
      %s346 = sphi 0, %s346
      %s348 = sphi 0, %s346
      %s349 = sphi 0, %s348
      %s363 = sphi 0, %s349
      %s367 = sphi 0, %s367
      %s369 = sphi 0, %s367
      %s370 = sphi 0, %s369
      %s384 = sphi 0, %s370
      %s388 = sphi 0, %s388
      %s390 = sphi 0, %s388
      %s391 = sphi 0, %s390
      %s405 = sphi 0, %s391
      %s409 = sphi 0, %s409
      %s411 = sphi 0, %s409
      %s412 = sphi 0, %s411
      %s426 = sphi 0, %s412
      %s432 = sphi 0, %s434
      %s435 = sphi 0, %s432
      %s436 = sphi 0, %s435
      %s452 = sphi 0, %s436
    $region4: #{tpu_custom_call.1} parent=1 // loop_header_branch
      %42 = sbr.rel (%p40) target = $region8
    $region5: #{tpu_custom_call.1} parent=1 // loop_body
      %s44 = ssub.s32 %s39, 1
      %s45 = ssub.s32 %s39, 2
      %s46 = sadd.s32 %s39, 1
      %s47 = ssub.s32 %s39, %s46
      %p48 = scmp.eq.s32.totalorder %s47, 0
      %s50 = sadd.s32 %s49, 1
      %s51 = scalar_select %p48, %s49, %s50
      %p54 = pneg %p48
      %p55 = scmp.eq.s32.totalorder %s39, 1
      %p56 = por %p54, %p55
      %p57 = scmp.ne.s32.totalorder %s49, %s52
      %p58 = scmp.eq.s32.totalorder %s39, 0
      %p59 = por %p57, %p58
      %p60 = scmp.ne.s32.totalorder %s49, %s52
      %p61 = scmp.eq.s32.totalorder %s44, 1
      %p62 = por %p60, %p61
      %p63 = scmp.ne.s32.totalorder %s52, %s53
      %p64 = scmp.eq.s32.totalorder %s44, 0
      %p65 = por %p63, %p64
      %p66 = scmp.ne.s32.totalorder %s52, %s53
      %p67 = scmp.eq.s32.totalorder %s45, 1
      %p68 = por %p66, %p67
      %p70 = scmp.ne.s32.totalorder %s53, %s69
      %p71 = scmp.eq.s32.totalorder %s45, 0
      %p72 = por %p70, %p71
      %s74 = sadd.s32 %s73, 1
      %p77 = scmp.eq.s32.totalorder %s39, 1
      %p78 = scmp.ne.s32.totalorder %s73, %s75
      %p79 = scmp.eq.s32.totalorder %s39, 0
      %p80 = por %p78, %p79
      %p81 = scmp.ne.s32.totalorder %s73, %s75
      %p82 = scmp.eq.s32.totalorder %s44, 1
      %p83 = por %p81, %p82
      %p84 = scmp.ne.s32.totalorder %s75, %s76
      %p85 = scmp.eq.s32.totalorder %s44, 0
      %p86 = por %p84, %p85
      %p87 = scmp.ne.s32.totalorder %s75, %s76
      %p88 = scmp.eq.s32.totalorder %s45, 1
      %p89 = por %p87, %p88
      %p91 = scmp.ne.s32.totalorder %s76, %s90
      %p92 = scmp.eq.s32.totalorder %s45, 0
      %p93 = por %p91, %p92
      %s95 = sadd.s32 %s94, 1
      %p98 = scmp.eq.s32.totalorder %s39, 1
      %p99 = scmp.ne.s32.totalorder %s94, %s96
      %p100 = scmp.eq.s32.totalorder %s39, 0
      %p101 = por %p99, %p100
      %p102 = scmp.ne.s32.totalorder %s94, %s96
      %p103 = scmp.eq.s32.totalorder %s44, 1
      %p104 = por %p102, %p103
      %p105 = scmp.ne.s32.totalorder %s96, %s97
      %p106 = scmp.eq.s32.totalorder %s44, 0
      %p107 = por %p105, %p106
      %p108 = scmp.ne.s32.totalorder %s96, %s97
      %p109 = scmp.eq.s32.totalorder %s45, 1
      %p110 = por %p108, %p109
      %p112 = scmp.ne.s32.totalorder %s97, %s111
      %p113 = scmp.eq.s32.totalorder %s45, 0
      %p114 = por %p112, %p113
      %s116 = sadd.s32 %s115, 1
      %p119 = scmp.eq.s32.totalorder %s39, 1
      %p120 = scmp.ne.s32.totalorder %s115, %s117
      %p121 = scmp.eq.s32.totalorder %s39, 0
      %p122 = por %p120, %p121
      %p123 = scmp.ne.s32.totalorder %s115, %s117
      %p124 = scmp.eq.s32.totalorder %s44, 1
      %p125 = por %p123, %p124
      %p126 = scmp.ne.s32.totalorder %s117, %s118
      %p127 = scmp.eq.s32.totalorder %s44, 0
      %p128 = por %p126, %p127
      %p129 = scmp.ne.s32.totalorder %s117, %s118
      %p130 = scmp.eq.s32.totalorder %s45, 1
      %p131 = por %p129, %p130
      %p133 = scmp.ne.s32.totalorder %s118, %s132
      %p134 = scmp.eq.s32.totalorder %s45, 0
      %p135 = por %p133, %p134
      %s137 = sadd.s32 %s136, 1
      %p140 = scmp.eq.s32.totalorder %s39, 1
      %p141 = scmp.ne.s32.totalorder %s136, %s138
      %p142 = scmp.eq.s32.totalorder %s39, 0
      %p143 = por %p141, %p142
      %p144 = scmp.ne.s32.totalorder %s136, %s138
      %p145 = scmp.eq.s32.totalorder %s44, 1
      %p146 = por %p144, %p145
      %p147 = scmp.ne.s32.totalorder %s138, %s139
      %p148 = scmp.eq.s32.totalorder %s44, 0
      %p149 = por %p147, %p148
      %p150 = scmp.ne.s32.totalorder %s138, %s139
      %p151 = scmp.eq.s32.totalorder %s45, 1
      %p152 = por %p150, %p151
      %p154 = scmp.ne.s32.totalorder %s139, %s153
      %p155 = scmp.eq.s32.totalorder %s45, 0
      %p156 = por %p154, %p155
      %s158 = sadd.s32 %s157, 1
      %p161 = scmp.eq.s32.totalorder %s39, 1
      %p162 = scmp.ne.s32.totalorder %s157, %s159
      %p163 = scmp.eq.s32.totalorder %s39, 0
      %p164 = por %p162, %p163
      %p165 = scmp.ne.s32.totalorder %s157, %s159
      %p166 = scmp.eq.s32.totalorder %s44, 1
      %p167 = por %p165, %p166
      %p168 = scmp.ne.s32.totalorder %s159, %s160
      %p169 = scmp.eq.s32.totalorder %s44, 0
      %p170 = por %p168, %p169
      %p171 = scmp.ne.s32.totalorder %s159, %s160
      %p172 = scmp.eq.s32.totalorder %s45, 1
      %p173 = por %p171, %p172
      %p175 = scmp.ne.s32.totalorder %s160, %s174
      %p176 = scmp.eq.s32.totalorder %s45, 0
      %p177 = por %p175, %p176
      %s179 = sadd.s32 %s178, 1
      %p182 = scmp.eq.s32.totalorder %s39, 1
      %p183 = scmp.ne.s32.totalorder %s178, %s180
      %p184 = scmp.eq.s32.totalorder %s39, 0
      %p185 = por %p183, %p184
      %p186 = scmp.ne.s32.totalorder %s178, %s180
      %p187 = scmp.eq.s32.totalorder %s44, 1
      %p188 = por %p186, %p187
      %p189 = scmp.ne.s32.totalorder %s180, %s181
      %p190 = scmp.eq.s32.totalorder %s44, 0
      %p191 = por %p189, %p190
      %p192 = scmp.ne.s32.totalorder %s180, %s181
      %p193 = scmp.eq.s32.totalorder %s45, 1
      %p194 = por %p192, %p193
      %p196 = scmp.ne.s32.totalorder %s181, %s195
      %p197 = scmp.eq.s32.totalorder %s45, 0
      %p198 = por %p196, %p197
      %s200 = sadd.s32 %s199, 1
      %p203 = scmp.eq.s32.totalorder %s39, 1
      %p204 = scmp.ne.s32.totalorder %s199, %s201
      %p205 = scmp.eq.s32.totalorder %s39, 0
      %p206 = por %p204, %p205
      %p207 = scmp.ne.s32.totalorder %s199, %s201
      %p208 = scmp.eq.s32.totalorder %s44, 1
      %p209 = por %p207, %p208
      %p210 = scmp.ne.s32.totalorder %s201, %s202
      %p211 = scmp.eq.s32.totalorder %s44, 0
      %p212 = por %p210, %p211
      %p213 = scmp.ne.s32.totalorder %s201, %s202
      %p214 = scmp.eq.s32.totalorder %s45, 1
      %p215 = por %p213, %p214
      %p217 = scmp.ne.s32.totalorder %s202, %s216
      %p218 = scmp.eq.s32.totalorder %s45, 0
      %p219 = por %p217, %p218
      %s221 = sadd.s32 %s220, 1
      %p224 = scmp.eq.s32.totalorder %s39, 1
      %p225 = scmp.ne.s32.totalorder %s220, %s222
      %p226 = scmp.eq.s32.totalorder %s39, 0
      %p227 = por %p225, %p226
      %p228 = scmp.ne.s32.totalorder %s220, %s222
      %p229 = scmp.eq.s32.totalorder %s44, 1
      %p230 = por %p228, %p229
      %p231 = scmp.ne.s32.totalorder %s222, %s223
      %p232 = scmp.eq.s32.totalorder %s44, 0
      %p233 = por %p231, %p232
      %p234 = scmp.ne.s32.totalorder %s222, %s223
      %p235 = scmp.eq.s32.totalorder %s45, 1
      %p236 = por %p234, %p235
      %p238 = scmp.ne.s32.totalorder %s223, %s237
      %p239 = scmp.eq.s32.totalorder %s45, 0
      %p240 = por %p238, %p239
      %s242 = sadd.s32 %s241, 1
      %p245 = scmp.eq.s32.totalorder %s39, 1
      %p246 = scmp.ne.s32.totalorder %s241, %s243
      %p247 = scmp.eq.s32.totalorder %s39, 0
      %p248 = por %p246, %p247
      %p249 = scmp.ne.s32.totalorder %s241, %s243
      %p250 = scmp.eq.s32.totalorder %s44, 1
      %p251 = por %p249, %p250
      %p252 = scmp.ne.s32.totalorder %s243, %s244
      %p253 = scmp.eq.s32.totalorder %s44, 0
      %p254 = por %p252, %p253
      %p255 = scmp.ne.s32.totalorder %s243, %s244
      %p256 = scmp.eq.s32.totalorder %s45, 1
      %p257 = por %p255, %p256
      %p259 = scmp.ne.s32.totalorder %s244, %s258
      %p260 = scmp.eq.s32.totalorder %s45, 0
      %p261 = por %p259, %p260
      %s263 = sadd.s32 %s262, 1
      %p266 = scmp.eq.s32.totalorder %s39, 1
      %p267 = scmp.ne.s32.totalorder %s262, %s264
      %p268 = scmp.eq.s32.totalorder %s39, 0
      %p269 = por %p267, %p268
      %p270 = scmp.ne.s32.totalorder %s262, %s264
      %p271 = scmp.eq.s32.totalorder %s44, 1
      %p272 = por %p270, %p271
      %p273 = scmp.ne.s32.totalorder %s264, %s265
      %p274 = scmp.eq.s32.totalorder %s44, 0
      %p275 = por %p273, %p274
      %p276 = scmp.ne.s32.totalorder %s264, %s265
      %p277 = scmp.eq.s32.totalorder %s45, 1
      %p278 = por %p276, %p277
      %p280 = scmp.ne.s32.totalorder %s265, %s279
      %p281 = scmp.eq.s32.totalorder %s45, 0
      %p282 = por %p280, %p281
      %s284 = sadd.s32 %s283, 1
      %p287 = scmp.eq.s32.totalorder %s39, 1
      %p288 = scmp.ne.s32.totalorder %s283, %s285
      %p289 = scmp.eq.s32.totalorder %s39, 0
      %p290 = por %p288, %p289
      %p291 = scmp.ne.s32.totalorder %s283, %s285
      %p292 = scmp.eq.s32.totalorder %s44, 1
      %p293 = por %p291, %p292
      %p294 = scmp.ne.s32.totalorder %s285, %s286
      %p295 = scmp.eq.s32.totalorder %s44, 0
      %p296 = por %p294, %p295
      %p297 = scmp.ne.s32.totalorder %s285, %s286
      %p298 = scmp.eq.s32.totalorder %s45, 1
      %p299 = por %p297, %p298
      %p301 = scmp.ne.s32.totalorder %s286, %s300
      %p302 = scmp.eq.s32.totalorder %s45, 0
      %p303 = por %p301, %p302
      %s305 = sadd.s32 %s304, 1
      %p308 = scmp.eq.s32.totalorder %s39, 1
      %p309 = scmp.ne.s32.totalorder %s304, %s306
      %p310 = scmp.eq.s32.totalorder %s39, 0
      %p311 = por %p309, %p310
      %p312 = scmp.ne.s32.totalorder %s304, %s306
      %p313 = scmp.eq.s32.totalorder %s44, 1
      %p314 = por %p312, %p313
      %p315 = scmp.ne.s32.totalorder %s306, %s307
      %p316 = scmp.eq.s32.totalorder %s44, 0
      %p317 = por %p315, %p316
      %p318 = scmp.ne.s32.totalorder %s306, %s307
      %p319 = scmp.eq.s32.totalorder %s45, 1
      %p320 = por %p318, %p319
      %p322 = scmp.ne.s32.totalorder %s307, %s321
      %p323 = scmp.eq.s32.totalorder %s45, 0
      %p324 = por %p322, %p323
      %s326 = sadd.s32 %s325, 1
      %p329 = scmp.eq.s32.totalorder %s39, 1
      %p330 = scmp.ne.s32.totalorder %s325, %s327
      %p331 = scmp.eq.s32.totalorder %s39, 0
      %p332 = por %p330, %p331
      %p333 = scmp.ne.s32.totalorder %s325, %s327
      %p334 = scmp.eq.s32.totalorder %s44, 1
      %p335 = por %p333, %p334
      %p336 = scmp.ne.s32.totalorder %s327, %s328
      %p337 = scmp.eq.s32.totalorder %s44, 0
      %p338 = por %p336, %p337
      %p339 = scmp.ne.s32.totalorder %s327, %s328
      %p340 = scmp.eq.s32.totalorder %s45, 1
      %p341 = por %p339, %p340
      %p343 = scmp.ne.s32.totalorder %s328, %s342
      %p344 = scmp.eq.s32.totalorder %s45, 0
      %p345 = por %p343, %p344
      %s347 = sadd.s32 %s346, 1
      %p350 = scmp.eq.s32.totalorder %s39, 1
      %p351 = scmp.ne.s32.totalorder %s346, %s348
      %p352 = scmp.eq.s32.totalorder %s39, 0
      %p353 = por %p351, %p352
      %p354 = scmp.ne.s32.totalorder %s346, %s348
      %p355 = scmp.eq.s32.totalorder %s44, 1
      %p356 = por %p354, %p355
      %p357 = scmp.ne.s32.totalorder %s348, %s349
      %p358 = scmp.eq.s32.totalorder %s44, 0
      %p359 = por %p357, %p358
      %p360 = scmp.ne.s32.totalorder %s348, %s349
      %p361 = scmp.eq.s32.totalorder %s45, 1
      %p362 = por %p360, %p361
      %p364 = scmp.ne.s32.totalorder %s349, %s363
      %p365 = scmp.eq.s32.totalorder %s45, 0
      %p366 = por %p364, %p365
      %s368 = sadd.s32 %s367, 1
      %p371 = scmp.eq.s32.totalorder %s39, 1
      %p372 = scmp.ne.s32.totalorder %s367, %s369
      %p373 = scmp.eq.s32.totalorder %s39, 0
      %p374 = por %p372, %p373
      %p375 = scmp.ne.s32.totalorder %s367, %s369
      %p376 = scmp.eq.s32.totalorder %s44, 1
      %p377 = por %p375, %p376
      %p378 = scmp.ne.s32.totalorder %s369, %s370
      %p379 = scmp.eq.s32.totalorder %s44, 0
      %p380 = por %p378, %p379
      %p381 = scmp.ne.s32.totalorder %s369, %s370
      %p382 = scmp.eq.s32.totalorder %s45, 1
      %p383 = por %p381, %p382
      %p385 = scmp.ne.s32.totalorder %s370, %s384
      %p386 = scmp.eq.s32.totalorder %s45, 0
      %p387 = por %p385, %p386
      %s389 = sadd.s32 %s388, 1
      %p392 = scmp.eq.s32.totalorder %s39, 1
      %p393 = scmp.ne.s32.totalorder %s388, %s390
      %p394 = scmp.eq.s32.totalorder %s39, 0
      %p395 = por %p393, %p394
      %p396 = scmp.ne.s32.totalorder %s388, %s390
      %p397 = scmp.eq.s32.totalorder %s44, 1
      %p398 = por %p396, %p397
      %p399 = scmp.ne.s32.totalorder %s390, %s391
      %p400 = scmp.eq.s32.totalorder %s44, 0
      %p401 = por %p399, %p400
      %p402 = scmp.ne.s32.totalorder %s390, %s391
      %p403 = scmp.eq.s32.totalorder %s45, 1
      %p404 = por %p402, %p403
      %p406 = scmp.ne.s32.totalorder %s391, %s405
      %p407 = scmp.eq.s32.totalorder %s45, 0
      %p408 = por %p406, %p407
      %s410 = sadd.s32 %s409, 1
      %p413 = scmp.eq.s32.totalorder %s39, 1
      %p414 = scmp.ne.s32.totalorder %s409, %s411
      %p415 = scmp.eq.s32.totalorder %s39, 0
      %p416 = por %p414, %p415
      %p417 = scmp.ne.s32.totalorder %s409, %s411
      %p418 = scmp.eq.s32.totalorder %s44, 1
      %p419 = por %p417, %p418
      %p420 = scmp.ne.s32.totalorder %s411, %s412
      %p421 = scmp.eq.s32.totalorder %s44, 0
      %p422 = por %p420, %p421
      %p423 = scmp.ne.s32.totalorder %s411, %s412
      %p424 = scmp.eq.s32.totalorder %s45, 1
      %p425 = por %p423, %p424
      %p427 = scmp.ne.s32.totalorder %s412, %s426
      %p428 = scmp.eq.s32.totalorder %s45, 0
      %p429 = por %p427, %p428
      %s430 = ssub.s32 %s39, %s46
      %p431 = scmp.eq.s32.totalorder %s430, 0
      %s433 = sadd.s32 %s432, 1
      %s434 = scalar_select %p431, %s432, %s433
      %p437 = pneg %p431
      %p438 = scmp.eq.s32.totalorder %s39, 1
      %p439 = por %p437, %p438
      %p440 = scmp.ne.s32.totalorder %s432, %s435
      %p441 = scmp.eq.s32.totalorder %s39, 0
      %p442 = por %p440, %p441
      %p443 = scmp.ne.s32.totalorder %s432, %s435
      %p444 = scmp.eq.s32.totalorder %s44, 1
      %p445 = por %p443, %p444
      %p446 = scmp.ne.s32.totalorder %s435, %s436
      %p447 = scmp.eq.s32.totalorder %s44, 0
      %p448 = por %p446, %p447
      %p449 = scmp.ne.s32.totalorder %s435, %s436
      %p450 = scmp.eq.s32.totalorder %s45, 1
      %p451 = por %p449, %p450
      %p453 = scmp.ne.s32.totalorder %s436, %s452
      %p454 = scmp.eq.s32.totalorder %s45, 0
      %p455 = por %p453, %p454
      %p456 = scmp.le.s32.totalorder 1, %s39
      %p457 = scmp.lt.s32.totalorder %s39, 3
      %p458 = pnand %p456, %p457
      %p459 = pneg %p458
      // Predicated region
      $region9: #{tpu_custom_call.1} parent=5 // pred_check
        _
      $region10: #{tpu_custom_call.1} parent=5 // pred_check_branch
        %461 = sbr.rel (%p458) target = $region12
      $region11: #{tpu_custom_call.1} parent=5 // pred_region
        %s462 = ssub.s32 %s39, 1
        // Predicated region
        $region13: #{tpu_custom_call.1} parent=11 // pred_check
          %p463 = pneg %p86
        $region14: #{tpu_custom_call.1} parent=11 // pred_check_branch
          %465 = sbr.rel (%p463) target = $region16
        $region15: #{tpu_custom_call.1} parent=11 // pred_region
          %s467 = ssub.s32 2048, 2048
          %468 = vsyncadd [#allocation6], %s467
          %s469 = sshll.u32 [#allocation5], 4
          %s470 = int_to_ptr.vmem [resolvable:$true] %s469
          %475 = dma.hbm_to_vmem [thread:$0]  %s1, 2048, %s470, [#allocation6], 128, 128, 8
        $region16: #{tpu_custom_call.1} parent=11 // pred_fallthru
          _
        // Predicated region
        $region17: #{tpu_custom_call.1} parent=11 // pred_check
          %p476 = pneg %p107
        $region18: #{tpu_custom_call.1} parent=11 // pred_check_branch
          %478 = sbr.rel (%p476) target = $region20
        $region19: #{tpu_custom_call.1} parent=11 // pred_region
          %s480 = ssub.s32 16, 16
          %481 = vsyncadd [#allocation6], %s480
          %s483 = sshll.u32 [#allocation7], 4
          %s484 = int_to_ptr.vmem [resolvable:$true] %s483
          %486 = dma.hbm_to_vmem [thread:$0]  %s2, 16, %s484, [#allocation6]
        $region20: #{tpu_custom_call.1} parent=11 // pred_fallthru
          _
        // Predicated region
        $region21: #{tpu_custom_call.1} parent=11 // pred_check
          %p487 = pneg %p128
        $region22: #{tpu_custom_call.1} parent=11 // pred_check_branch
          %489 = sbr.rel (%p487) target = $region24
        $region23: #{tpu_custom_call.1} parent=11 // pred_region
          %s491 = ssub.s32 128, 128
          %492 = vsyncadd [#allocation9], %s491
          %s494 = sshll.u32 [#allocation8], 4
          %s495 = int_to_ptr.vmem [resolvable:$true] %s494
          %497 = dma.hbm_to_vmem [thread:$0]  %s3, 128, %s495, [#allocation9]
        $region24: #{tpu_custom_call.1} parent=11 // pred_fallthru
          _
        // Predicated region
        $region25: #{tpu_custom_call.1} parent=11 // pred_check
          %p498 = pneg %p149
        $region26: #{tpu_custom_call.1} parent=11 // pred_check_branch
          %500 = sbr.rel (%p498) target = $region28
        $region27: #{tpu_custom_call.1} parent=11 // pred_region
          %s502 = ssub.s32 49152, 49152
          %503 = vsyncadd [#allocation9], %s502
          %s504 = sshll.u32 [#allocation10], 4
          %s505 = int_to_ptr.vmem [resolvable:$true] %s504
          %510 = dma.hbm_to_vmem [thread:$0]  %s4, 49152, %s505, [#allocation9], 1536, 1536, 96
        $region28: #{tpu_custom_call.1} parent=11 // pred_fallthru
          _
        // Predicated region
        $region29: #{tpu_custom_call.1} parent=11 // pred_check
          %p511 = pneg %p170
        $region30: #{tpu_custom_call.1} parent=11 // pred_check_branch
          %513 = sbr.rel (%p511) target = $region32
        $region31: #{tpu_custom_call.1} parent=11 // pred_region
          %s515 = ssub.s32 384, 384
          %516 = vsyncadd [#allocation12], %s515
          %s517 = sshll.u32 [#allocation11], 4
          %s518 = int_to_ptr.vmem [resolvable:$true] %s517
          %523 = dma.hbm_to_vmem [thread:$0]  %s5, 384, %s518, [#allocation12], 192, 192, 12
        $region32: #{tpu_custom_call.1} parent=11 // pred_fallthru
          _
        // Predicated region
        $region33: #{tpu_custom_call.1} parent=11 // pred_check
          %p524 = pneg %p191
        $region34: #{tpu_custom_call.1} parent=11 // pred_check_branch
          %526 = sbr.rel (%p524) target = $region36
        $region35: #{tpu_custom_call.1} parent=11 // pred_region
          %s528 = ssub.s32 16384, 16384
          %529 = vsyncadd [#allocation12], %s528
          %s530 = sshll.u32 [#allocation13], 4
          %s531 = int_to_ptr.vmem [resolvable:$true] %s530
          %536 = dma.hbm_to_vmem [thread:$0]  %s6, 16384, %s531, [#allocation12], 128, 128, 8
        $region36: #{tpu_custom_call.1} parent=11 // pred_fallthru
          _
        // Predicated region
        $region37: #{tpu_custom_call.1} parent=11 // pred_check
          %p537 = pneg %p212
        $region38: #{tpu_custom_call.1} parent=11 // pred_check_branch
          %539 = sbr.rel (%p537) target = $region40
        $region39: #{tpu_custom_call.1} parent=11 // pred_region
          %s541 = ssub.s32 32, 32
          %542 = vsyncadd [#allocation15], %s541
          %s543 = sshll.u32 [#allocation14], 4
          %s544 = int_to_ptr.vmem [resolvable:$true] %s543
          %549 = dma.hbm_to_vmem [thread:$0]  %s7, 32, %s544, [#allocation15], 16, 16, 1
        $region40: #{tpu_custom_call.1} parent=11 // pred_fallthru
          _
        // Predicated region
        $region41: #{tpu_custom_call.1} parent=11 // pred_check
          %p550 = pneg %p233
        $region42: #{tpu_custom_call.1} parent=11 // pred_check_branch
          %552 = sbr.rel (%p550) target = $region44
        $region43: #{tpu_custom_call.1} parent=11 // pred_region
          %s554 = ssub.s32 32, 32
          %555 = vsyncadd [#allocation15], %s554
          %s556 = sshll.u32 [#allocation16], 4
          %s557 = int_to_ptr.vmem [resolvable:$true] %s556
          %562 = dma.hbm_to_vmem [thread:$0]  %s8, 32, %s557, [#allocation15], 16, 16, 1
        $region44: #{tpu_custom_call.1} parent=11 // pred_fallthru
          _
        // Predicated region
        $region45: #{tpu_custom_call.1} parent=11 // pred_check
          %p563 = pneg %p254
        $region46: #{tpu_custom_call.1} parent=11 // pred_check_branch
          %565 = sbr.rel (%p563) target = $region48
        $region47: #{tpu_custom_call.1} parent=11 // pred_region
          %s567 = ssub.s32 32, 32
          %568 = vsyncadd [#allocation18], %s567
          %s569 = sshll.u32 [#allocation17], 4
          %s570 = int_to_ptr.vmem [resolvable:$true] %s569
          %575 = dma.hbm_to_vmem [thread:$0]  %s9, 32, %s570, [#allocation18], 16, 16, 1
        $region48: #{tpu_custom_call.1} parent=11 // pred_fallthru
          _
        // Predicated region
        $region49: #{tpu_custom_call.1} parent=11 // pred_check
          %p576 = pneg %p275
        $region50: #{tpu_custom_call.1} parent=11 // pred_check_branch
          %578 = sbr.rel (%p576) target = $region52
        $region51: #{tpu_custom_call.1} parent=11 // pred_region
          %s580 = ssub.s32 4096, 4096
          %581 = vsyncadd [#allocation18], %s580
          %s582 = sshll.u32 [#allocation19], 4
          %s583 = int_to_ptr.vmem [resolvable:$true] %s582
          %588 = dma.hbm_to_vmem [thread:$0]  %s10, 4096, %s583, [#allocation18], 128, 128, 8
        $region52: #{tpu_custom_call.1} parent=11 // pred_fallthru
          _
        // Predicated region
        $region53: #{tpu_custom_call.1} parent=11 // pred_check
          %p589 = pneg %p296
        $region54: #{tpu_custom_call.1} parent=11 // pred_check_branch
          %591 = sbr.rel (%p589) target = $region56
        $region55: #{tpu_custom_call.1} parent=11 // pred_region
          %s593 = ssub.s32 32, 32
          %594 = vsyncadd [#allocation21], %s593
          %s595 = sshll.u32 [#allocation20], 4
          %s596 = int_to_ptr.vmem [resolvable:$true] %s595
          %601 = dma.hbm_to_vmem [thread:$0]  %s11, 32, %s596, [#allocation21], 16, 16, 1
        $region56: #{tpu_custom_call.1} parent=11 // pred_fallthru
          _
        // Predicated region
        $region57: #{tpu_custom_call.1} parent=11 // pred_check
          %p602 = pneg %p317
        $region58: #{tpu_custom_call.1} parent=11 // pred_check_branch
          %604 = sbr.rel (%p602) target = $region60
        $region59: #{tpu_custom_call.1} parent=11 // pred_region
          %s606 = ssub.s32 4096, 4096
          %607 = vsyncadd [#allocation21], %s606
          %s608 = sshll.u32 [#allocation22], 4
          %s609 = int_to_ptr.vmem [resolvable:$true] %s608
          %614 = dma.hbm_to_vmem [thread:$0]  %s12, 4096, %s609, [#allocation21], 128, 128, 8
        $region60: #{tpu_custom_call.1} parent=11 // pred_fallthru
          _
        // Predicated region
        $region61: #{tpu_custom_call.1} parent=11 // pred_check
          %p615 = pneg %p338
        $region62: #{tpu_custom_call.1} parent=11 // pred_check_branch
          %617 = sbr.rel (%p615) target = $region64
        $region63: #{tpu_custom_call.1} parent=11 // pred_region
          %s619 = ssub.s32 32, 32
          %620 = vsyncadd [#allocation24], %s619
          %s621 = sshll.u32 [#allocation23], 4
          %s622 = int_to_ptr.vmem [resolvable:$true] %s621
          %627 = dma.hbm_to_vmem [thread:$0]  %s13, 32, %s622, [#allocation24], 16, 16, 1
        $region64: #{tpu_custom_call.1} parent=11 // pred_fallthru
          _
        // Predicated region
        $region65: #{tpu_custom_call.1} parent=11 // pred_check
          %p628 = pneg %p359
        $region66: #{tpu_custom_call.1} parent=11 // pred_check_branch
          %630 = sbr.rel (%p628) target = $region68
        $region67: #{tpu_custom_call.1} parent=11 // pred_region
          %s632 = ssub.s32 32, 32
          %633 = vsyncadd [#allocation24], %s632
          %s634 = sshll.u32 [#allocation25], 4
          %s635 = int_to_ptr.vmem [resolvable:$true] %s634
          %640 = dma.hbm_to_vmem [thread:$0]  %s14, 32, %s635, [#allocation24], 16, 16, 1
        $region68: #{tpu_custom_call.1} parent=11 // pred_fallthru
          _
        // Predicated region
        $region69: #{tpu_custom_call.1} parent=11 // pred_check
          %p641 = pneg %p380
        $region70: #{tpu_custom_call.1} parent=11 // pred_check_branch
          %643 = sbr.rel (%p641) target = $region72
        $region71: #{tpu_custom_call.1} parent=11 // pred_region
          %s645 = ssub.s32 32, 32
          %646 = vsyncadd [#allocation27], %s645
          %s647 = sshll.u32 [#allocation26], 4
          %s648 = int_to_ptr.vmem [resolvable:$true] %s647
          %653 = dma.hbm_to_vmem [thread:$0]  %s15, 32, %s648, [#allocation27], 16, 16, 1
        $region72: #{tpu_custom_call.1} parent=11 // pred_fallthru
          _
        // Predicated region
        $region73: #{tpu_custom_call.1} parent=11 // pred_check
          %p654 = pneg %p401
        $region74: #{tpu_custom_call.1} parent=11 // pred_check_branch
          %656 = sbr.rel (%p654) target = $region76
        $region75: #{tpu_custom_call.1} parent=11 // pred_region
          %s658 = ssub.s32 2048, 2048
          %659 = vsyncadd [#allocation27], %s658
          %s660 = sshll.u32 [#allocation28], 4
          %s661 = int_to_ptr.vmem [resolvable:$true] %s660
          %666 = dma.hbm_to_vmem [thread:$0]  %s16, 2048, %s661, [#allocation27], 128, 128, 8
        $region76: #{tpu_custom_call.1} parent=11 // pred_fallthru
          _
        // Predicated region
        $region77: #{tpu_custom_call.1} parent=11 // pred_check
          %p667 = pneg %p422
        $region78: #{tpu_custom_call.1} parent=11 // pred_check_branch
          %669 = sbr.rel (%p667) target = $region80
        $region79: #{tpu_custom_call.1} parent=11 // pred_region
          %s671 = ssub.s32 16, 16
          %672 = vsyncadd [#allocation30], %s671
          %s674 = sshll.u32 [#allocation29], 4
          %s675 = int_to_ptr.vmem [resolvable:$true] %s674
          %677 = dma.hbm_to_vmem [thread:$0]  %s17, 16, %s675, [#allocation30]
        $region80: #{tpu_custom_call.1} parent=11 // pred_fallthru
          _
      $region12: #{tpu_custom_call.1} parent=5 // pred_fallthru
        _
      %p678 = scmp.lt.s32.totalorder %s39, 2
      // Predicated region
      $region81: #{tpu_custom_call.1} parent=5 // pred_check
        %p679 = pneg %p678
      $region82: #{tpu_custom_call.1} parent=5 // pred_check_branch
        %681 = sbr.rel (%p679) target = $region84
      $region83: #{tpu_custom_call.1} parent=5 // pred_region
        // Predicated region
        $region85: #{tpu_custom_call.1} parent=83 // pred_check
          %p682 = pneg %p59
        $region86: #{tpu_custom_call.1} parent=83 // pred_check_branch
          %684 = sbr.rel (%p682) target = $region88
        $region87: #{tpu_custom_call.1} parent=83 // pred_region
          %s685 = sand.u32 %s49, 1
          %s686 = scalar_lea.sflag [#allocation3], %s685
          %s687 = sand.u32 %s49, 1
          %s688 = smul.addr %s687, 8
          %s689 = scalar_lea.vmem [#allocation2], %s688
          %s691 = ssub.s32 128, 128
          %692 = vsyncadd %s686, %s691
          %s693 = smul.addr %s39, 128
          %s694 = scalar_lea.hbm %s0, %s693
          %s696 = sshll.u32 %s689, 4
          %s697 = int_to_ptr.vmem [resolvable:$true] %s696
          %699 = dma.hbm_to_vmem [thread:$0]  %s694, 128, %s697, %s686
        $region88: #{tpu_custom_call.1} parent=83 // pred_fallthru
          _
      $region84: #{tpu_custom_call.1} parent=5 // pred_fallthru
        _
      %p700 = scmp.le.s32.totalorder 1, %s39
      %p701 = scmp.lt.s32.totalorder %s39, 3
      %p702 = pnand %p700, %p701
      %p703 = pneg %p702
      // Predicated region
      $region89: #{tpu_custom_call.1} parent=5 // pred_check
        _
      $region90: #{tpu_custom_call.1} parent=5 // pred_check_branch
        %705 = sbr.rel (%p702) target = $region92
      $region91: #{tpu_custom_call.1} parent=5 // pred_region
        %s706 = ssub.s32 %s39, 1
        %s707 = sand.u32 %s52, 1
        %s708 = scalar_lea.sflag [#allocation3], %s707
        %s709 = sand.u32 %s52, 1
        %s710 = smul.addr %s709, 8
        %s711 = scalar_lea.vmem [#allocation2], %s710
        // Predicated region
        $region93: #{tpu_custom_call.1} parent=91 // pred_check
          %p712 = pneg %p65
        $region94: #{tpu_custom_call.1} parent=91 // pred_check_branch
          %714 = sbr.rel (%p712) target = $region96
        $region95: #{tpu_custom_call.1} parent=91 // pred_region
          %715 = dma.done %s708, 128
        $region96: #{tpu_custom_call.1} parent=91 // pred_fallthru
          _
        // Predicated region
        $region97: #{tpu_custom_call.1} parent=91 // pred_check
          %p716 = pneg %p86
        $region98: #{tpu_custom_call.1} parent=91 // pred_check_branch
          %718 = sbr.rel (%p716) target = $region100
        $region99: #{tpu_custom_call.1} parent=91 // pred_region
          %719 = dma.done [#allocation6], 2048
        $region100: #{tpu_custom_call.1} parent=91 // pred_fallthru
          _
        // Predicated region
        $region101: #{tpu_custom_call.1} parent=91 // pred_check
          %p720 = pneg %p107
        $region102: #{tpu_custom_call.1} parent=91 // pred_check_branch
          %722 = sbr.rel (%p720) target = $region104
        $region103: #{tpu_custom_call.1} parent=91 // pred_region
          %723 = dma.done [#allocation6], 16
        $region104: #{tpu_custom_call.1} parent=91 // pred_fallthru
          _
        // Predicated region
        $region105: #{tpu_custom_call.1} parent=91 // pred_check
          %p724 = pneg %p128
        $region106: #{tpu_custom_call.1} parent=91 // pred_check_branch
          %726 = sbr.rel (%p724) target = $region108
        $region107: #{tpu_custom_call.1} parent=91 // pred_region
          %727 = dma.done [#allocation9], 128
        $region108: #{tpu_custom_call.1} parent=91 // pred_fallthru
          _
        // Predicated region
        $region109: #{tpu_custom_call.1} parent=91 // pred_check
          %p728 = pneg %p149
        $region110: #{tpu_custom_call.1} parent=91 // pred_check_branch
          %730 = sbr.rel (%p728) target = $region112
        $region111: #{tpu_custom_call.1} parent=91 // pred_region
          %731 = dma.done [#allocation9], 49152
        $region112: #{tpu_custom_call.1} parent=91 // pred_fallthru
          _
        // Predicated region
        $region113: #{tpu_custom_call.1} parent=91 // pred_check
          %p732 = pneg %p170
        $region114: #{tpu_custom_call.1} parent=91 // pred_check_branch
          %734 = sbr.rel (%p732) target = $region116
        $region115: #{tpu_custom_call.1} parent=91 // pred_region
          %735 = dma.done [#allocation12], 384
        $region116: #{tpu_custom_call.1} parent=91 // pred_fallthru
          _
        // Predicated region
        $region117: #{tpu_custom_call.1} parent=91 // pred_check
          %p736 = pneg %p191
        $region118: #{tpu_custom_call.1} parent=91 // pred_check_branch
          %738 = sbr.rel (%p736) target = $region120
        $region119: #{tpu_custom_call.1} parent=91 // pred_region
          %739 = dma.done [#allocation12], 16384
        $region120: #{tpu_custom_call.1} parent=91 // pred_fallthru
          _
        // Predicated region
        $region121: #{tpu_custom_call.1} parent=91 // pred_check
          %p740 = pneg %p212
        $region122: #{tpu_custom_call.1} parent=91 // pred_check_branch
          %742 = sbr.rel (%p740) target = $region124
        $region123: #{tpu_custom_call.1} parent=91 // pred_region
          %743 = dma.done [#allocation15], 32
        $region124: #{tpu_custom_call.1} parent=91 // pred_fallthru
          _
        // Predicated region
        $region125: #{tpu_custom_call.1} parent=91 // pred_check
          %p744 = pneg %p233
        $region126: #{tpu_custom_call.1} parent=91 // pred_check_branch
          %746 = sbr.rel (%p744) target = $region128
        $region127: #{tpu_custom_call.1} parent=91 // pred_region
          %747 = dma.done [#allocation15], 32
        $region128: #{tpu_custom_call.1} parent=91 // pred_fallthru
          _
        // Predicated region
        $region129: #{tpu_custom_call.1} parent=91 // pred_check
          %p748 = pneg %p254
        $region130: #{tpu_custom_call.1} parent=91 // pred_check_branch
          %750 = sbr.rel (%p748) target = $region132
        $region131: #{tpu_custom_call.1} parent=91 // pred_region
          %751 = dma.done [#allocation18], 32
        $region132: #{tpu_custom_call.1} parent=91 // pred_fallthru
          _
        // Predicated region
        $region133: #{tpu_custom_call.1} parent=91 // pred_check
          %p752 = pneg %p275
        $region134: #{tpu_custom_call.1} parent=91 // pred_check_branch
          %754 = sbr.rel (%p752) target = $region136
        $region135: #{tpu_custom_call.1} parent=91 // pred_region
          %755 = dma.done [#allocation18], 4096
        $region136: #{tpu_custom_call.1} parent=91 // pred_fallthru
          _
        // Predicated region
        $region137: #{tpu_custom_call.1} parent=91 // pred_check
          %p756 = pneg %p296
        $region138: #{tpu_custom_call.1} parent=91 // pred_check_branch
          %758 = sbr.rel (%p756) target = $region140
        $region139: #{tpu_custom_call.1} parent=91 // pred_region
          %759 = dma.done [#allocation21], 32
        $region140: #{tpu_custom_call.1} parent=91 // pred_fallthru
          _
        // Predicated region
        $region141: #{tpu_custom_call.1} parent=91 // pred_check
          %p760 = pneg %p317
        $region142: #{tpu_custom_call.1} parent=91 // pred_check_branch
          %762 = sbr.rel (%p760) target = $region144
        $region143: #{tpu_custom_call.1} parent=91 // pred_region
          %763 = dma.done [#allocation21], 4096
        $region144: #{tpu_custom_call.1} parent=91 // pred_fallthru
          _
        // Predicated region
        $region145: #{tpu_custom_call.1} parent=91 // pred_check
          %p764 = pneg %p338
        $region146: #{tpu_custom_call.1} parent=91 // pred_check_branch
          %766 = sbr.rel (%p764) target = $region148
        $region147: #{tpu_custom_call.1} parent=91 // pred_region
          %767 = dma.done [#allocation24], 32
        $region148: #{tpu_custom_call.1} parent=91 // pred_fallthru
          _
        // Predicated region
        $region149: #{tpu_custom_call.1} parent=91 // pred_check
          %p768 = pneg %p359
        $region150: #{tpu_custom_call.1} parent=91 // pred_check_branch
          %770 = sbr.rel (%p768) target = $region152
        $region151: #{tpu_custom_call.1} parent=91 // pred_region
          %771 = dma.done [#allocation24], 32
        $region152: #{tpu_custom_call.1} parent=91 // pred_fallthru
          _
        // Predicated region
        $region153: #{tpu_custom_call.1} parent=91 // pred_check
          %p772 = pneg %p380
        $region154: #{tpu_custom_call.1} parent=91 // pred_check_branch
          %774 = sbr.rel (%p772) target = $region156
        $region155: #{tpu_custom_call.1} parent=91 // pred_region
          %775 = dma.done [#allocation27], 32
        $region156: #{tpu_custom_call.1} parent=91 // pred_fallthru
          _
        // Predicated region
        $region157: #{tpu_custom_call.1} parent=91 // pred_check
          %p776 = pneg %p401
        $region158: #{tpu_custom_call.1} parent=91 // pred_check_branch
          %778 = sbr.rel (%p776) target = $region160
        $region159: #{tpu_custom_call.1} parent=91 // pred_region
          %779 = dma.done [#allocation27], 2048
        $region160: #{tpu_custom_call.1} parent=91 // pred_fallthru
          _
        // Predicated region
        $region161: #{tpu_custom_call.1} parent=91 // pred_check
          %p780 = pneg %p422
        $region162: #{tpu_custom_call.1} parent=91 // pred_check_branch
          %782 = sbr.rel (%p780) target = $region164
        $region163: #{tpu_custom_call.1} parent=91 // pred_region
          %783 = dma.done [#allocation30], 16
        $region164: #{tpu_custom_call.1} parent=91 // pred_fallthru
          _
        %s784 = sand.u32 %s52, 1
        %s785 = scalar_lea.sflag [#allocation3], %s784
        %s786 = sand.u32 %s52, 1
        %s787 = smul.addr %s786, 8
        %s788 = scalar_lea.vmem [#allocation2], %s787
        %p789 = pneg %p65
        %p790 = pneg %p62
        %p791 = pneg %p86
        %p792 = pneg %p83
        %p793 = pneg %p107
        %p794 = pneg %p104
        %p795 = pneg %p128
        %p796 = pneg %p125
        %p797 = pneg %p149
        %p798 = pneg %p146
        %p799 = pneg %p170
        %p800 = pneg %p167
        %p801 = pneg %p191
        %p802 = pneg %p188
        %p803 = pneg %p212
        %p804 = pneg %p209
        %p805 = pneg %p233
        %p806 = pneg %p230
        %p807 = pneg %p254
        %p808 = pneg %p251
        %p809 = pneg %p275
        %p810 = pneg %p272
        %p811 = pneg %p296
        %p812 = pneg %p293
        %p813 = pneg %p317
        %p814 = pneg %p314
        %p815 = pneg %p338
        %p816 = pneg %p335
        %p817 = pneg %p359
        %p818 = pneg %p356
        %p819 = pneg %p380
        %p820 = pneg %p377
        %p821 = pneg %p401
        %p822 = pneg %p398
        %p823 = pneg %p422
        %p824 = pneg %p419
        %p825 = pneg %p448
        %p826 = pneg %p445
        %s827 = sand.u32 %s435, 1
        %s828 = scalar_lea.sflag [#allocation4], %s827
        %s829 = sand.u32 %s435, 1
        %s830 = smul.addr %s829, 8
        %s831 = scalar_lea.vmem [#allocation31], %s830
        %v832 = vld [vmem:[%s711] sm:$0xff]
        %v833 = vld [vmem:[#allocation5] sm:$0xff]
        %v834 = vld [vmem:[#allocation5 + $0x8] sm:$0xff]
        %v835 = vld [vmem:[#allocation5 + $0x10] sm:$0xff]
        %v836 = vld [vmem:[#allocation5 + $0x18] sm:$0xff]
        %v837 = vld [vmem:[#allocation5 + $0x20] sm:$0xff]
        %v838 = vld [vmem:[#allocation5 + $0x28] sm:$0xff]
        %v839 = vld [vmem:[#allocation5 + $0x30] sm:$0xff]
        %v840 = vld [vmem:[#allocation5 + $0x38] sm:$0xff]
        %v841 = vld [vmem:[#allocation5 + $0x40] sm:$0xff]
        %v842 = vld [vmem:[#allocation5 + $0x48] sm:$0xff]
        %v843 = vld [vmem:[#allocation5 + $0x50] sm:$0xff]
        %v844 = vld [vmem:[#allocation5 + $0x58] sm:$0xff]
        %v845 = vld [vmem:[#allocation5 + $0x60] sm:$0xff]
        %v846 = vld [vmem:[#allocation5 + $0x68] sm:$0xff]
        %v847 = vld [vmem:[#allocation5 + $0x70] sm:$0xff]
        %v848 = vld [vmem:[#allocation5 + $0x78] sm:$0xff]
        %v849 = vld [vmem:[#allocation7] sm:$0x1]
        %v851 = vlaneseq
        %v852 = vshrl.u32 %v851, 7
        %v853 = vsub.s32 0, %v852
        %v854 = vrot.slane %v849, %v853
        %856 = vmatprep.subr.mxu0 0.0
        %857 = vmatpush1.msra.mxu0 %v848
        %858 = vmatprep.subr.mxu0 0.0
        %859 = vmatpush1.msra.mxu0 %v847
        %860 = vmatprep.subr.mxu0 0.0
        %861 = vmatpush1.msra.mxu0 %v846
        %862 = vmatprep.subr.mxu0 0.0
        %863 = vmatpush1.msra.mxu0 %v845
        %864 = vmatprep.subr.mxu0 0.0
        %865 = vmatpush1.msra.mxu0 %v844
        %866 = vmatprep.subr.mxu0 0.0
        %867 = vmatpush1.msra.mxu0 %v843
        %868 = vmatprep.subr.mxu0 0.0
        %869 = vmatpush1.msra.mxu0 %v842
        %870 = vmatprep.subr.mxu0 0.0
        %871 = vmatpush1.msra.mxu0 %v841
        %872 = vmatprep.subr.mxu0 0.0
        %873 = vmatpush1.msra.mxu0 %v840
        %874 = vmatprep.subr.mxu0 0.0
        %875 = vmatpush1.msra.mxu0 %v839
        %876 = vmatprep.subr.mxu0 0.0
        %877 = vmatpush1.msra.mxu0 %v838
        %878 = vmatprep.subr.mxu0 0.0
        %879 = vmatpush1.msra.mxu0 %v837
        %880 = vmatprep.subr.mxu0 0.0
        %881 = vmatpush1.msra.mxu0 %v836
        %882 = vmatprep.subr.mxu0 0.0
        %883 = vmatpush1.msra.mxu0 %v835
        %884 = vmatprep.subr.mxu0 0.0
        %885 = vmatpush1.msra.mxu0 %v834
        %886 = vmatprep.subr.mxu0 0.0
        %887 = vmatpush1.msra.mxu0 %v833
        %888 = vmatprep.subr.mxu0 0.0
        %889 = vmatpush2.msra.mxu0 0.0
        %890 = vmatprep.subr.mxu0 0.0
        %891 = vmatpush2.msra.mxu0 0.0
        %892 = vmatprep.subr.mxu0 0.0
        %893 = vmatpush2.msra.mxu0 0.0
        %894 = vmatprep.subr.mxu0 0.0
        %895 = vmatpush2.msra.mxu0 0.0
        %896 = vmatprep.subr.mxu0 0.0
        %897 = vmatpush2.msra.mxu0 0.0
        %898 = vmatprep.subr.mxu0 0.0
        %899 = vmatpush2.msra.mxu0 0.0
        %900 = vmatprep.subr.mxu0 0.0
        %901 = vmatpush2.msra.mxu0 0.0
        %902 = vmatprep.subr.mxu0 0.0
        %903 = vmatpush2.msra.mxu0 0.0
        %904 = vmatprep.subr.mxu0 0.0
        %905 = vmatpush2.msra.mxu0 0.0
        %906 = vmatprep.subr.mxu0 0.0
        %907 = vmatpush2.msra.mxu0 0.0
        %908 = vmatprep.subr.mxu0 0.0
        %909 = vmatpush2.msra.mxu0 0.0
        %910 = vmatprep.subr.mxu0 0.0
        %911 = vmatpush2.msra.mxu0 0.0
        %912 = vmatprep.subr.mxu0 0.0
        %913 = vmatpush2.msra.mxu0 0.0
        %914 = vmatprep.subr.mxu0 0.0
        %915 = vmatpush2.msra.mxu0 0.0
        %916 = vmatprep.subr.mxu0 0.0
        %917 = vmatpush2.msra.mxu0 0.0
        %918 = vmatprep.subr.mxu0 0.0
        %919 = vmatpush2.msra.mxu0 0.0
        %920 = vmatprep.mubr.f32.mxu0 0.0
        %921 = vmatmul.mubr.f32.gmra.mxu0 %v832
        %v922 = vpop.f32.mrf.mxu0
        %v923 = vadd.f32 %v854, %v922
        %v924 = vpop.f32.mrf.mxu0
        %925 = vdwg.mxu0
        %v926 = vmax.f32 %v923, 0.0
        %v927 = vld [vmem:[#allocation8] sm:$0xff]
        %v928 = vadd.f32 %v926, %v927
        %v929 = vlaneseq
        %v930 = vshrl.u32 %v929, 7
        %v931 = vlaneseq
        %v932 = vand.u32 %v931, 127
        %vm933 = vcmp.le.s32.totalorder %v932, %v930
        %v934 = vld [vmem:[#allocation10] sm:$0xff]
        %v935 = vld [vmem:[#allocation10 + $0x8] sm:$0xff]
        %v936 = vld [vmem:[#allocation10 + $0x10] sm:$0xff]
        %v937 = vld [vmem:[#allocation10 + $0x18] sm:$0xff]
        %v938 = vld [vmem:[#allocation10 + $0x20] sm:$0xff]
        %v939 = vld [vmem:[#allocation10 + $0x28] sm:$0xff]
        %v940 = vld [vmem:[#allocation10 + $0x30] sm:$0xff]
        %v941 = vld [vmem:[#allocation10 + $0x38] sm:$0xff]
        %v942 = vld [vmem:[#allocation10 + $0x40] sm:$0xff]
        %v943 = vld [vmem:[#allocation10 + $0x48] sm:$0xff]
        %v944 = vld [vmem:[#allocation10 + $0x50] sm:$0xff]
        %v945 = vld [vmem:[#allocation10 + $0x58] sm:$0xff]
        %v946 = vld [vmem:[#allocation10 + $0x60] sm:$0xff]
        %v947 = vld [vmem:[#allocation10 + $0x68] sm:$0xff]
        %v948 = vld [vmem:[#allocation10 + $0x70] sm:$0xff]
        %v949 = vld [vmem:[#allocation10 + $0x78] sm:$0xff]
        %v950 = vld [vmem:[#allocation10 + $0x80] sm:$0xff]
        %v951 = vld [vmem:[#allocation10 + $0x88] sm:$0xff]
        %v952 = vld [vmem:[#allocation10 + $0x90] sm:$0xff]
        %v953 = vld [vmem:[#allocation10 + $0x98] sm:$0xff]
        %v954 = vld [vmem:[#allocation10 + $0xa0] sm:$0xff]
        %v955 = vld [vmem:[#allocation10 + $0xa8] sm:$0xff]
        %v956 = vld [vmem:[#allocation10 + $0xb0] sm:$0xff]
        %v957 = vld [vmem:[#allocation10 + $0xb8] sm:$0xff]
        %v958 = vld [vmem:[#allocation10 + $0xc0] sm:$0xff]
        %v959 = vld [vmem:[#allocation10 + $0xc8] sm:$0xff]
        %v960 = vld [vmem:[#allocation10 + $0xd0] sm:$0xff]
        %v961 = vld [vmem:[#allocation10 + $0xd8] sm:$0xff]
        %v962 = vld [vmem:[#allocation10 + $0xe0] sm:$0xff]
        %v963 = vld [vmem:[#allocation10 + $0xe8] sm:$0xff]
        %v964 = vld [vmem:[#allocation10 + $0xf0] sm:$0xff]
        %v965 = vld [vmem:[#allocation10 + $0xf8] sm:$0xff]
        %v966 = vld [vmem:[#allocation10 + $0x100] sm:$0xff]
        %v967 = vld [vmem:[#allocation10 + $0x108] sm:$0xff]
        %v968 = vld [vmem:[#allocation10 + $0x110] sm:$0xff]
        %v969 = vld [vmem:[#allocation10 + $0x118] sm:$0xff]
        %v970 = vld [vmem:[#allocation10 + $0x120] sm:$0xff]
        %v971 = vld [vmem:[#allocation10 + $0x128] sm:$0xff]
        %v972 = vld [vmem:[#allocation10 + $0x130] sm:$0xff]
        %v973 = vld [vmem:[#allocation10 + $0x138] sm:$0xff]
        %v974 = vld [vmem:[#allocation10 + $0x140] sm:$0xff]
        %v975 = vld [vmem:[#allocation10 + $0x148] sm:$0xff]
        %v976 = vld [vmem:[#allocation10 + $0x150] sm:$0xff]
        %v977 = vld [vmem:[#allocation10 + $0x158] sm:$0xff]
        %v978 = vld [vmem:[#allocation10 + $0x160] sm:$0xff]
        %v979 = vld [vmem:[#allocation10 + $0x168] sm:$0xff]
        %v980 = vld [vmem:[#allocation10 + $0x170] sm:$0xff]
        %v981 = vld [vmem:[#allocation10 + $0x178] sm:$0xff]
        %v982 = vld [vmem:[#allocation10 + $0x180] sm:$0xff]
        %v983 = vld [vmem:[#allocation10 + $0x188] sm:$0xff]
        %v984 = vld [vmem:[#allocation10 + $0x190] sm:$0xff]
        %v985 = vld [vmem:[#allocation10 + $0x198] sm:$0xff]
        %v986 = vld [vmem:[#allocation10 + $0x1a0] sm:$0xff]
        %v987 = vld [vmem:[#allocation10 + $0x1a8] sm:$0xff]
        %v988 = vld [vmem:[#allocation10 + $0x1b0] sm:$0xff]
        %v989 = vld [vmem:[#allocation10 + $0x1b8] sm:$0xff]
        %v990 = vld [vmem:[#allocation10 + $0x1c0] sm:$0xff]
        %v991 = vld [vmem:[#allocation10 + $0x1c8] sm:$0xff]
        %v992 = vld [vmem:[#allocation10 + $0x1d0] sm:$0xff]
        %v993 = vld [vmem:[#allocation10 + $0x1d8] sm:$0xff]
        %v994 = vld [vmem:[#allocation10 + $0x1e0] sm:$0xff]
        %v995 = vld [vmem:[#allocation10 + $0x1e8] sm:$0xff]
        %v996 = vld [vmem:[#allocation10 + $0x1f0] sm:$0xff]
        %v997 = vld [vmem:[#allocation10 + $0x1f8] sm:$0xff]
        %v998 = vld [vmem:[#allocation10 + $0x200] sm:$0xff]
        %v999 = vld [vmem:[#allocation10 + $0x208] sm:$0xff]
        %v1000 = vld [vmem:[#allocation10 + $0x210] sm:$0xff]
        %v1001 = vld [vmem:[#allocation10 + $0x218] sm:$0xff]
        %v1002 = vld [vmem:[#allocation10 + $0x220] sm:$0xff]
        %v1003 = vld [vmem:[#allocation10 + $0x228] sm:$0xff]
        %v1004 = vld [vmem:[#allocation10 + $0x230] sm:$0xff]
        %v1005 = vld [vmem:[#allocation10 + $0x238] sm:$0xff]
        %v1006 = vld [vmem:[#allocation10 + $0x240] sm:$0xff]
        %v1007 = vld [vmem:[#allocation10 + $0x248] sm:$0xff]
        %v1008 = vld [vmem:[#allocation10 + $0x250] sm:$0xff]
        %v1009 = vld [vmem:[#allocation10 + $0x258] sm:$0xff]
        %v1010 = vld [vmem:[#allocation10 + $0x260] sm:$0xff]
        %v1011 = vld [vmem:[#allocation10 + $0x268] sm:$0xff]
        %v1012 = vld [vmem:[#allocation10 + $0x270] sm:$0xff]
        %v1013 = vld [vmem:[#allocation10 + $0x278] sm:$0xff]
        %v1014 = vld [vmem:[#allocation10 + $0x280] sm:$0xff]
        %v1015 = vld [vmem:[#allocation10 + $0x288] sm:$0xff]
        %v1016 = vld [vmem:[#allocation10 + $0x290] sm:$0xff]
        %v1017 = vld [vmem:[#allocation10 + $0x298] sm:$0xff]
        %v1018 = vld [vmem:[#allocation10 + $0x2a0] sm:$0xff]
        %v1019 = vld [vmem:[#allocation10 + $0x2a8] sm:$0xff]
        %v1020 = vld [vmem:[#allocation10 + $0x2b0] sm:$0xff]
        %v1021 = vld [vmem:[#allocation10 + $0x2b8] sm:$0xff]
        %v1022 = vld [vmem:[#allocation10 + $0x2c0] sm:$0xff]
        %v1023 = vld [vmem:[#allocation10 + $0x2c8] sm:$0xff]
        %v1024 = vld [vmem:[#allocation10 + $0x2d0] sm:$0xff]
        %v1025 = vld [vmem:[#allocation10 + $0x2d8] sm:$0xff]
        %v1026 = vld [vmem:[#allocation10 + $0x2e0] sm:$0xff]
        %v1027 = vld [vmem:[#allocation10 + $0x2e8] sm:$0xff]
        %v1028 = vld [vmem:[#allocation10 + $0x2f0] sm:$0xff]
        %v1029 = vld [vmem:[#allocation10 + $0x2f8] sm:$0xff]
        %v1030 = vld [vmem:[#allocation10 + $0x300] sm:$0xff]
        %v1031 = vld [vmem:[#allocation10 + $0x308] sm:$0xff]
        %v1032 = vld [vmem:[#allocation10 + $0x310] sm:$0xff]
        %v1033 = vld [vmem:[#allocation10 + $0x318] sm:$0xff]
        %v1034 = vld [vmem:[#allocation10 + $0x320] sm:$0xff]
        %v1035 = vld [vmem:[#allocation10 + $0x328] sm:$0xff]
        %v1036 = vld [vmem:[#allocation10 + $0x330] sm:$0xff]
        %v1037 = vld [vmem:[#allocation10 + $0x338] sm:$0xff]
        %v1038 = vld [vmem:[#allocation10 + $0x340] sm:$0xff]
        %v1039 = vld [vmem:[#allocation10 + $0x348] sm:$0xff]
        %v1040 = vld [vmem:[#allocation10 + $0x350] sm:$0xff]
        %v1041 = vld [vmem:[#allocation10 + $0x358] sm:$0xff]
        %v1042 = vld [vmem:[#allocation10 + $0x360] sm:$0xff]
        %v1043 = vld [vmem:[#allocation10 + $0x368] sm:$0xff]
        %v1044 = vld [vmem:[#allocation10 + $0x370] sm:$0xff]
        %v1045 = vld [vmem:[#allocation10 + $0x378] sm:$0xff]
        %v1046 = vld [vmem:[#allocation10 + $0x380] sm:$0xff]
        %v1047 = vld [vmem:[#allocation10 + $0x388] sm:$0xff]
        %v1048 = vld [vmem:[#allocation10 + $0x390] sm:$0xff]
        %v1049 = vld [vmem:[#allocation10 + $0x398] sm:$0xff]
        %v1050 = vld [vmem:[#allocation10 + $0x3a0] sm:$0xff]
        %v1051 = vld [vmem:[#allocation10 + $0x3a8] sm:$0xff]
        %v1052 = vld [vmem:[#allocation10 + $0x3b0] sm:$0xff]
        %v1053 = vld [vmem:[#allocation10 + $0x3b8] sm:$0xff]
        %v1054 = vld [vmem:[#allocation10 + $0x3c0] sm:$0xff]
        %v1055 = vld [vmem:[#allocation10 + $0x3c8] sm:$0xff]
        %v1056 = vld [vmem:[#allocation10 + $0x3d0] sm:$0xff]
        %v1057 = vld [vmem:[#allocation10 + $0x3d8] sm:$0xff]
        %v1058 = vld [vmem:[#allocation10 + $0x3e0] sm:$0xff]
        %v1059 = vld [vmem:[#allocation10 + $0x3e8] sm:$0xff]
        %v1060 = vld [vmem:[#allocation10 + $0x3f0] sm:$0xff]
        %v1061 = vld [vmem:[#allocation10 + $0x3f8] sm:$0xff]
        %v1062 = vld [vmem:[#allocation10 + $0x400] sm:$0xff]
        %v1063 = vld [vmem:[#allocation10 + $0x408] sm:$0xff]
        %v1064 = vld [vmem:[#allocation10 + $0x410] sm:$0xff]
        %v1065 = vld [vmem:[#allocation10 + $0x418] sm:$0xff]
        %v1066 = vld [vmem:[#allocation10 + $0x420] sm:$0xff]
        %v1067 = vld [vmem:[#allocation10 + $0x428] sm:$0xff]
        %v1068 = vld [vmem:[#allocation10 + $0x430] sm:$0xff]
        %v1069 = vld [vmem:[#allocation10 + $0x438] sm:$0xff]
        %v1070 = vld [vmem:[#allocation10 + $0x440] sm:$0xff]
        %v1071 = vld [vmem:[#allocation10 + $0x448] sm:$0xff]
        %v1072 = vld [vmem:[#allocation10 + $0x450] sm:$0xff]
        %v1073 = vld [vmem:[#allocation10 + $0x458] sm:$0xff]
        %v1074 = vld [vmem:[#allocation10 + $0x460] sm:$0xff]
        %v1075 = vld [vmem:[#allocation10 + $0x468] sm:$0xff]
        %v1076 = vld [vmem:[#allocation10 + $0x470] sm:$0xff]
        %v1077 = vld [vmem:[#allocation10 + $0x478] sm:$0xff]
        %v1078 = vld [vmem:[#allocation10 + $0x480] sm:$0xff]
        %v1079 = vld [vmem:[#allocation10 + $0x488] sm:$0xff]
        %v1080 = vld [vmem:[#allocation10 + $0x490] sm:$0xff]
        %v1081 = vld [vmem:[#allocation10 + $0x498] sm:$0xff]
        %v1082 = vld [vmem:[#allocation10 + $0x4a0] sm:$0xff]
        %v1083 = vld [vmem:[#allocation10 + $0x4a8] sm:$0xff]
        %v1084 = vld [vmem:[#allocation10 + $0x4b0] sm:$0xff]
        %v1085 = vld [vmem:[#allocation10 + $0x4b8] sm:$0xff]
        %v1086 = vld [vmem:[#allocation10 + $0x4c0] sm:$0xff]
        %v1087 = vld [vmem:[#allocation10 + $0x4c8] sm:$0xff]
        %v1088 = vld [vmem:[#allocation10 + $0x4d0] sm:$0xff]
        %v1089 = vld [vmem:[#allocation10 + $0x4d8] sm:$0xff]
        %v1090 = vld [vmem:[#allocation10 + $0x4e0] sm:$0xff]
        %v1091 = vld [vmem:[#allocation10 + $0x4e8] sm:$0xff]
        %v1092 = vld [vmem:[#allocation10 + $0x4f0] sm:$0xff]
        %v1093 = vld [vmem:[#allocation10 + $0x4f8] sm:$0xff]
        %v1094 = vld [vmem:[#allocation10 + $0x500] sm:$0xff]
        %v1095 = vld [vmem:[#allocation10 + $0x508] sm:$0xff]
        %v1096 = vld [vmem:[#allocation10 + $0x510] sm:$0xff]
        %v1097 = vld [vmem:[#allocation10 + $0x518] sm:$0xff]
        %v1098 = vld [vmem:[#allocation10 + $0x520] sm:$0xff]
        %v1099 = vld [vmem:[#allocation10 + $0x528] sm:$0xff]
        %v1100 = vld [vmem:[#allocation10 + $0x530] sm:$0xff]
        %v1101 = vld [vmem:[#allocation10 + $0x538] sm:$0xff]
        %v1102 = vld [vmem:[#allocation10 + $0x540] sm:$0xff]
        %v1103 = vld [vmem:[#allocation10 + $0x548] sm:$0xff]
        %v1104 = vld [vmem:[#allocation10 + $0x550] sm:$0xff]
        %v1105 = vld [vmem:[#allocation10 + $0x558] sm:$0xff]
        %v1106 = vld [vmem:[#allocation10 + $0x560] sm:$0xff]
        %v1107 = vld [vmem:[#allocation10 + $0x568] sm:$0xff]
        %v1108 = vld [vmem:[#allocation10 + $0x570] sm:$0xff]
        %v1109 = vld [vmem:[#allocation10 + $0x578] sm:$0xff]
        %v1110 = vld [vmem:[#allocation10 + $0x580] sm:$0xff]
        %v1111 = vld [vmem:[#allocation10 + $0x588] sm:$0xff]
        %v1112 = vld [vmem:[#allocation10 + $0x590] sm:$0xff]
        %v1113 = vld [vmem:[#allocation10 + $0x598] sm:$0xff]
        %v1114 = vld [vmem:[#allocation10 + $0x5a0] sm:$0xff]
        %v1115 = vld [vmem:[#allocation10 + $0x5a8] sm:$0xff]
        %v1116 = vld [vmem:[#allocation10 + $0x5b0] sm:$0xff]
        %v1117 = vld [vmem:[#allocation10 + $0x5b8] sm:$0xff]
        %v1118 = vld [vmem:[#allocation10 + $0x5c0] sm:$0xff]
        %v1119 = vld [vmem:[#allocation10 + $0x5c8] sm:$0xff]
        %v1120 = vld [vmem:[#allocation10 + $0x5d0] sm:$0xff]
        %v1121 = vld [vmem:[#allocation10 + $0x5d8] sm:$0xff]
        %v1122 = vld [vmem:[#allocation10 + $0x5e0] sm:$0xff]
        %v1123 = vld [vmem:[#allocation10 + $0x5e8] sm:$0xff]
        %v1124 = vld [vmem:[#allocation10 + $0x5f0] sm:$0xff]
        %v1125 = vld [vmem:[#allocation10 + $0x5f8] sm:$0xff]
        %v1126 = vld [vmem:[#allocation11] sm:$0xff]
        %v1127 = vld [vmem:[#allocation11 + $0x8] sm:$0xf]
        %v1130 = vlaneseq
        %v1131 = vshrl.u32 %v1130, 7
        %v1132 = vsub.s32 0, %v1131
        %v1133 = vrot.slane %v1126, %v1132
        %v1134 = vlaneseq
        %v1135 = vshrl.u32 %v1134, 7
        %v1136 = vsub.s32 1, %v1135
        %v1137 = vrot.slane %v1126, %v1136
        %v1138 = vlaneseq
        %v1139 = vshrl.u32 %v1138, 7
        %v1140 = vsub.s32 2, %v1139
        %v1141 = vrot.slane %v1126, %v1140
        %v1142 = vlaneseq
        %v1143 = vshrl.u32 %v1142, 7
        %v1144 = vsub.s32 3, %v1143
        %v1145 = vrot.slane %v1126, %v1144
        %v1146 = vlaneseq
        %v1147 = vshrl.u32 %v1146, 7
        %v1148 = vsub.s32 4, %v1147
        %v1149 = vrot.slane %v1126, %v1148
        %v1150 = vlaneseq
        %v1151 = vshrl.u32 %v1150, 7
        %v1152 = vsub.s32 5, %v1151
        %v1153 = vrot.slane %v1126, %v1152
        %v1154 = vlaneseq
        %v1155 = vshrl.u32 %v1154, 7
        %v1156 = vsub.s32 6, %v1155
        %v1157 = vrot.slane %v1126, %v1156
        %v1158 = vlaneseq
        %v1159 = vshrl.u32 %v1158, 7
        %v1160 = vsub.s32 7, %v1159
        %v1161 = vrot.slane %v1126, %v1160
        %v1162 = vlaneseq
        %v1163 = vshrl.u32 %v1162, 7
        %v1164 = vsub.s32 0, %v1163
        %v1165 = vrot.slane %v1127, %v1164
        %v1166 = vlaneseq
        %v1167 = vshrl.u32 %v1166, 7
        %v1168 = vsub.s32 1, %v1167
        %v1169 = vrot.slane %v1127, %v1168
        %v1170 = vlaneseq
        %v1171 = vshrl.u32 %v1170, 7
        %v1172 = vsub.s32 2, %v1171
        %v1173 = vrot.slane %v1127, %v1172
        %v1174 = vlaneseq
        %v1175 = vshrl.u32 %v1174, 7
        %v1176 = vsub.s32 3, %v1175
        %v1177 = vrot.slane %v1127, %v1176
        %1190 = vmatprep.subr.mxu0 %v1115
        %1191 = vmatpush1.msra.mxu0 %v1114
        %1192 = vmatprep.subr.mxu0 %v1103
        %1193 = vmatpush1.msra.mxu0 %v1102
        %1194 = vmatprep.subr.mxu0 %v1091
        %1195 = vmatpush1.msra.mxu0 %v1090
        %1196 = vmatprep.subr.mxu0 %v1079
        %1197 = vmatpush1.msra.mxu0 %v1078
        %1198 = vmatprep.subr.mxu0 %v1067
        %1199 = vmatpush1.msra.mxu0 %v1066
        %1200 = vmatprep.subr.mxu0 %v1055
        %1201 = vmatpush1.msra.mxu0 %v1054
        %1202 = vmatprep.subr.mxu0 %v1043
        %1203 = vmatpush1.msra.mxu0 %v1042
        %1204 = vmatprep.subr.mxu0 %v1031
        %1205 = vmatpush1.msra.mxu0 %v1030
        %1206 = vmatprep.subr.mxu0 %v1019
        %1207 = vmatpush1.msra.mxu0 %v1018
        %1208 = vmatprep.subr.mxu0 %v1007
        %1209 = vmatpush1.msra.mxu0 %v1006
        %1210 = vmatprep.subr.mxu0 %v995
        %1211 = vmatpush1.msra.mxu0 %v994
        %1212 = vmatprep.subr.mxu0 %v983
        %1213 = vmatpush1.msra.mxu0 %v982
        %1214 = vmatprep.subr.mxu0 %v971
        %1215 = vmatpush1.msra.mxu0 %v970
        %1216 = vmatprep.subr.mxu0 %v959
        %1217 = vmatpush1.msra.mxu0 %v958
        %1218 = vmatprep.subr.mxu0 %v947
        %1219 = vmatpush1.msra.mxu0 %v946
        %1220 = vmatprep.subr.mxu0 %v935
        %1221 = vmatpush1.msra.mxu0 %v934
        %1222 = vmatprep.subr.mxu0 0.0
        %1223 = vmatpush2.msra.mxu0 0.0
        %1224 = vmatprep.subr.mxu0 0.0
        %1225 = vmatpush2.msra.mxu0 0.0
        %1226 = vmatprep.subr.mxu0 0.0
        %1227 = vmatpush2.msra.mxu0 0.0
        %1228 = vmatprep.subr.mxu0 0.0
        %1229 = vmatpush2.msra.mxu0 0.0
        %1230 = vmatprep.subr.mxu0 0.0
        %1231 = vmatpush2.msra.mxu0 0.0
        %1232 = vmatprep.subr.mxu0 0.0
        %1233 = vmatpush2.msra.mxu0 0.0
        %1234 = vmatprep.subr.mxu0 0.0
        %1235 = vmatpush2.msra.mxu0 0.0
        %1236 = vmatprep.subr.mxu0 0.0
        %1237 = vmatpush2.msra.mxu0 0.0
        %1238 = vmatprep.subr.mxu0 0.0
        %1239 = vmatpush2.msra.mxu0 0.0
        %1240 = vmatprep.subr.mxu0 0.0
        %1241 = vmatpush2.msra.mxu0 0.0
        %1242 = vmatprep.subr.mxu0 0.0
        %1243 = vmatpush2.msra.mxu0 0.0
        %1244 = vmatprep.subr.mxu0 0.0
        %1245 = vmatpush2.msra.mxu0 0.0
        %1246 = vmatprep.subr.mxu0 0.0
        %1247 = vmatpush2.msra.mxu0 0.0
        %1248 = vmatprep.subr.mxu0 0.0
        %1249 = vmatpush2.msra.mxu0 0.0
        %1250 = vmatprep.subr.mxu0 0.0
        %1251 = vmatpush2.msra.mxu0 0.0
        %1252 = vmatprep.subr.mxu0 0.0
        %1253 = vmatpush2.msra.mxu0 0.0
        %1254 = vmatprep.mubr.f32.mxu0 0.0
        %1255 = vmatmul.mubr.f32.gmra.mxu0 %v928
        %v1256 = vpop.f32.mrf.mxu0
        %v1257 = vadd.f32 %v1133, %v1256
        %v1258 = vpop.f32.mrf.mxu0
        %v1259 = vadd.f32 %v1137, %v1258
        %1260 = vdwg.mxu0
        %1261 = vmatprep.subr.mxu0 %v1117
        %1262 = vmatpush1.msra.mxu0 %v1116
        %1263 = vmatprep.subr.mxu0 %v1105
        %1264 = vmatpush1.msra.mxu0 %v1104
        %1265 = vmatprep.subr.mxu0 %v1093
        %1266 = vmatpush1.msra.mxu0 %v1092
        %1267 = vmatprep.subr.mxu0 %v1081
        %1268 = vmatpush1.msra.mxu0 %v1080
        %1269 = vmatprep.subr.mxu0 %v1069
        %1270 = vmatpush1.msra.mxu0 %v1068
        %1271 = vmatprep.subr.mxu0 %v1057
        %1272 = vmatpush1.msra.mxu0 %v1056
        %1273 = vmatprep.subr.mxu0 %v1045
        %1274 = vmatpush1.msra.mxu0 %v1044
        %1275 = vmatprep.subr.mxu0 %v1033
        %1276 = vmatpush1.msra.mxu0 %v1032
        %1277 = vmatprep.subr.mxu0 %v1021
        %1278 = vmatpush1.msra.mxu0 %v1020
        %1279 = vmatprep.subr.mxu0 %v1009
        %1280 = vmatpush1.msra.mxu0 %v1008
        %1281 = vmatprep.subr.mxu0 %v997
        %1282 = vmatpush1.msra.mxu0 %v996
        %1283 = vmatprep.subr.mxu0 %v985
        %1284 = vmatpush1.msra.mxu0 %v984
        %1285 = vmatprep.subr.mxu0 %v973
        %1286 = vmatpush1.msra.mxu0 %v972
        %1287 = vmatprep.subr.mxu0 %v961
        %1288 = vmatpush1.msra.mxu0 %v960
        %1289 = vmatprep.subr.mxu0 %v949
        %1290 = vmatpush1.msra.mxu0 %v948
        %1291 = vmatprep.subr.mxu0 %v937
        %1292 = vmatpush1.msra.mxu0 %v936
        %1293 = vmatprep.subr.mxu0 0.0
        %1294 = vmatpush2.msra.mxu0 0.0
        %1295 = vmatprep.subr.mxu0 0.0
        %1296 = vmatpush2.msra.mxu0 0.0
        %1297 = vmatprep.subr.mxu0 0.0
        %1298 = vmatpush2.msra.mxu0 0.0
        %1299 = vmatprep.subr.mxu0 0.0
        %1300 = vmatpush2.msra.mxu0 0.0
        %1301 = vmatprep.subr.mxu0 0.0
        %1302 = vmatpush2.msra.mxu0 0.0
        %1303 = vmatprep.subr.mxu0 0.0
        %1304 = vmatpush2.msra.mxu0 0.0
        %1305 = vmatprep.subr.mxu0 0.0
        %1306 = vmatpush2.msra.mxu0 0.0
        %1307 = vmatprep.subr.mxu0 0.0
        %1308 = vmatpush2.msra.mxu0 0.0
        %1309 = vmatprep.subr.mxu0 0.0
        %1310 = vmatpush2.msra.mxu0 0.0
        %1311 = vmatprep.subr.mxu0 0.0
        %1312 = vmatpush2.msra.mxu0 0.0
        %1313 = vmatprep.subr.mxu0 0.0
        %1314 = vmatpush2.msra.mxu0 0.0
        %1315 = vmatprep.subr.mxu0 0.0
        %1316 = vmatpush2.msra.mxu0 0.0
        %1317 = vmatprep.subr.mxu0 0.0
        %1318 = vmatpush2.msra.mxu0 0.0
        %1319 = vmatprep.subr.mxu0 0.0
        %1320 = vmatpush2.msra.mxu0 0.0
        %1321 = vmatprep.subr.mxu0 0.0
        %1322 = vmatpush2.msra.mxu0 0.0
        %1323 = vmatprep.subr.mxu0 0.0
        %1324 = vmatpush2.msra.mxu0 0.0
        %1325 = vmatprep.mubr.f32.mxu0 0.0
        %1326 = vmatmul.mubr.f32.gmra.mxu0 %v928
        %v1327 = vpop.f32.mrf.mxu0
        %v1328 = vadd.f32 %v1141, %v1327
        %v1329 = vpop.f32.mrf.mxu0
        %v1330 = vadd.f32 %v1145, %v1329
        %1331 = vdwg.mxu0
        %1332 = vmatprep.subr.mxu0 %v1119
        %1333 = vmatpush1.msra.mxu0 %v1118
        %1334 = vmatprep.subr.mxu0 %v1107
        %1335 = vmatpush1.msra.mxu0 %v1106
        %1336 = vmatprep.subr.mxu0 %v1095
        %1337 = vmatpush1.msra.mxu0 %v1094
        %1338 = vmatprep.subr.mxu0 %v1083
        %1339 = vmatpush1.msra.mxu0 %v1082
        %1340 = vmatprep.subr.mxu0 %v1071
        %1341 = vmatpush1.msra.mxu0 %v1070
        %1342 = vmatprep.subr.mxu0 %v1059
        %1343 = vmatpush1.msra.mxu0 %v1058
        %1344 = vmatprep.subr.mxu0 %v1047
        %1345 = vmatpush1.msra.mxu0 %v1046
        %1346 = vmatprep.subr.mxu0 %v1035
        %1347 = vmatpush1.msra.mxu0 %v1034
        %1348 = vmatprep.subr.mxu0 %v1023
        %1349 = vmatpush1.msra.mxu0 %v1022
        %1350 = vmatprep.subr.mxu0 %v1011
        %1351 = vmatpush1.msra.mxu0 %v1010
        %1352 = vmatprep.subr.mxu0 %v999
        %1353 = vmatpush1.msra.mxu0 %v998
        %1354 = vmatprep.subr.mxu0 %v987
        %1355 = vmatpush1.msra.mxu0 %v986
        %1356 = vmatprep.subr.mxu0 %v975
        %1357 = vmatpush1.msra.mxu0 %v974
        %1358 = vmatprep.subr.mxu0 %v963
        %1359 = vmatpush1.msra.mxu0 %v962
        %1360 = vmatprep.subr.mxu0 %v951
        %1361 = vmatpush1.msra.mxu0 %v950
        %1362 = vmatprep.subr.mxu0 %v939
        %1363 = vmatpush1.msra.mxu0 %v938
        %1364 = vmatprep.subr.mxu0 0.0
        %1365 = vmatpush2.msra.mxu0 0.0
        %1366 = vmatprep.subr.mxu0 0.0
        %1367 = vmatpush2.msra.mxu0 0.0
        %1368 = vmatprep.subr.mxu0 0.0
        %1369 = vmatpush2.msra.mxu0 0.0
        %1370 = vmatprep.subr.mxu0 0.0
        %1371 = vmatpush2.msra.mxu0 0.0
        %1372 = vmatprep.subr.mxu0 0.0
        %1373 = vmatpush2.msra.mxu0 0.0
        %1374 = vmatprep.subr.mxu0 0.0
        %1375 = vmatpush2.msra.mxu0 0.0
        %1376 = vmatprep.subr.mxu0 0.0
        %1377 = vmatpush2.msra.mxu0 0.0
        %1378 = vmatprep.subr.mxu0 0.0
        %1379 = vmatpush2.msra.mxu0 0.0
        %1380 = vmatprep.subr.mxu0 0.0
        %1381 = vmatpush2.msra.mxu0 0.0
        %1382 = vmatprep.subr.mxu0 0.0
        %1383 = vmatpush2.msra.mxu0 0.0
        %1384 = vmatprep.subr.mxu0 0.0
        %1385 = vmatpush2.msra.mxu0 0.0
        %1386 = vmatprep.subr.mxu0 0.0
        %1387 = vmatpush2.msra.mxu0 0.0
        %1388 = vmatprep.subr.mxu0 0.0
        %1389 = vmatpush2.msra.mxu0 0.0
        %1390 = vmatprep.subr.mxu0 0.0
        %1391 = vmatpush2.msra.mxu0 0.0
        %1392 = vmatprep.subr.mxu0 0.0
        %1393 = vmatpush2.msra.mxu0 0.0
        %1394 = vmatprep.subr.mxu0 0.0
        %1395 = vmatpush2.msra.mxu0 0.0
        %1396 = vmatprep.mubr.f32.mxu0 0.0
        %1397 = vmatmul.mubr.f32.gmra.mxu0 %v928
        %v1398 = vpop.f32.mrf.mxu0
        %v1399 = vadd.f32 %v1149, %v1398
        %v1400 = vpop.f32.mrf.mxu0
        %v1401 = vadd.f32 %v1153, %v1400
        %1402 = vdwg.mxu0
        %1403 = vmatprep.subr.mxu0 %v1121
        %1404 = vmatpush1.msra.mxu0 %v1120
        %1405 = vmatprep.subr.mxu0 %v1109
        %1406 = vmatpush1.msra.mxu0 %v1108
        %1407 = vmatprep.subr.mxu0 %v1097
        %1408 = vmatpush1.msra.mxu0 %v1096
        %1409 = vmatprep.subr.mxu0 %v1085
        %1410 = vmatpush1.msra.mxu0 %v1084
        %1411 = vmatprep.subr.mxu0 %v1073
        %1412 = vmatpush1.msra.mxu0 %v1072
        %1413 = vmatprep.subr.mxu0 %v1061
        %1414 = vmatpush1.msra.mxu0 %v1060
        %1415 = vmatprep.subr.mxu0 %v1049
        %1416 = vmatpush1.msra.mxu0 %v1048
        %1417 = vmatprep.subr.mxu0 %v1037
        %1418 = vmatpush1.msra.mxu0 %v1036
        %1419 = vmatprep.subr.mxu0 %v1025
        %1420 = vmatpush1.msra.mxu0 %v1024
        %1421 = vmatprep.subr.mxu0 %v1013
        %1422 = vmatpush1.msra.mxu0 %v1012
        %1423 = vmatprep.subr.mxu0 %v1001
        %1424 = vmatpush1.msra.mxu0 %v1000
        %1425 = vmatprep.subr.mxu0 %v989
        %1426 = vmatpush1.msra.mxu0 %v988
        %1427 = vmatprep.subr.mxu0 %v977
        %1428 = vmatpush1.msra.mxu0 %v976
        %1429 = vmatprep.subr.mxu0 %v965
        %1430 = vmatpush1.msra.mxu0 %v964
        %1431 = vmatprep.subr.mxu0 %v953
        %1432 = vmatpush1.msra.mxu0 %v952
        %1433 = vmatprep.subr.mxu0 %v941
        %1434 = vmatpush1.msra.mxu0 %v940
        %1435 = vmatprep.subr.mxu0 0.0
        %1436 = vmatpush2.msra.mxu0 0.0
        %1437 = vmatprep.subr.mxu0 0.0
        %1438 = vmatpush2.msra.mxu0 0.0
        %1439 = vmatprep.subr.mxu0 0.0
        %1440 = vmatpush2.msra.mxu0 0.0
        %1441 = vmatprep.subr.mxu0 0.0
        %1442 = vmatpush2.msra.mxu0 0.0
        %1443 = vmatprep.subr.mxu0 0.0
        %1444 = vmatpush2.msra.mxu0 0.0
        %1445 = vmatprep.subr.mxu0 0.0
        %1446 = vmatpush2.msra.mxu0 0.0
        %1447 = vmatprep.subr.mxu0 0.0
        %1448 = vmatpush2.msra.mxu0 0.0
        %1449 = vmatprep.subr.mxu0 0.0
        %1450 = vmatpush2.msra.mxu0 0.0
        %1451 = vmatprep.subr.mxu0 0.0
        %1452 = vmatpush2.msra.mxu0 0.0
        %1453 = vmatprep.subr.mxu0 0.0
        %1454 = vmatpush2.msra.mxu0 0.0
        %1455 = vmatprep.subr.mxu0 0.0
        %1456 = vmatpush2.msra.mxu0 0.0
        %1457 = vmatprep.subr.mxu0 0.0
        %1458 = vmatpush2.msra.mxu0 0.0
        %1459 = vmatprep.subr.mxu0 0.0
        %1460 = vmatpush2.msra.mxu0 0.0
        %1461 = vmatprep.subr.mxu0 0.0
        %1462 = vmatpush2.msra.mxu0 0.0
        %1463 = vmatprep.subr.mxu0 0.0
        %1464 = vmatpush2.msra.mxu0 0.0
        %1465 = vmatprep.subr.mxu0 0.0
        %1466 = vmatpush2.msra.mxu0 0.0
        %1467 = vmatprep.mubr.f32.mxu0 0.0
        %1468 = vmatmul.mubr.f32.gmra.mxu0 %v928
        %v1469 = vpop.f32.mrf.mxu0
        %v1470 = vadd.f32 %v1157, %v1469
        %v1471 = vpop.f32.mrf.mxu0
        %v1472 = vadd.f32 %v1161, %v1471
        %1473 = vdwg.mxu0
        %1474 = vmatprep.subr.mxu0 %v1123
        %1475 = vmatpush1.msra.mxu0 %v1122
        %1476 = vmatprep.subr.mxu0 %v1111
        %1477 = vmatpush1.msra.mxu0 %v1110
        %1478 = vmatprep.subr.mxu0 %v1099
        %1479 = vmatpush1.msra.mxu0 %v1098
        %1480 = vmatprep.subr.mxu0 %v1087
        %1481 = vmatpush1.msra.mxu0 %v1086
        %1482 = vmatprep.subr.mxu0 %v1075
        %1483 = vmatpush1.msra.mxu0 %v1074
        %1484 = vmatprep.subr.mxu0 %v1063
        %1485 = vmatpush1.msra.mxu0 %v1062
        %1486 = vmatprep.subr.mxu0 %v1051
        %1487 = vmatpush1.msra.mxu0 %v1050
        %1488 = vmatprep.subr.mxu0 %v1039
        %1489 = vmatpush1.msra.mxu0 %v1038
        %1490 = vmatprep.subr.mxu0 %v1027
        %1491 = vmatpush1.msra.mxu0 %v1026
        %1492 = vmatprep.subr.mxu0 %v1015
        %1493 = vmatpush1.msra.mxu0 %v1014
        %1494 = vmatprep.subr.mxu0 %v1003
        %1495 = vmatpush1.msra.mxu0 %v1002
        %1496 = vmatprep.subr.mxu0 %v991
        %1497 = vmatpush1.msra.mxu0 %v990
        %1498 = vmatprep.subr.mxu0 %v979
        %1499 = vmatpush1.msra.mxu0 %v978
        %1500 = vmatprep.subr.mxu0 %v967
        %1501 = vmatpush1.msra.mxu0 %v966
        %1502 = vmatprep.subr.mxu0 %v955
        %1503 = vmatpush1.msra.mxu0 %v954
        %1504 = vmatprep.subr.mxu0 %v943
        %1505 = vmatpush1.msra.mxu0 %v942
        %1506 = vmatprep.subr.mxu0 0.0
        %1507 = vmatpush2.msra.mxu0 0.0
        %1508 = vmatprep.subr.mxu0 0.0
        %1509 = vmatpush2.msra.mxu0 0.0
        %1510 = vmatprep.subr.mxu0 0.0
        %1511 = vmatpush2.msra.mxu0 0.0
        %1512 = vmatprep.subr.mxu0 0.0
        %1513 = vmatpush2.msra.mxu0 0.0
        %1514 = vmatprep.subr.mxu0 0.0
        %1515 = vmatpush2.msra.mxu0 0.0
        %1516 = vmatprep.subr.mxu0 0.0
        %1517 = vmatpush2.msra.mxu0 0.0
        %1518 = vmatprep.subr.mxu0 0.0
        %1519 = vmatpush2.msra.mxu0 0.0
        %1520 = vmatprep.subr.mxu0 0.0
        %1521 = vmatpush2.msra.mxu0 0.0
        %1522 = vmatprep.subr.mxu0 0.0
        %1523 = vmatpush2.msra.mxu0 0.0
        %1524 = vmatprep.subr.mxu0 0.0
        %1525 = vmatpush2.msra.mxu0 0.0
        %1526 = vmatprep.subr.mxu0 0.0
        %1527 = vmatpush2.msra.mxu0 0.0
        %1528 = vmatprep.subr.mxu0 0.0
        %1529 = vmatpush2.msra.mxu0 0.0
        %1530 = vmatprep.subr.mxu0 0.0
        %1531 = vmatpush2.msra.mxu0 0.0
        %1532 = vmatprep.subr.mxu0 0.0
        %1533 = vmatpush2.msra.mxu0 0.0
        %1534 = vmatprep.subr.mxu0 0.0
        %1535 = vmatpush2.msra.mxu0 0.0
        %1536 = vmatprep.subr.mxu0 0.0
        %1537 = vmatpush2.msra.mxu0 0.0
        %1538 = vmatprep.mubr.f32.mxu0 0.0
        %1539 = vmatmul.mubr.f32.gmra.mxu0 %v928
        %v1540 = vpop.f32.mrf.mxu0
        %v1541 = vadd.f32 %v1165, %v1540
        %v1542 = vpop.f32.mrf.mxu0
        %v1543 = vadd.f32 %v1169, %v1542
        %1544 = vdwg.mxu0
        %1545 = vmatprep.subr.mxu0 %v1125
        %1546 = vmatpush1.msra.mxu0 %v1124
        %1547 = vmatprep.subr.mxu0 %v1113
        %1548 = vmatpush1.msra.mxu0 %v1112
        %1549 = vmatprep.subr.mxu0 %v1101
        %1550 = vmatpush1.msra.mxu0 %v1100
        %1551 = vmatprep.subr.mxu0 %v1089
        %1552 = vmatpush1.msra.mxu0 %v1088
        %1553 = vmatprep.subr.mxu0 %v1077
        %1554 = vmatpush1.msra.mxu0 %v1076
        %1555 = vmatprep.subr.mxu0 %v1065
        %1556 = vmatpush1.msra.mxu0 %v1064
        %1557 = vmatprep.subr.mxu0 %v1053
        %1558 = vmatpush1.msra.mxu0 %v1052
        %1559 = vmatprep.subr.mxu0 %v1041
        %1560 = vmatpush1.msra.mxu0 %v1040
        %1561 = vmatprep.subr.mxu0 %v1029
        %1562 = vmatpush1.msra.mxu0 %v1028
        %1563 = vmatprep.subr.mxu0 %v1017
        %1564 = vmatpush1.msra.mxu0 %v1016
        %1565 = vmatprep.subr.mxu0 %v1005
        %1566 = vmatpush1.msra.mxu0 %v1004
        %1567 = vmatprep.subr.mxu0 %v993
        %1568 = vmatpush1.msra.mxu0 %v992
        %1569 = vmatprep.subr.mxu0 %v981
        %1570 = vmatpush1.msra.mxu0 %v980
        %1571 = vmatprep.subr.mxu0 %v969
        %1572 = vmatpush1.msra.mxu0 %v968
        %1573 = vmatprep.subr.mxu0 %v957
        %1574 = vmatpush1.msra.mxu0 %v956
        %1575 = vmatprep.subr.mxu0 %v945
        %1576 = vmatpush1.msra.mxu0 %v944
        %1577 = vmatprep.subr.mxu0 0.0
        %1578 = vmatpush2.msra.mxu0 0.0
        %1579 = vmatprep.subr.mxu0 0.0
        %1580 = vmatpush2.msra.mxu0 0.0
        %1581 = vmatprep.subr.mxu0 0.0
        %1582 = vmatpush2.msra.mxu0 0.0
        %1583 = vmatprep.subr.mxu0 0.0
        %1584 = vmatpush2.msra.mxu0 0.0
        %1585 = vmatprep.subr.mxu0 0.0
        %1586 = vmatpush2.msra.mxu0 0.0
        %1587 = vmatprep.subr.mxu0 0.0
        %1588 = vmatpush2.msra.mxu0 0.0
        %1589 = vmatprep.subr.mxu0 0.0
        %1590 = vmatpush2.msra.mxu0 0.0
        %1591 = vmatprep.subr.mxu0 0.0
        %1592 = vmatpush2.msra.mxu0 0.0
        %1593 = vmatprep.subr.mxu0 0.0
        %1594 = vmatpush2.msra.mxu0 0.0
        %1595 = vmatprep.subr.mxu0 0.0
        %1596 = vmatpush2.msra.mxu0 0.0
        %1597 = vmatprep.subr.mxu0 0.0
        %1598 = vmatpush2.msra.mxu0 0.0
        %1599 = vmatprep.subr.mxu0 0.0
        %1600 = vmatpush2.msra.mxu0 0.0
        %1601 = vmatprep.subr.mxu0 0.0
        %1602 = vmatpush2.msra.mxu0 0.0
        %1603 = vmatprep.subr.mxu0 0.0
        %1604 = vmatpush2.msra.mxu0 0.0
        %1605 = vmatprep.subr.mxu0 0.0
        %1606 = vmatpush2.msra.mxu0 0.0
        %1607 = vmatprep.subr.mxu0 0.0
        %1608 = vmatpush2.msra.mxu0 0.0
        %1609 = vmatprep.mubr.f32.mxu0 0.0
        %1610 = vmatmul.mubr.f32.gmra.mxu0 %v928
        %v1611 = vpop.f32.mrf.mxu0
        %v1612 = vadd.f32 %v1173, %v1611
        %v1613 = vpop.f32.mrf.mxu0
        %v1614 = vadd.f32 %v1177, %v1613
        %1615 = vdwg.mxu0
        %1616 = vmatprep.subr.mxu0 0.0
        %1617 = vmatpush1.xpose.msra.mxu0 0.0
        %1618 = vmatprep.subr.mxu0 0.0
        %1619 = vmatpush1.xpose.msra.mxu0 0.0
        %1620 = vmatprep.subr.mxu0 0.0
        %1621 = vmatpush1.xpose.msra.mxu0 0.0
        %1622 = vmatprep.subr.mxu0 0.0
        %1623 = vmatpush1.xpose.msra.mxu0 0.0
        %1624 = vmatprep.subr.mxu0 0.0
        %1625 = vmatpush1.xpose.msra.mxu0 0.0
        %1626 = vmatprep.subr.mxu0 0.0
        %1627 = vmatpush1.xpose.msra.mxu0 0.0
        %1628 = vmatprep.subr.mxu0 0.0
        %1629 = vmatpush1.xpose.msra.mxu0 0.0
        %1630 = vmatprep.subr.mxu0 0.0
        %1631 = vmatpush1.xpose.msra.mxu0 0.0
        %1632 = vmatprep.subr.mxu0 0.0
        %1633 = vmatpush1.xpose.msra.mxu0 0.0
        %1634 = vmatprep.subr.mxu0 0.0
        %1635 = vmatpush1.xpose.msra.mxu0 0.0
        %1636 = vmatprep.subr.mxu0 0.0
        %1637 = vmatpush1.xpose.msra.mxu0 0.0
        %1638 = vmatprep.subr.mxu0 0.0
        %1639 = vmatpush1.xpose.msra.mxu0 0.0
        %1640 = vmatprep.subr.mxu0 0.0
        %1641 = vmatpush1.xpose.msra.mxu0 0.0
        %1642 = vmatprep.subr.mxu0 0.0
        %1643 = vmatpush1.xpose.msra.mxu0 0.0
        %1644 = vmatprep.subr.mxu0 0.0
        %1645 = vmatpush1.xpose.msra.mxu0 0.0
        %1646 = vmatprep.subr.mxu0 0.0
        %1647 = vmatpush1.xpose.msra.mxu0 %v1399
        %1648 = vmatprep.subr.mxu0 0.0
        %1649 = vmatpush2.xpose.msra.mxu0 0.0
        %1650 = vmatprep.subr.mxu0 0.0
        %1651 = vmatpush2.xpose.msra.mxu0 0.0
        %1652 = vmatprep.subr.mxu0 0.0
        %1653 = vmatpush2.xpose.msra.mxu0 0.0
        %1654 = vmatprep.subr.mxu0 0.0
        %1655 = vmatpush2.xpose.msra.mxu0 0.0
        %1656 = vmatprep.subr.mxu0 0.0
        %1657 = vmatpush2.xpose.msra.mxu0 0.0
        %1658 = vmatprep.subr.mxu0 0.0
        %1659 = vmatpush2.xpose.msra.mxu0 0.0
        %1660 = vmatprep.subr.mxu0 0.0
        %1661 = vmatpush2.xpose.msra.mxu0 0.0
        %1662 = vmatprep.subr.mxu0 0.0
        %1663 = vmatpush2.xpose.msra.mxu0 0.0
        %1664 = vmatprep.subr.mxu0 0.0
        %1665 = vmatpush2.xpose.msra.mxu0 0.0
        %1666 = vmatprep.subr.mxu0 0.0
        %1667 = vmatpush2.xpose.msra.mxu0 0.0
        %1668 = vmatprep.subr.mxu0 0.0
        %1669 = vmatpush2.xpose.msra.mxu0 0.0
        %1670 = vmatprep.subr.mxu0 0.0
        %1671 = vmatpush2.xpose.msra.mxu0 0.0
        %1672 = vmatprep.subr.mxu0 0.0
        %1673 = vmatpush2.xpose.msra.mxu0 0.0
        %1674 = vmatprep.subr.mxu0 0.0
        %1675 = vmatpush2.xpose.msra.mxu0 0.0
        %1676 = vmatprep.subr.mxu0 0.0
        %1677 = vmatpush2.xpose.msra.mxu0 0.0
        %1678 = vmatprep.subr.mxu0 0.0
        %1679 = vmatpush2.xpose.msra.mxu0 0.0
        %1680 = vmatprep.mubr.f32.mxu0 0.0
        %1681 = vmatmul.mubr.f32.gmra.mxu0 %v1257
        %v1682 = vpop.f32.mrf.mxu0
        %v1683 = vadd.f32 0.0, %v1682
        %v1684 = vpop.f32.mrf.mxu0
        %1685 = vdwg.mxu0
        %v1686 = vmul.f32 %v1683, 0.35355338
        %v1687 = vsel %vm933, %v1686, -1e+30
        %vm1688 = vcmask 64512
        %v1689 = vsel %vm1688, %v1687, -inf
        %1690 = vmax.xlane.f32.xlu0 %v1689
        %v1691 = vpop.xlane.xlu0 %1690
        %v1692 = vsub.f32 %v1687, %v1691
        %v1693 = vmul.f32 %v1692, 1.442695
        %v1694 = vpow.pop %v1693
        %v1695 = vsel %vm1688, %v1694, 0.0
        %1696 = vadd.xlane.f32.xlu0 %v1695
        %v1697 = vpop.xlane.xlu0 %1696
        %v1698 = vrcp.pop %v1697
        %v1699 = vmul.f32 %v1694, %v1698
        %v1701 = vsel %vm1688, %v1699, 0
        %1703 = vmatprep.subr.mxu0 0.0
        %1704 = vmatpush1.msra.mxu0 0.0
        %1705 = vmatprep.subr.mxu0 0.0
        %1706 = vmatpush1.msra.mxu0 0.0
        %1707 = vmatprep.subr.mxu0 0.0
        %1708 = vmatpush1.msra.mxu0 0.0
        %1709 = vmatprep.subr.mxu0 0.0
        %1710 = vmatpush1.msra.mxu0 0.0
        %1711 = vmatprep.subr.mxu0 0.0
        %1712 = vmatpush1.msra.mxu0 0.0
        %1713 = vmatprep.subr.mxu0 0.0
        %1714 = vmatpush1.msra.mxu0 0.0
        %1715 = vmatprep.subr.mxu0 0.0
        %1716 = vmatpush1.msra.mxu0 0.0
        %1717 = vmatprep.subr.mxu0 0.0
        %1718 = vmatpush1.msra.mxu0 0.0
        %1719 = vmatprep.subr.mxu0 0.0
        %1720 = vmatpush1.msra.mxu0 0.0
        %1721 = vmatprep.subr.mxu0 0.0
        %1722 = vmatpush1.msra.mxu0 0.0
        %1723 = vmatprep.subr.mxu0 0.0
        %1724 = vmatpush1.msra.mxu0 0.0
        %1725 = vmatprep.subr.mxu0 0.0
        %1726 = vmatpush1.msra.mxu0 0.0
        %1727 = vmatprep.subr.mxu0 0.0
        %1728 = vmatpush1.msra.mxu0 0.0
        %1729 = vmatprep.subr.mxu0 0.0
        %1730 = vmatpush1.msra.mxu0 0.0
        %1731 = vmatprep.subr.mxu0 0.0
        %1732 = vmatpush1.msra.mxu0 0.0
        %1733 = vmatprep.subr.mxu0 0.0
        %1734 = vmatpush1.msra.mxu0 %v1541
        %1735 = vmatprep.subr.mxu0 0.0
        %1736 = vmatpush2.msra.mxu0 0.0
        %1737 = vmatprep.subr.mxu0 0.0
        %1738 = vmatpush2.msra.mxu0 0.0
        %1739 = vmatprep.subr.mxu0 0.0
        %1740 = vmatpush2.msra.mxu0 0.0
        %1741 = vmatprep.subr.mxu0 0.0
        %1742 = vmatpush2.msra.mxu0 0.0
        %1743 = vmatprep.subr.mxu0 0.0
        %1744 = vmatpush2.msra.mxu0 0.0
        %1745 = vmatprep.subr.mxu0 0.0
        %1746 = vmatpush2.msra.mxu0 0.0
        %1747 = vmatprep.subr.mxu0 0.0
        %1748 = vmatpush2.msra.mxu0 0.0
        %1749 = vmatprep.subr.mxu0 0.0
        %1750 = vmatpush2.msra.mxu0 0.0
        %1751 = vmatprep.subr.mxu0 0.0
        %1752 = vmatpush2.msra.mxu0 0.0
        %1753 = vmatprep.subr.mxu0 0.0
        %1754 = vmatpush2.msra.mxu0 0.0
        %1755 = vmatprep.subr.mxu0 0.0
        %1756 = vmatpush2.msra.mxu0 0.0
        %1757 = vmatprep.subr.mxu0 0.0
        %1758 = vmatpush2.msra.mxu0 0.0
        %1759 = vmatprep.subr.mxu0 0.0
        %1760 = vmatpush2.msra.mxu0 0.0
        %1761 = vmatprep.subr.mxu0 0.0
        %1762 = vmatpush2.msra.mxu0 0.0
        %1763 = vmatprep.subr.mxu0 0.0
        %1764 = vmatpush2.msra.mxu0 0.0
        %1765 = vmatprep.subr.mxu0 0.0
        %1766 = vmatpush2.msra.mxu0 0.0
        %1767 = vmatprep.mubr.f32.mxu0 0.0
        %1768 = vmatmul.mubr.f32.gmra.mxu0 %v1701
        %v1769 = vpop.f32.mrf.mxu0
        %v1770 = vadd.f32 0.0, %v1769
        %v1771 = vpop.f32.mrf.mxu0
        %1772 = vdwg.mxu0
        %v1773 = vld [vmem:[#allocation13] sm:$0xff]
        %v1774 = vld [vmem:[#allocation13 + $0x8] sm:$0xff]
        %v1775 = vld [vmem:[#allocation13 + $0x10] sm:$0xff]
        %v1776 = vld [vmem:[#allocation13 + $0x18] sm:$0xff]
        %v1777 = vld [vmem:[#allocation13 + $0x20] sm:$0xff]
        %v1778 = vld [vmem:[#allocation13 + $0x28] sm:$0xff]
        %v1779 = vld [vmem:[#allocation13 + $0x30] sm:$0xff]
        %v1780 = vld [vmem:[#allocation13 + $0x38] sm:$0xff]
        %v1781 = vld [vmem:[#allocation13 + $0x40] sm:$0xff]
        %v1782 = vld [vmem:[#allocation13 + $0x48] sm:$0xff]
        %v1783 = vld [vmem:[#allocation13 + $0x50] sm:$0xff]
        %v1784 = vld [vmem:[#allocation13 + $0x58] sm:$0xff]
        %v1785 = vld [vmem:[#allocation13 + $0x60] sm:$0xff]
        %v1786 = vld [vmem:[#allocation13 + $0x68] sm:$0xff]
        %v1787 = vld [vmem:[#allocation13 + $0x70] sm:$0xff]
        %v1788 = vld [vmem:[#allocation13 + $0x78] sm:$0xff]
        %1789 = vmatprep.subr.mxu0 0.0
        %1790 = vmatpush1.xpose.msra.mxu0 0.0
        %1791 = vmatprep.subr.mxu0 0.0
        %1792 = vmatpush1.xpose.msra.mxu0 0.0
        %1793 = vmatprep.subr.mxu0 0.0
        %1794 = vmatpush1.xpose.msra.mxu0 0.0
        %1795 = vmatprep.subr.mxu0 0.0
        %1796 = vmatpush1.xpose.msra.mxu0 0.0
        %1797 = vmatprep.subr.mxu0 0.0
        %1798 = vmatpush1.xpose.msra.mxu0 0.0
        %1799 = vmatprep.subr.mxu0 0.0
        %1800 = vmatpush1.xpose.msra.mxu0 0.0
        %1801 = vmatprep.subr.mxu0 0.0
        %1802 = vmatpush1.xpose.msra.mxu0 0.0
        %1803 = vmatprep.subr.mxu0 0.0
        %1804 = vmatpush1.xpose.msra.mxu0 0.0
        %1805 = vmatprep.subr.mxu0 0.0
        %1806 = vmatpush1.xpose.msra.mxu0 0.0
        %1807 = vmatprep.subr.mxu0 0.0
        %1808 = vmatpush1.xpose.msra.mxu0 0.0
        %1809 = vmatprep.subr.mxu0 0.0
        %1810 = vmatpush1.xpose.msra.mxu0 0.0
        %1811 = vmatprep.subr.mxu0 0.0
        %1812 = vmatpush1.xpose.msra.mxu0 0.0
        %1813 = vmatprep.subr.mxu0 0.0
        %1814 = vmatpush1.xpose.msra.mxu0 0.0
        %1815 = vmatprep.subr.mxu0 0.0
        %1816 = vmatpush1.xpose.msra.mxu0 0.0
        %1817 = vmatprep.subr.mxu0 0.0
        %1818 = vmatpush1.xpose.msra.mxu0 0.0
        %1819 = vmatprep.subr.mxu0 0.0
        %1820 = vmatpush1.xpose.msra.mxu0 %v1401
        %1821 = vmatprep.subr.mxu0 0.0
        %1822 = vmatpush2.xpose.msra.mxu0 0.0
        %1823 = vmatprep.subr.mxu0 0.0
        %1824 = vmatpush2.xpose.msra.mxu0 0.0
        %1825 = vmatprep.subr.mxu0 0.0
        %1826 = vmatpush2.xpose.msra.mxu0 0.0
        %1827 = vmatprep.subr.mxu0 0.0
        %1828 = vmatpush2.xpose.msra.mxu0 0.0
        %1829 = vmatprep.subr.mxu0 0.0
        %1830 = vmatpush2.xpose.msra.mxu0 0.0
        %1831 = vmatprep.subr.mxu0 0.0
        %1832 = vmatpush2.xpose.msra.mxu0 0.0
        %1833 = vmatprep.subr.mxu0 0.0
        %1834 = vmatpush2.xpose.msra.mxu0 0.0
        %1835 = vmatprep.subr.mxu0 0.0
        %1836 = vmatpush2.xpose.msra.mxu0 0.0
        %1837 = vmatprep.subr.mxu0 0.0
        %1838 = vmatpush2.xpose.msra.mxu0 0.0
        %1839 = vmatprep.subr.mxu0 0.0
        %1840 = vmatpush2.xpose.msra.mxu0 0.0
        %1841 = vmatprep.subr.mxu0 0.0
        %1842 = vmatpush2.xpose.msra.mxu0 0.0
        %1843 = vmatprep.subr.mxu0 0.0
        %1844 = vmatpush2.xpose.msra.mxu0 0.0
        %1845 = vmatprep.subr.mxu0 0.0
        %1846 = vmatpush2.xpose.msra.mxu0 0.0
        %1847 = vmatprep.subr.mxu0 0.0
        %1848 = vmatpush2.xpose.msra.mxu0 0.0
        %1849 = vmatprep.subr.mxu0 0.0
        %1850 = vmatpush2.xpose.msra.mxu0 0.0
        %1851 = vmatprep.subr.mxu0 0.0
        %1852 = vmatpush2.xpose.msra.mxu0 0.0
        %1853 = vmatprep.mubr.f32.mxu0 0.0
        %1854 = vmatmul.mubr.f32.gmra.mxu0 %v1259
        %v1855 = vpop.f32.mrf.mxu0
        %v1856 = vadd.f32 0.0, %v1855
        %v1857 = vpop.f32.mrf.mxu0
        %1858 = vdwg.mxu0
        %v1859 = vmul.f32 %v1856, 0.35355338
        %v1860 = vsel %vm933, %v1859, -1e+30
        %v1861 = vsel %vm1688, %v1860, -inf
        %1862 = vmax.xlane.f32.xlu0 %v1861
        %v1863 = vpop.xlane.xlu0 %1862
        %v1864 = vsub.f32 %v1860, %v1863
        %v1865 = vmul.f32 %v1864, 1.442695
        %v1866 = vpow.pop %v1865
        %v1867 = vsel %vm1688, %v1866, 0.0
        %1868 = vadd.xlane.f32.xlu0 %v1867
        %v1869 = vpop.xlane.xlu0 %1868
        %v1870 = vrcp.pop %v1869
        %v1871 = vmul.f32 %v1866, %v1870
        %v1873 = vsel %vm1688, %v1871, 0
        %1875 = vmatprep.subr.mxu0 0.0
        %1876 = vmatpush1.msra.mxu0 0.0
        %1877 = vmatprep.subr.mxu0 0.0
        %1878 = vmatpush1.msra.mxu0 0.0
        %1879 = vmatprep.subr.mxu0 0.0
        %1880 = vmatpush1.msra.mxu0 0.0
        %1881 = vmatprep.subr.mxu0 0.0
        %1882 = vmatpush1.msra.mxu0 0.0
        %1883 = vmatprep.subr.mxu0 0.0
        %1884 = vmatpush1.msra.mxu0 0.0
        %1885 = vmatprep.subr.mxu0 0.0
        %1886 = vmatpush1.msra.mxu0 0.0
        %1887 = vmatprep.subr.mxu0 0.0
        %1888 = vmatpush1.msra.mxu0 0.0
        %1889 = vmatprep.subr.mxu0 0.0
        %1890 = vmatpush1.msra.mxu0 0.0
        %1891 = vmatprep.subr.mxu0 0.0
        %1892 = vmatpush1.msra.mxu0 0.0
        %1893 = vmatprep.subr.mxu0 0.0
        %1894 = vmatpush1.msra.mxu0 0.0
        %1895 = vmatprep.subr.mxu0 0.0
        %1896 = vmatpush1.msra.mxu0 0.0
        %1897 = vmatprep.subr.mxu0 0.0
        %1898 = vmatpush1.msra.mxu0 0.0
        %1899 = vmatprep.subr.mxu0 0.0
        %1900 = vmatpush1.msra.mxu0 0.0
        %1901 = vmatprep.subr.mxu0 0.0
        %1902 = vmatpush1.msra.mxu0 0.0
        %1903 = vmatprep.subr.mxu0 0.0
        %1904 = vmatpush1.msra.mxu0 0.0
        %1905 = vmatprep.subr.mxu0 0.0
        %1906 = vmatpush1.msra.mxu0 %v1543
        %1907 = vmatprep.subr.mxu0 0.0
        %1908 = vmatpush2.msra.mxu0 0.0
        %1909 = vmatprep.subr.mxu0 0.0
        %1910 = vmatpush2.msra.mxu0 0.0
        %1911 = vmatprep.subr.mxu0 0.0
        %1912 = vmatpush2.msra.mxu0 0.0
        %1913 = vmatprep.subr.mxu0 0.0
        %1914 = vmatpush2.msra.mxu0 0.0
        %1915 = vmatprep.subr.mxu0 0.0
        %1916 = vmatpush2.msra.mxu0 0.0
        %1917 = vmatprep.subr.mxu0 0.0
        %1918 = vmatpush2.msra.mxu0 0.0
        %1919 = vmatprep.subr.mxu0 0.0
        %1920 = vmatpush2.msra.mxu0 0.0
        %1921 = vmatprep.subr.mxu0 0.0
        %1922 = vmatpush2.msra.mxu0 0.0
        %1923 = vmatprep.subr.mxu0 0.0
        %1924 = vmatpush2.msra.mxu0 0.0
        %1925 = vmatprep.subr.mxu0 0.0
        %1926 = vmatpush2.msra.mxu0 0.0
        %1927 = vmatprep.subr.mxu0 0.0
        %1928 = vmatpush2.msra.mxu0 0.0
        %1929 = vmatprep.subr.mxu0 0.0
        %1930 = vmatpush2.msra.mxu0 0.0
        %1931 = vmatprep.subr.mxu0 0.0
        %1932 = vmatpush2.msra.mxu0 0.0
        %1933 = vmatprep.subr.mxu0 0.0
        %1934 = vmatpush2.msra.mxu0 0.0
        %1935 = vmatprep.subr.mxu0 0.0
        %1936 = vmatpush2.msra.mxu0 0.0
        %1937 = vmatprep.subr.mxu0 0.0
        %1938 = vmatpush2.msra.mxu0 0.0
        %1939 = vmatprep.mubr.f32.mxu0 0.0
        %1940 = vmatmul.mubr.f32.gmra.mxu0 %v1873
        %v1941 = vpop.f32.mrf.mxu0
        %v1942 = vadd.f32 0.0, %v1941
        %v1943 = vpop.f32.mrf.mxu0
        %1944 = vdwg.mxu0
        %s1945 = scalar_lea.vmem [#allocation13], 128
        %v1946 = vld [vmem:[%s1945] sm:$0xff]
        %v1947 = vld [vmem:[%s1945 + $0x8] sm:$0xff]
        %v1948 = vld [vmem:[%s1945 + $0x10] sm:$0xff]
        %v1949 = vld [vmem:[%s1945 + $0x18] sm:$0xff]
        %v1950 = vld [vmem:[%s1945 + $0x20] sm:$0xff]
        %v1951 = vld [vmem:[%s1945 + $0x28] sm:$0xff]
        %v1952 = vld [vmem:[%s1945 + $0x30] sm:$0xff]
        %v1953 = vld [vmem:[%s1945 + $0x38] sm:$0xff]
        %v1954 = vld [vmem:[%s1945 + $0x40] sm:$0xff]
        %v1955 = vld [vmem:[%s1945 + $0x48] sm:$0xff]
        %v1956 = vld [vmem:[%s1945 + $0x50] sm:$0xff]
        %v1957 = vld [vmem:[%s1945 + $0x58] sm:$0xff]
        %v1958 = vld [vmem:[%s1945 + $0x60] sm:$0xff]
        %v1959 = vld [vmem:[%s1945 + $0x68] sm:$0xff]
        %v1960 = vld [vmem:[%s1945 + $0x70] sm:$0xff]
        %v1961 = vld [vmem:[%s1945 + $0x78] sm:$0xff]
        %1962 = vmatprep.subr.mxu0 0.0
        %1963 = vmatpush1.msra.mxu0 %v1961
        %1964 = vmatprep.subr.mxu0 0.0
        %1965 = vmatpush1.msra.mxu0 %v1960
        %1966 = vmatprep.subr.mxu0 0.0
        %1967 = vmatpush1.msra.mxu0 %v1959
        %1968 = vmatprep.subr.mxu0 0.0
        %1969 = vmatpush1.msra.mxu0 %v1958
        %1970 = vmatprep.subr.mxu0 0.0
        %1971 = vmatpush1.msra.mxu0 %v1957
        %1972 = vmatprep.subr.mxu0 0.0
        %1973 = vmatpush1.msra.mxu0 %v1956
        %1974 = vmatprep.subr.mxu0 0.0
        %1975 = vmatpush1.msra.mxu0 %v1955
        %1976 = vmatprep.subr.mxu0 0.0
        %1977 = vmatpush1.msra.mxu0 %v1954
        %1978 = vmatprep.subr.mxu0 0.0
        %1979 = vmatpush1.msra.mxu0 %v1953
        %1980 = vmatprep.subr.mxu0 0.0
        %1981 = vmatpush1.msra.mxu0 %v1952
        %1982 = vmatprep.subr.mxu0 0.0
        %1983 = vmatpush1.msra.mxu0 %v1951
        %1984 = vmatprep.subr.mxu0 0.0
        %1985 = vmatpush1.msra.mxu0 %v1950
        %1986 = vmatprep.subr.mxu0 0.0
        %1987 = vmatpush1.msra.mxu0 %v1949
        %1988 = vmatprep.subr.mxu0 0.0
        %1989 = vmatpush1.msra.mxu0 %v1948
        %1990 = vmatprep.subr.mxu0 0.0
        %1991 = vmatpush1.msra.mxu0 %v1947
        %1992 = vmatprep.subr.mxu0 0.0
        %1993 = vmatpush1.msra.mxu0 %v1946
        %1994 = vmatprep.subr.mxu0 0.0
        %1995 = vmatpush2.msra.mxu0 0.0
        %1996 = vmatprep.subr.mxu0 0.0
        %1997 = vmatpush2.msra.mxu0 0.0
        %1998 = vmatprep.subr.mxu0 0.0
        %1999 = vmatpush2.msra.mxu0 0.0
        %2000 = vmatprep.subr.mxu0 0.0
        %2001 = vmatpush2.msra.mxu0 0.0
        %2002 = vmatprep.subr.mxu0 0.0
        %2003 = vmatpush2.msra.mxu0 0.0
        %2004 = vmatprep.subr.mxu0 0.0
        %2005 = vmatpush2.msra.mxu0 0.0
        %2006 = vmatprep.subr.mxu0 0.0
        %2007 = vmatpush2.msra.mxu0 0.0
        %2008 = vmatprep.subr.mxu0 0.0
        %2009 = vmatpush2.msra.mxu0 0.0
        %2010 = vmatprep.subr.mxu0 0.0
        %2011 = vmatpush2.msra.mxu0 0.0
        %2012 = vmatprep.subr.mxu0 0.0
        %2013 = vmatpush2.msra.mxu0 0.0
        %2014 = vmatprep.subr.mxu0 0.0
        %2015 = vmatpush2.msra.mxu0 0.0
        %2016 = vmatprep.subr.mxu0 0.0
        %2017 = vmatpush2.msra.mxu0 0.0
        %2018 = vmatprep.subr.mxu0 0.0
        %2019 = vmatpush2.msra.mxu0 0.0
        %2020 = vmatprep.subr.mxu0 0.0
        %2021 = vmatpush2.msra.mxu0 0.0
        %2022 = vmatprep.subr.mxu0 0.0
        %2023 = vmatpush2.msra.mxu0 0.0
        %2024 = vmatprep.subr.mxu0 0.0
        %2025 = vmatpush2.msra.mxu0 0.0
        %2026 = vmatprep.mubr.f32.mxu0 0.0
        %2027 = vmatmul.mubr.f32.gmra.mxu0 %v1942
        %v2028 = vpop.f32.mrf.mxu0
        %v2029 = vadd.f32 0.0, %v2028
        %v2030 = vpop.f32.mrf.mxu0
        %2031 = vdwg.mxu0
        %2032 = vmatprep.subr.mxu0 0.0
        %2033 = vmatpush1.msra.mxu0 %v1788
        %2034 = vmatprep.subr.mxu0 0.0
        %2035 = vmatpush1.msra.mxu0 %v1787
        %2036 = vmatprep.subr.mxu0 0.0
        %2037 = vmatpush1.msra.mxu0 %v1786
        %2038 = vmatprep.subr.mxu0 0.0
        %2039 = vmatpush1.msra.mxu0 %v1785
        %2040 = vmatprep.subr.mxu0 0.0
        %2041 = vmatpush1.msra.mxu0 %v1784
        %2042 = vmatprep.subr.mxu0 0.0
        %2043 = vmatpush1.msra.mxu0 %v1783
        %2044 = vmatprep.subr.mxu0 0.0
        %2045 = vmatpush1.msra.mxu0 %v1782
        %2046 = vmatprep.subr.mxu0 0.0
        %2047 = vmatpush1.msra.mxu0 %v1781
        %2048 = vmatprep.subr.mxu0 0.0
        %2049 = vmatpush1.msra.mxu0 %v1780
        %2050 = vmatprep.subr.mxu0 0.0
        %2051 = vmatpush1.msra.mxu0 %v1779
        %2052 = vmatprep.subr.mxu0 0.0
        %2053 = vmatpush1.msra.mxu0 %v1778
        %2054 = vmatprep.subr.mxu0 0.0
        %2055 = vmatpush1.msra.mxu0 %v1777
        %2056 = vmatprep.subr.mxu0 0.0
        %2057 = vmatpush1.msra.mxu0 %v1776
        %2058 = vmatprep.subr.mxu0 0.0
        %2059 = vmatpush1.msra.mxu0 %v1775
        %2060 = vmatprep.subr.mxu0 0.0
        %2061 = vmatpush1.msra.mxu0 %v1774
        %2062 = vmatprep.subr.mxu0 0.0
        %2063 = vmatpush1.msra.mxu0 %v1773
        %2064 = vmatprep.subr.mxu0 0.0
        %2065 = vmatpush2.msra.mxu0 0.0
        %2066 = vmatprep.subr.mxu0 0.0
        %2067 = vmatpush2.msra.mxu0 0.0
        %2068 = vmatprep.subr.mxu0 0.0
        %2069 = vmatpush2.msra.mxu0 0.0
        %2070 = vmatprep.subr.mxu0 0.0
        %2071 = vmatpush2.msra.mxu0 0.0
        %2072 = vmatprep.subr.mxu0 0.0
        %2073 = vmatpush2.msra.mxu0 0.0
        %2074 = vmatprep.subr.mxu0 0.0
        %2075 = vmatpush2.msra.mxu0 0.0
        %2076 = vmatprep.subr.mxu0 0.0
        %2077 = vmatpush2.msra.mxu0 0.0
        %2078 = vmatprep.subr.mxu0 0.0
        %2079 = vmatpush2.msra.mxu0 0.0
        %2080 = vmatprep.subr.mxu0 0.0
        %2081 = vmatpush2.msra.mxu0 0.0
        %2082 = vmatprep.subr.mxu0 0.0
        %2083 = vmatpush2.msra.mxu0 0.0
        %2084 = vmatprep.subr.mxu0 0.0
        %2085 = vmatpush2.msra.mxu0 0.0
        %2086 = vmatprep.subr.mxu0 0.0
        %2087 = vmatpush2.msra.mxu0 0.0
        %2088 = vmatprep.subr.mxu0 0.0
        %2089 = vmatpush2.msra.mxu0 0.0
        %2090 = vmatprep.subr.mxu0 0.0
        %2091 = vmatpush2.msra.mxu0 0.0
        %2092 = vmatprep.subr.mxu0 0.0
        %2093 = vmatpush2.msra.mxu0 0.0
        %2094 = vmatprep.subr.mxu0 0.0
        %2095 = vmatpush2.msra.mxu0 0.0
        %2096 = vmatprep.mubr.f32.mxu0 0.0
        %2097 = vmatmul.mubr.f32.gmra.mxu0 %v1770
        %v2098 = vpop.f32.mrf.mxu0
        %v2099 = vadd.f32 %v2029, %v2098
        %v2100 = vpop.f32.mrf.mxu0
        %2101 = vdwg.mxu0
        %2102 = vmatprep.subr.mxu0 0.0
        %2103 = vmatpush1.xpose.msra.mxu0 0.0
        %2104 = vmatprep.subr.mxu0 0.0
        %2105 = vmatpush1.xpose.msra.mxu0 0.0
        %2106 = vmatprep.subr.mxu0 0.0
        %2107 = vmatpush1.xpose.msra.mxu0 0.0
        %2108 = vmatprep.subr.mxu0 0.0
        %2109 = vmatpush1.xpose.msra.mxu0 0.0
        %2110 = vmatprep.subr.mxu0 0.0
        %2111 = vmatpush1.xpose.msra.mxu0 0.0
        %2112 = vmatprep.subr.mxu0 0.0
        %2113 = vmatpush1.xpose.msra.mxu0 0.0
        %2114 = vmatprep.subr.mxu0 0.0
        %2115 = vmatpush1.xpose.msra.mxu0 0.0
        %2116 = vmatprep.subr.mxu0 0.0
        %2117 = vmatpush1.xpose.msra.mxu0 0.0
        %2118 = vmatprep.subr.mxu0 0.0
        %2119 = vmatpush1.xpose.msra.mxu0 0.0
        %2120 = vmatprep.subr.mxu0 0.0
        %2121 = vmatpush1.xpose.msra.mxu0 0.0
        %2122 = vmatprep.subr.mxu0 0.0
        %2123 = vmatpush1.xpose.msra.mxu0 0.0
        %2124 = vmatprep.subr.mxu0 0.0
        %2125 = vmatpush1.xpose.msra.mxu0 0.0
        %2126 = vmatprep.subr.mxu0 0.0
        %2127 = vmatpush1.xpose.msra.mxu0 0.0
        %2128 = vmatprep.subr.mxu0 0.0
        %2129 = vmatpush1.xpose.msra.mxu0 0.0
        %2130 = vmatprep.subr.mxu0 0.0
        %2131 = vmatpush1.xpose.msra.mxu0 0.0
        %2132 = vmatprep.subr.mxu0 0.0
        %2133 = vmatpush1.xpose.msra.mxu0 %v1470
        %2134 = vmatprep.subr.mxu0 0.0
        %2135 = vmatpush2.xpose.msra.mxu0 0.0
        %2136 = vmatprep.subr.mxu0 0.0
        %2137 = vmatpush2.xpose.msra.mxu0 0.0
        %2138 = vmatprep.subr.mxu0 0.0
        %2139 = vmatpush2.xpose.msra.mxu0 0.0
        %2140 = vmatprep.subr.mxu0 0.0
        %2141 = vmatpush2.xpose.msra.mxu0 0.0
        %2142 = vmatprep.subr.mxu0 0.0
        %2143 = vmatpush2.xpose.msra.mxu0 0.0
        %2144 = vmatprep.subr.mxu0 0.0
        %2145 = vmatpush2.xpose.msra.mxu0 0.0
        %2146 = vmatprep.subr.mxu0 0.0
        %2147 = vmatpush2.xpose.msra.mxu0 0.0
        %2148 = vmatprep.subr.mxu0 0.0
        %2149 = vmatpush2.xpose.msra.mxu0 0.0
        %2150 = vmatprep.subr.mxu0 0.0
        %2151 = vmatpush2.xpose.msra.mxu0 0.0
        %2152 = vmatprep.subr.mxu0 0.0
        %2153 = vmatpush2.xpose.msra.mxu0 0.0
        %2154 = vmatprep.subr.mxu0 0.0
        %2155 = vmatpush2.xpose.msra.mxu0 0.0
        %2156 = vmatprep.subr.mxu0 0.0
        %2157 = vmatpush2.xpose.msra.mxu0 0.0
        %2158 = vmatprep.subr.mxu0 0.0
        %2159 = vmatpush2.xpose.msra.mxu0 0.0
        %2160 = vmatprep.subr.mxu0 0.0
        %2161 = vmatpush2.xpose.msra.mxu0 0.0
        %2162 = vmatprep.subr.mxu0 0.0
        %2163 = vmatpush2.xpose.msra.mxu0 0.0
        %2164 = vmatprep.subr.mxu0 0.0
        %2165 = vmatpush2.xpose.msra.mxu0 0.0
        %2166 = vmatprep.mubr.f32.mxu0 0.0
        %2167 = vmatmul.mubr.f32.gmra.mxu0 %v1328
        %v2168 = vpop.f32.mrf.mxu0
        %v2169 = vadd.f32 0.0, %v2168
        %v2170 = vpop.f32.mrf.mxu0
        %2171 = vdwg.mxu0
        %v2172 = vmul.f32 %v2169, 0.35355338
        %v2173 = vsel %vm933, %v2172, -1e+30
        %v2174 = vsel %vm1688, %v2173, -inf
        %2175 = vmax.xlane.f32.xlu0 %v2174
        %v2176 = vpop.xlane.xlu0 %2175
        %v2177 = vsub.f32 %v2173, %v2176
        %v2178 = vmul.f32 %v2177, 1.442695
        %v2179 = vpow.pop %v2178
        %v2180 = vsel %vm1688, %v2179, 0.0
        %2181 = vadd.xlane.f32.xlu0 %v2180
        %v2182 = vpop.xlane.xlu0 %2181
        %v2183 = vrcp.pop %v2182
        %v2184 = vmul.f32 %v2179, %v2183
        %v2186 = vsel %vm1688, %v2184, 0
        %2188 = vmatprep.subr.mxu0 0.0
        %2189 = vmatpush1.msra.mxu0 0.0
        %2190 = vmatprep.subr.mxu0 0.0
        %2191 = vmatpush1.msra.mxu0 0.0
        %2192 = vmatprep.subr.mxu0 0.0
        %2193 = vmatpush1.msra.mxu0 0.0
        %2194 = vmatprep.subr.mxu0 0.0
        %2195 = vmatpush1.msra.mxu0 0.0
        %2196 = vmatprep.subr.mxu0 0.0
        %2197 = vmatpush1.msra.mxu0 0.0
        %2198 = vmatprep.subr.mxu0 0.0
        %2199 = vmatpush1.msra.mxu0 0.0
        %2200 = vmatprep.subr.mxu0 0.0
        %2201 = vmatpush1.msra.mxu0 0.0
        %2202 = vmatprep.subr.mxu0 0.0
        %2203 = vmatpush1.msra.mxu0 0.0
        %2204 = vmatprep.subr.mxu0 0.0
        %2205 = vmatpush1.msra.mxu0 0.0
        %2206 = vmatprep.subr.mxu0 0.0
        %2207 = vmatpush1.msra.mxu0 0.0
        %2208 = vmatprep.subr.mxu0 0.0
        %2209 = vmatpush1.msra.mxu0 0.0
        %2210 = vmatprep.subr.mxu0 0.0
        %2211 = vmatpush1.msra.mxu0 0.0
        %2212 = vmatprep.subr.mxu0 0.0
        %2213 = vmatpush1.msra.mxu0 0.0
        %2214 = vmatprep.subr.mxu0 0.0
        %2215 = vmatpush1.msra.mxu0 0.0
        %2216 = vmatprep.subr.mxu0 0.0
        %2217 = vmatpush1.msra.mxu0 0.0
        %2218 = vmatprep.subr.mxu0 0.0
        %2219 = vmatpush1.msra.mxu0 %v1612
        %2220 = vmatprep.subr.mxu0 0.0
        %2221 = vmatpush2.msra.mxu0 0.0
        %2222 = vmatprep.subr.mxu0 0.0
        %2223 = vmatpush2.msra.mxu0 0.0
        %2224 = vmatprep.subr.mxu0 0.0
        %2225 = vmatpush2.msra.mxu0 0.0
        %2226 = vmatprep.subr.mxu0 0.0
        %2227 = vmatpush2.msra.mxu0 0.0
        %2228 = vmatprep.subr.mxu0 0.0
        %2229 = vmatpush2.msra.mxu0 0.0
        %2230 = vmatprep.subr.mxu0 0.0
        %2231 = vmatpush2.msra.mxu0 0.0
        %2232 = vmatprep.subr.mxu0 0.0
        %2233 = vmatpush2.msra.mxu0 0.0
        %2234 = vmatprep.subr.mxu0 0.0
        %2235 = vmatpush2.msra.mxu0 0.0
        %2236 = vmatprep.subr.mxu0 0.0
        %2237 = vmatpush2.msra.mxu0 0.0
        %2238 = vmatprep.subr.mxu0 0.0
        %2239 = vmatpush2.msra.mxu0 0.0
        %2240 = vmatprep.subr.mxu0 0.0
        %2241 = vmatpush2.msra.mxu0 0.0
        %2242 = vmatprep.subr.mxu0 0.0
        %2243 = vmatpush2.msra.mxu0 0.0
        %2244 = vmatprep.subr.mxu0 0.0
        %2245 = vmatpush2.msra.mxu0 0.0
        %2246 = vmatprep.subr.mxu0 0.0
        %2247 = vmatpush2.msra.mxu0 0.0
        %2248 = vmatprep.subr.mxu0 0.0
        %2249 = vmatpush2.msra.mxu0 0.0
        %2250 = vmatprep.subr.mxu0 0.0
        %2251 = vmatpush2.msra.mxu0 0.0
        %2252 = vmatprep.mubr.f32.mxu0 0.0
        %2253 = vmatmul.mubr.f32.gmra.mxu0 %v2186
        %v2254 = vpop.f32.mrf.mxu0
        %v2255 = vadd.f32 0.0, %v2254
        %v2256 = vpop.f32.mrf.mxu0
        %2257 = vdwg.mxu0
        %s2258 = scalar_lea.vmem [#allocation13], 256
        %v2259 = vld [vmem:[%s2258] sm:$0xff]
        %v2260 = vld [vmem:[%s2258 + $0x8] sm:$0xff]
        %v2261 = vld [vmem:[%s2258 + $0x10] sm:$0xff]
        %v2262 = vld [vmem:[%s2258 + $0x18] sm:$0xff]
        %v2263 = vld [vmem:[%s2258 + $0x20] sm:$0xff]
        %v2264 = vld [vmem:[%s2258 + $0x28] sm:$0xff]
        %v2265 = vld [vmem:[%s2258 + $0x30] sm:$0xff]
        %v2266 = vld [vmem:[%s2258 + $0x38] sm:$0xff]
        %v2267 = vld [vmem:[%s2258 + $0x40] sm:$0xff]
        %v2268 = vld [vmem:[%s2258 + $0x48] sm:$0xff]
        %v2269 = vld [vmem:[%s2258 + $0x50] sm:$0xff]
        %v2270 = vld [vmem:[%s2258 + $0x58] sm:$0xff]
        %v2271 = vld [vmem:[%s2258 + $0x60] sm:$0xff]
        %v2272 = vld [vmem:[%s2258 + $0x68] sm:$0xff]
        %v2273 = vld [vmem:[%s2258 + $0x70] sm:$0xff]
        %v2274 = vld [vmem:[%s2258 + $0x78] sm:$0xff]
        %2275 = vmatprep.subr.mxu0 0.0
        %2276 = vmatpush1.msra.mxu0 %v2274
        %2277 = vmatprep.subr.mxu0 0.0
        %2278 = vmatpush1.msra.mxu0 %v2273
        %2279 = vmatprep.subr.mxu0 0.0
        %2280 = vmatpush1.msra.mxu0 %v2272
        %2281 = vmatprep.subr.mxu0 0.0
        %2282 = vmatpush1.msra.mxu0 %v2271
        %2283 = vmatprep.subr.mxu0 0.0
        %2284 = vmatpush1.msra.mxu0 %v2270
        %2285 = vmatprep.subr.mxu0 0.0
        %2286 = vmatpush1.msra.mxu0 %v2269
        %2287 = vmatprep.subr.mxu0 0.0
        %2288 = vmatpush1.msra.mxu0 %v2268
        %2289 = vmatprep.subr.mxu0 0.0
        %2290 = vmatpush1.msra.mxu0 %v2267
        %2291 = vmatprep.subr.mxu0 0.0
        %2292 = vmatpush1.msra.mxu0 %v2266
        %2293 = vmatprep.subr.mxu0 0.0
        %2294 = vmatpush1.msra.mxu0 %v2265
        %2295 = vmatprep.subr.mxu0 0.0
        %2296 = vmatpush1.msra.mxu0 %v2264
        %2297 = vmatprep.subr.mxu0 0.0
        %2298 = vmatpush1.msra.mxu0 %v2263
        %2299 = vmatprep.subr.mxu0 0.0
        %2300 = vmatpush1.msra.mxu0 %v2262
        %2301 = vmatprep.subr.mxu0 0.0
        %2302 = vmatpush1.msra.mxu0 %v2261
        %2303 = vmatprep.subr.mxu0 0.0
        %2304 = vmatpush1.msra.mxu0 %v2260
        %2305 = vmatprep.subr.mxu0 0.0
        %2306 = vmatpush1.msra.mxu0 %v2259
        %2307 = vmatprep.subr.mxu0 0.0
        %2308 = vmatpush2.msra.mxu0 0.0
        %2309 = vmatprep.subr.mxu0 0.0
        %2310 = vmatpush2.msra.mxu0 0.0
        %2311 = vmatprep.subr.mxu0 0.0
        %2312 = vmatpush2.msra.mxu0 0.0
        %2313 = vmatprep.subr.mxu0 0.0
        %2314 = vmatpush2.msra.mxu0 0.0
        %2315 = vmatprep.subr.mxu0 0.0
        %2316 = vmatpush2.msra.mxu0 0.0
        %2317 = vmatprep.subr.mxu0 0.0
        %2318 = vmatpush2.msra.mxu0 0.0
        %2319 = vmatprep.subr.mxu0 0.0
        %2320 = vmatpush2.msra.mxu0 0.0
        %2321 = vmatprep.subr.mxu0 0.0
        %2322 = vmatpush2.msra.mxu0 0.0
        %2323 = vmatprep.subr.mxu0 0.0
        %2324 = vmatpush2.msra.mxu0 0.0
        %2325 = vmatprep.subr.mxu0 0.0
        %2326 = vmatpush2.msra.mxu0 0.0
        %2327 = vmatprep.subr.mxu0 0.0
        %2328 = vmatpush2.msra.mxu0 0.0
        %2329 = vmatprep.subr.mxu0 0.0
        %2330 = vmatpush2.msra.mxu0 0.0
        %2331 = vmatprep.subr.mxu0 0.0
        %2332 = vmatpush2.msra.mxu0 0.0
        %2333 = vmatprep.subr.mxu0 0.0
        %2334 = vmatpush2.msra.mxu0 0.0
        %2335 = vmatprep.subr.mxu0 0.0
        %2336 = vmatpush2.msra.mxu0 0.0
        %2337 = vmatprep.subr.mxu0 0.0
        %2338 = vmatpush2.msra.mxu0 0.0
        %2339 = vmatprep.mubr.f32.mxu0 0.0
        %2340 = vmatmul.mubr.f32.gmra.mxu0 %v2255
        %v2341 = vpop.f32.mrf.mxu0
        %v2342 = vadd.f32 0.0, %v2341
        %v2343 = vpop.f32.mrf.mxu0
        %2344 = vdwg.mxu0
        %v2345 = vadd.f32 %v2099, %v2342
        %2346 = vmatprep.subr.mxu0 0.0
        %2347 = vmatpush1.xpose.msra.mxu0 0.0
        %2348 = vmatprep.subr.mxu0 0.0
        %2349 = vmatpush1.xpose.msra.mxu0 0.0
        %2350 = vmatprep.subr.mxu0 0.0
        %2351 = vmatpush1.xpose.msra.mxu0 0.0
        %2352 = vmatprep.subr.mxu0 0.0
        %2353 = vmatpush1.xpose.msra.mxu0 0.0
        %2354 = vmatprep.subr.mxu0 0.0
        %2355 = vmatpush1.xpose.msra.mxu0 0.0
        %2356 = vmatprep.subr.mxu0 0.0
        %2357 = vmatpush1.xpose.msra.mxu0 0.0
        %2358 = vmatprep.subr.mxu0 0.0
        %2359 = vmatpush1.xpose.msra.mxu0 0.0
        %2360 = vmatprep.subr.mxu0 0.0
        %2361 = vmatpush1.xpose.msra.mxu0 0.0
        %2362 = vmatprep.subr.mxu0 0.0
        %2363 = vmatpush1.xpose.msra.mxu0 0.0
        %2364 = vmatprep.subr.mxu0 0.0
        %2365 = vmatpush1.xpose.msra.mxu0 0.0
        %2366 = vmatprep.subr.mxu0 0.0
        %2367 = vmatpush1.xpose.msra.mxu0 0.0
        %2368 = vmatprep.subr.mxu0 0.0
        %2369 = vmatpush1.xpose.msra.mxu0 0.0
        %2370 = vmatprep.subr.mxu0 0.0
        %2371 = vmatpush1.xpose.msra.mxu0 0.0
        %2372 = vmatprep.subr.mxu0 0.0
        %2373 = vmatpush1.xpose.msra.mxu0 0.0
        %2374 = vmatprep.subr.mxu0 0.0
        %2375 = vmatpush1.xpose.msra.mxu0 0.0
        %2376 = vmatprep.subr.mxu0 0.0
        %2377 = vmatpush1.xpose.msra.mxu0 %v1472
        %2378 = vmatprep.subr.mxu0 0.0
        %2379 = vmatpush2.xpose.msra.mxu0 0.0
        %2380 = vmatprep.subr.mxu0 0.0
        %2381 = vmatpush2.xpose.msra.mxu0 0.0
        %2382 = vmatprep.subr.mxu0 0.0
        %2383 = vmatpush2.xpose.msra.mxu0 0.0
        %2384 = vmatprep.subr.mxu0 0.0
        %2385 = vmatpush2.xpose.msra.mxu0 0.0
        %2386 = vmatprep.subr.mxu0 0.0
        %2387 = vmatpush2.xpose.msra.mxu0 0.0
        %2388 = vmatprep.subr.mxu0 0.0
        %2389 = vmatpush2.xpose.msra.mxu0 0.0
        %2390 = vmatprep.subr.mxu0 0.0
        %2391 = vmatpush2.xpose.msra.mxu0 0.0
        %2392 = vmatprep.subr.mxu0 0.0
        %2393 = vmatpush2.xpose.msra.mxu0 0.0
        %2394 = vmatprep.subr.mxu0 0.0
        %2395 = vmatpush2.xpose.msra.mxu0 0.0
        %2396 = vmatprep.subr.mxu0 0.0
        %2397 = vmatpush2.xpose.msra.mxu0 0.0
        %2398 = vmatprep.subr.mxu0 0.0
        %2399 = vmatpush2.xpose.msra.mxu0 0.0
        %2400 = vmatprep.subr.mxu0 0.0
        %2401 = vmatpush2.xpose.msra.mxu0 0.0
        %2402 = vmatprep.subr.mxu0 0.0
        %2403 = vmatpush2.xpose.msra.mxu0 0.0
        %2404 = vmatprep.subr.mxu0 0.0
        %2405 = vmatpush2.xpose.msra.mxu0 0.0
        %2406 = vmatprep.subr.mxu0 0.0
        %2407 = vmatpush2.xpose.msra.mxu0 0.0
        %2408 = vmatprep.subr.mxu0 0.0
        %2409 = vmatpush2.xpose.msra.mxu0 0.0
        %2410 = vmatprep.mubr.f32.mxu0 0.0
        %2411 = vmatmul.mubr.f32.gmra.mxu0 %v1330
        %v2412 = vpop.f32.mrf.mxu0
        %v2413 = vadd.f32 0.0, %v2412
        %v2414 = vpop.f32.mrf.mxu0
        %2415 = vdwg.mxu0
        %v2416 = vmul.f32 %v2413, 0.35355338
        %v2417 = vsel %vm933, %v2416, -1e+30
        %v2418 = vsel %vm1688, %v2417, -inf
        %2419 = vmax.xlane.f32.xlu0 %v2418
        %v2420 = vpop.xlane.xlu0 %2419
        %v2421 = vsub.f32 %v2417, %v2420
        %v2422 = vmul.f32 %v2421, 1.442695
        %v2423 = vpow.pop %v2422
        %v2424 = vsel %vm1688, %v2423, 0.0
        %2425 = vadd.xlane.f32.xlu0 %v2424
        %v2426 = vpop.xlane.xlu0 %2425
        %v2427 = vrcp.pop %v2426
        %v2428 = vmul.f32 %v2423, %v2427
        %v2430 = vsel %vm1688, %v2428, 0
        %2432 = vmatprep.subr.mxu0 0.0
        %2433 = vmatpush1.msra.mxu0 0.0
        %2434 = vmatprep.subr.mxu0 0.0
        %2435 = vmatpush1.msra.mxu0 0.0
        %2436 = vmatprep.subr.mxu0 0.0
        %2437 = vmatpush1.msra.mxu0 0.0
        %2438 = vmatprep.subr.mxu0 0.0
        %2439 = vmatpush1.msra.mxu0 0.0
        %2440 = vmatprep.subr.mxu0 0.0
        %2441 = vmatpush1.msra.mxu0 0.0
        %2442 = vmatprep.subr.mxu0 0.0
        %2443 = vmatpush1.msra.mxu0 0.0
        %2444 = vmatprep.subr.mxu0 0.0
        %2445 = vmatpush1.msra.mxu0 0.0
        %2446 = vmatprep.subr.mxu0 0.0
        %2447 = vmatpush1.msra.mxu0 0.0
        %2448 = vmatprep.subr.mxu0 0.0
        %2449 = vmatpush1.msra.mxu0 0.0
        %2450 = vmatprep.subr.mxu0 0.0
        %2451 = vmatpush1.msra.mxu0 0.0
        %2452 = vmatprep.subr.mxu0 0.0
        %2453 = vmatpush1.msra.mxu0 0.0
        %2454 = vmatprep.subr.mxu0 0.0
        %2455 = vmatpush1.msra.mxu0 0.0
        %2456 = vmatprep.subr.mxu0 0.0
        %2457 = vmatpush1.msra.mxu0 0.0
        %2458 = vmatprep.subr.mxu0 0.0
        %2459 = vmatpush1.msra.mxu0 0.0
        %2460 = vmatprep.subr.mxu0 0.0
        %2461 = vmatpush1.msra.mxu0 0.0
        %2462 = vmatprep.subr.mxu0 0.0
        %2463 = vmatpush1.msra.mxu0 %v1614
        %2464 = vmatprep.subr.mxu0 0.0
        %2465 = vmatpush2.msra.mxu0 0.0
        %2466 = vmatprep.subr.mxu0 0.0
        %2467 = vmatpush2.msra.mxu0 0.0
        %2468 = vmatprep.subr.mxu0 0.0
        %2469 = vmatpush2.msra.mxu0 0.0
        %2470 = vmatprep.subr.mxu0 0.0
        %2471 = vmatpush2.msra.mxu0 0.0
        %2472 = vmatprep.subr.mxu0 0.0
        %2473 = vmatpush2.msra.mxu0 0.0
        %2474 = vmatprep.subr.mxu0 0.0
        %2475 = vmatpush2.msra.mxu0 0.0
        %2476 = vmatprep.subr.mxu0 0.0
        %2477 = vmatpush2.msra.mxu0 0.0
        %2478 = vmatprep.subr.mxu0 0.0
        %2479 = vmatpush2.msra.mxu0 0.0
        %2480 = vmatprep.subr.mxu0 0.0
        %2481 = vmatpush2.msra.mxu0 0.0
        %2482 = vmatprep.subr.mxu0 0.0
        %2483 = vmatpush2.msra.mxu0 0.0
        %2484 = vmatprep.subr.mxu0 0.0
        %2485 = vmatpush2.msra.mxu0 0.0
        %2486 = vmatprep.subr.mxu0 0.0
        %2487 = vmatpush2.msra.mxu0 0.0
        %2488 = vmatprep.subr.mxu0 0.0
        %2489 = vmatpush2.msra.mxu0 0.0
        %2490 = vmatprep.subr.mxu0 0.0
        %2491 = vmatpush2.msra.mxu0 0.0
        %2492 = vmatprep.subr.mxu0 0.0
        %2493 = vmatpush2.msra.mxu0 0.0
        %2494 = vmatprep.subr.mxu0 0.0
        %2495 = vmatpush2.msra.mxu0 0.0
        %2496 = vmatprep.mubr.f32.mxu0 0.0
        %2497 = vmatmul.mubr.f32.gmra.mxu0 %v2430
        %v2498 = vpop.f32.mrf.mxu0
        %v2499 = vadd.f32 0.0, %v2498
        %v2500 = vpop.f32.mrf.mxu0
        %2501 = vdwg.mxu0
        %s2502 = scalar_lea.vmem [#allocation13], 384
        %v2503 = vld [vmem:[%s2502] sm:$0xff]
        %v2504 = vld [vmem:[%s2502 + $0x8] sm:$0xff]
        %v2505 = vld [vmem:[%s2502 + $0x10] sm:$0xff]
        %v2506 = vld [vmem:[%s2502 + $0x18] sm:$0xff]
        %v2507 = vld [vmem:[%s2502 + $0x20] sm:$0xff]
        %v2508 = vld [vmem:[%s2502 + $0x28] sm:$0xff]
        %v2509 = vld [vmem:[%s2502 + $0x30] sm:$0xff]
        %v2510 = vld [vmem:[%s2502 + $0x38] sm:$0xff]
        %v2511 = vld [vmem:[%s2502 + $0x40] sm:$0xff]
        %v2512 = vld [vmem:[%s2502 + $0x48] sm:$0xff]
        %v2513 = vld [vmem:[%s2502 + $0x50] sm:$0xff]
        %v2514 = vld [vmem:[%s2502 + $0x58] sm:$0xff]
        %v2515 = vld [vmem:[%s2502 + $0x60] sm:$0xff]
        %v2516 = vld [vmem:[%s2502 + $0x68] sm:$0xff]
        %v2517 = vld [vmem:[%s2502 + $0x70] sm:$0xff]
        %v2518 = vld [vmem:[%s2502 + $0x78] sm:$0xff]
        %2519 = vmatprep.subr.mxu0 0.0
        %2520 = vmatpush1.msra.mxu0 %v2518
        %2521 = vmatprep.subr.mxu0 0.0
        %2522 = vmatpush1.msra.mxu0 %v2517
        %2523 = vmatprep.subr.mxu0 0.0
        %2524 = vmatpush1.msra.mxu0 %v2516
        %2525 = vmatprep.subr.mxu0 0.0
        %2526 = vmatpush1.msra.mxu0 %v2515
        %2527 = vmatprep.subr.mxu0 0.0
        %2528 = vmatpush1.msra.mxu0 %v2514
        %2529 = vmatprep.subr.mxu0 0.0
        %2530 = vmatpush1.msra.mxu0 %v2513
        %2531 = vmatprep.subr.mxu0 0.0
        %2532 = vmatpush1.msra.mxu0 %v2512
        %2533 = vmatprep.subr.mxu0 0.0
        %2534 = vmatpush1.msra.mxu0 %v2511
        %2535 = vmatprep.subr.mxu0 0.0
        %2536 = vmatpush1.msra.mxu0 %v2510
        %2537 = vmatprep.subr.mxu0 0.0
        %2538 = vmatpush1.msra.mxu0 %v2509
        %2539 = vmatprep.subr.mxu0 0.0
        %2540 = vmatpush1.msra.mxu0 %v2508
        %2541 = vmatprep.subr.mxu0 0.0
        %2542 = vmatpush1.msra.mxu0 %v2507
        %2543 = vmatprep.subr.mxu0 0.0
        %2544 = vmatpush1.msra.mxu0 %v2506
        %2545 = vmatprep.subr.mxu0 0.0
        %2546 = vmatpush1.msra.mxu0 %v2505
        %2547 = vmatprep.subr.mxu0 0.0
        %2548 = vmatpush1.msra.mxu0 %v2504
        %2549 = vmatprep.subr.mxu0 0.0
        %2550 = vmatpush1.msra.mxu0 %v2503
        %2551 = vmatprep.subr.mxu0 0.0
        %2552 = vmatpush2.msra.mxu0 0.0
        %2553 = vmatprep.subr.mxu0 0.0
        %2554 = vmatpush2.msra.mxu0 0.0
        %2555 = vmatprep.subr.mxu0 0.0
        %2556 = vmatpush2.msra.mxu0 0.0
        %2557 = vmatprep.subr.mxu0 0.0
        %2558 = vmatpush2.msra.mxu0 0.0
        %2559 = vmatprep.subr.mxu0 0.0
        %2560 = vmatpush2.msra.mxu0 0.0
        %2561 = vmatprep.subr.mxu0 0.0
        %2562 = vmatpush2.msra.mxu0 0.0
        %2563 = vmatprep.subr.mxu0 0.0
        %2564 = vmatpush2.msra.mxu0 0.0
        %2565 = vmatprep.subr.mxu0 0.0
        %2566 = vmatpush2.msra.mxu0 0.0
        %2567 = vmatprep.subr.mxu0 0.0
        %2568 = vmatpush2.msra.mxu0 0.0
        %2569 = vmatprep.subr.mxu0 0.0
        %2570 = vmatpush2.msra.mxu0 0.0
        %2571 = vmatprep.subr.mxu0 0.0
        %2572 = vmatpush2.msra.mxu0 0.0
        %2573 = vmatprep.subr.mxu0 0.0
        %2574 = vmatpush2.msra.mxu0 0.0
        %2575 = vmatprep.subr.mxu0 0.0
        %2576 = vmatpush2.msra.mxu0 0.0
        %2577 = vmatprep.subr.mxu0 0.0
        %2578 = vmatpush2.msra.mxu0 0.0
        %2579 = vmatprep.subr.mxu0 0.0
        %2580 = vmatpush2.msra.mxu0 0.0
        %2581 = vmatprep.subr.mxu0 0.0
        %2582 = vmatpush2.msra.mxu0 0.0
        %2583 = vmatprep.mubr.f32.mxu0 0.0
        %2584 = vmatmul.mubr.f32.gmra.mxu0 %v2499
        %v2585 = vpop.f32.mrf.mxu0
        %v2586 = vadd.f32 0.0, %v2585
        %v2587 = vpop.f32.mrf.mxu0
        %2588 = vdwg.mxu0
        %v2589 = vadd.f32 %v2345, %v2586
        %v2590 = vld [vmem:[#allocation14] sm:$0x1]
        %v2592 = vlaneseq
        %v2593 = vshrl.u32 %v2592, 7
        %v2594 = vsub.s32 0, %v2593
        %v2595 = vrot.slane %v2590, %v2594
        %v2597 = vadd.f32 %v2589, %v2595
        %v2598 = vadd.f32 %v928, %v2597
        %v2599 = vld [vmem:[#allocation16] sm:$0x1]
        %v2600 = vld [vmem:[#allocation17] sm:$0x1]
        %2601 = vadd.xlane.f32.xlu0 %v2598
        %v2602 = vpop.xlane.xlu0 %2601
        %v2603 = vmul.f32 %v2602, 0.03125
        %vm2604 = vcmp.lt.s32.totalorder %v932, 32
        %v2605 = vsub.f32 %v2598, %v2603
        %v2606 = vsel %vm2604, %v2605, 0.0
        %v2607 = vmul.f32 %v2606, %v2606
        %2608 = vadd.xlane.f32.xlu0 %v2607
        %v2609 = vpop.xlane.xlu0 %2608
        %v2610 = vmul.f32 %v2609, 0.03125
        %v2611 = vadd.f32 %v2610, 1e-05
        %v2612 = vrsqrt.pop %v2611
        %v2613 = vmul.f32 %v2606, %v2612
        %v2615 = vlaneseq
        %v2616 = vshrl.u32 %v2615, 7
        %v2617 = vsub.s32 0, %v2616
        %v2618 = vrot.slane %v2599, %v2617
        %v2620 = vmul.f32 %v2613, %v2618
        %v2622 = vlaneseq
        %v2623 = vshrl.u32 %v2622, 7
        %v2624 = vsub.s32 0, %v2623
        %v2625 = vrot.slane %v2600, %v2624
        %v2627 = vadd.f32 %v2620, %v2625
        %v2628 = vld [vmem:[#allocation19] sm:$0xff]
        %v2629 = vld [vmem:[#allocation19 + $0x8] sm:$0xff]
        %v2630 = vld [vmem:[#allocation19 + $0x10] sm:$0xff]
        %v2631 = vld [vmem:[#allocation19 + $0x18] sm:$0xff]
        %v2632 = vld [vmem:[#allocation19 + $0x20] sm:$0xff]
        %v2633 = vld [vmem:[#allocation19 + $0x28] sm:$0xff]
        %v2634 = vld [vmem:[#allocation19 + $0x30] sm:$0xff]
        %v2635 = vld [vmem:[#allocation19 + $0x38] sm:$0xff]
        %v2636 = vld [vmem:[#allocation19 + $0x40] sm:$0xff]
        %v2637 = vld [vmem:[#allocation19 + $0x48] sm:$0xff]
        %v2638 = vld [vmem:[#allocation19 + $0x50] sm:$0xff]
        %v2639 = vld [vmem:[#allocation19 + $0x58] sm:$0xff]
        %v2640 = vld [vmem:[#allocation19 + $0x60] sm:$0xff]
        %v2641 = vld [vmem:[#allocation19 + $0x68] sm:$0xff]
        %v2642 = vld [vmem:[#allocation19 + $0x70] sm:$0xff]
        %v2643 = vld [vmem:[#allocation19 + $0x78] sm:$0xff]
        %v2644 = vld [vmem:[#allocation20] sm:$0x1]
        %v2646 = vlaneseq
        %v2647 = vshrl.u32 %v2646, 7
        %v2648 = vsub.s32 0, %v2647
        %v2649 = vrot.slane %v2644, %v2648
        %2651 = vmatprep.subr.mxu0 0.0
        %2652 = vmatpush1.msra.mxu0 %v2643
        %2653 = vmatprep.subr.mxu0 0.0
        %2654 = vmatpush1.msra.mxu0 %v2642
        %2655 = vmatprep.subr.mxu0 0.0
        %2656 = vmatpush1.msra.mxu0 %v2641
        %2657 = vmatprep.subr.mxu0 0.0
        %2658 = vmatpush1.msra.mxu0 %v2640
        %2659 = vmatprep.subr.mxu0 0.0
        %2660 = vmatpush1.msra.mxu0 %v2639
        %2661 = vmatprep.subr.mxu0 0.0
        %2662 = vmatpush1.msra.mxu0 %v2638
        %2663 = vmatprep.subr.mxu0 0.0
        %2664 = vmatpush1.msra.mxu0 %v2637
        %2665 = vmatprep.subr.mxu0 0.0
        %2666 = vmatpush1.msra.mxu0 %v2636
        %2667 = vmatprep.subr.mxu0 0.0
        %2668 = vmatpush1.msra.mxu0 %v2635
        %2669 = vmatprep.subr.mxu0 0.0
        %2670 = vmatpush1.msra.mxu0 %v2634
        %2671 = vmatprep.subr.mxu0 0.0
        %2672 = vmatpush1.msra.mxu0 %v2633
        %2673 = vmatprep.subr.mxu0 0.0
        %2674 = vmatpush1.msra.mxu0 %v2632
        %2675 = vmatprep.subr.mxu0 0.0
        %2676 = vmatpush1.msra.mxu0 %v2631
        %2677 = vmatprep.subr.mxu0 0.0
        %2678 = vmatpush1.msra.mxu0 %v2630
        %2679 = vmatprep.subr.mxu0 0.0
        %2680 = vmatpush1.msra.mxu0 %v2629
        %2681 = vmatprep.subr.mxu0 0.0
        %2682 = vmatpush1.msra.mxu0 %v2628
        %2683 = vmatprep.subr.mxu0 0.0
        %2684 = vmatpush2.msra.mxu0 0.0
        %2685 = vmatprep.subr.mxu0 0.0
        %2686 = vmatpush2.msra.mxu0 0.0
        %2687 = vmatprep.subr.mxu0 0.0
        %2688 = vmatpush2.msra.mxu0 0.0
        %2689 = vmatprep.subr.mxu0 0.0
        %2690 = vmatpush2.msra.mxu0 0.0
        %2691 = vmatprep.subr.mxu0 0.0
        %2692 = vmatpush2.msra.mxu0 0.0
        %2693 = vmatprep.subr.mxu0 0.0
        %2694 = vmatpush2.msra.mxu0 0.0
        %2695 = vmatprep.subr.mxu0 0.0
        %2696 = vmatpush2.msra.mxu0 0.0
        %2697 = vmatprep.subr.mxu0 0.0
        %2698 = vmatpush2.msra.mxu0 0.0
        %2699 = vmatprep.subr.mxu0 0.0
        %2700 = vmatpush2.msra.mxu0 0.0
        %2701 = vmatprep.subr.mxu0 0.0
        %2702 = vmatpush2.msra.mxu0 0.0
        %2703 = vmatprep.subr.mxu0 0.0
        %2704 = vmatpush2.msra.mxu0 0.0
        %2705 = vmatprep.subr.mxu0 0.0
        %2706 = vmatpush2.msra.mxu0 0.0
        %2707 = vmatprep.subr.mxu0 0.0
        %2708 = vmatpush2.msra.mxu0 0.0
        %2709 = vmatprep.subr.mxu0 0.0
        %2710 = vmatpush2.msra.mxu0 0.0
        %2711 = vmatprep.subr.mxu0 0.0
        %2712 = vmatpush2.msra.mxu0 0.0
        %2713 = vmatprep.subr.mxu0 0.0
        %2714 = vmatpush2.msra.mxu0 0.0
        %2715 = vmatprep.mubr.f32.mxu0 0.0
        %2716 = vmatmul.mubr.f32.gmra.mxu0 %v2627
        %v2717 = vpop.f32.mrf.mxu0
        %v2718 = vadd.f32 %v2649, %v2717
        %v2719 = vpop.f32.mrf.mxu0
        %2720 = vdwg.mxu0
        %v2721 = vmax.f32 %v2718, 0.0
        %v2722 = vld [vmem:[#allocation22] sm:$0xff]
        %v2723 = vld [vmem:[#allocation22 + $0x8] sm:$0xff]
        %v2724 = vld [vmem:[#allocation22 + $0x10] sm:$0xff]
        %v2725 = vld [vmem:[#allocation22 + $0x18] sm:$0xff]
        %v2726 = vld [vmem:[#allocation22 + $0x20] sm:$0xff]
        %v2727 = vld [vmem:[#allocation22 + $0x28] sm:$0xff]
        %v2728 = vld [vmem:[#allocation22 + $0x30] sm:$0xff]
        %v2729 = vld [vmem:[#allocation22 + $0x38] sm:$0xff]
        %v2730 = vld [vmem:[#allocation22 + $0x40] sm:$0xff]
        %v2731 = vld [vmem:[#allocation22 + $0x48] sm:$0xff]
        %v2732 = vld [vmem:[#allocation22 + $0x50] sm:$0xff]
        %v2733 = vld [vmem:[#allocation22 + $0x58] sm:$0xff]
        %v2734 = vld [vmem:[#allocation22 + $0x60] sm:$0xff]
        %v2735 = vld [vmem:[#allocation22 + $0x68] sm:$0xff]
        %v2736 = vld [vmem:[#allocation22 + $0x70] sm:$0xff]
        %v2737 = vld [vmem:[#allocation22 + $0x78] sm:$0xff]
        %v2738 = vld [vmem:[#allocation23] sm:$0x1]
        %v2740 = vlaneseq
        %v2741 = vshrl.u32 %v2740, 7
        %v2742 = vsub.s32 0, %v2741
        %v2743 = vrot.slane %v2738, %v2742
        %2745 = vmatprep.subr.mxu0 0.0
        %2746 = vmatpush1.msra.mxu0 %v2737
        %2747 = vmatprep.subr.mxu0 0.0
        %2748 = vmatpush1.msra.mxu0 %v2736
        %2749 = vmatprep.subr.mxu0 0.0
        %2750 = vmatpush1.msra.mxu0 %v2735
        %2751 = vmatprep.subr.mxu0 0.0
        %2752 = vmatpush1.msra.mxu0 %v2734
        %2753 = vmatprep.subr.mxu0 0.0
        %2754 = vmatpush1.msra.mxu0 %v2733
        %2755 = vmatprep.subr.mxu0 0.0
        %2756 = vmatpush1.msra.mxu0 %v2732
        %2757 = vmatprep.subr.mxu0 0.0
        %2758 = vmatpush1.msra.mxu0 %v2731
        %2759 = vmatprep.subr.mxu0 0.0
        %2760 = vmatpush1.msra.mxu0 %v2730
        %2761 = vmatprep.subr.mxu0 0.0
        %2762 = vmatpush1.msra.mxu0 %v2729
        %2763 = vmatprep.subr.mxu0 0.0
        %2764 = vmatpush1.msra.mxu0 %v2728
        %2765 = vmatprep.subr.mxu0 0.0
        %2766 = vmatpush1.msra.mxu0 %v2727
        %2767 = vmatprep.subr.mxu0 0.0
        %2768 = vmatpush1.msra.mxu0 %v2726
        %2769 = vmatprep.subr.mxu0 0.0
        %2770 = vmatpush1.msra.mxu0 %v2725
        %2771 = vmatprep.subr.mxu0 0.0
        %2772 = vmatpush1.msra.mxu0 %v2724
        %2773 = vmatprep.subr.mxu0 0.0
        %2774 = vmatpush1.msra.mxu0 %v2723
        %2775 = vmatprep.subr.mxu0 0.0
        %2776 = vmatpush1.msra.mxu0 %v2722
        %2777 = vmatprep.subr.mxu0 0.0
        %2778 = vmatpush2.msra.mxu0 0.0
        %2779 = vmatprep.subr.mxu0 0.0
        %2780 = vmatpush2.msra.mxu0 0.0
        %2781 = vmatprep.subr.mxu0 0.0
        %2782 = vmatpush2.msra.mxu0 0.0
        %2783 = vmatprep.subr.mxu0 0.0
        %2784 = vmatpush2.msra.mxu0 0.0
        %2785 = vmatprep.subr.mxu0 0.0
        %2786 = vmatpush2.msra.mxu0 0.0
        %2787 = vmatprep.subr.mxu0 0.0
        %2788 = vmatpush2.msra.mxu0 0.0
        %2789 = vmatprep.subr.mxu0 0.0
        %2790 = vmatpush2.msra.mxu0 0.0
        %2791 = vmatprep.subr.mxu0 0.0
        %2792 = vmatpush2.msra.mxu0 0.0
        %2793 = vmatprep.subr.mxu0 0.0
        %2794 = vmatpush2.msra.mxu0 0.0
        %2795 = vmatprep.subr.mxu0 0.0
        %2796 = vmatpush2.msra.mxu0 0.0
        %2797 = vmatprep.subr.mxu0 0.0
        %2798 = vmatpush2.msra.mxu0 0.0
        %2799 = vmatprep.subr.mxu0 0.0
        %2800 = vmatpush2.msra.mxu0 0.0
        %2801 = vmatprep.subr.mxu0 0.0
        %2802 = vmatpush2.msra.mxu0 0.0
        %2803 = vmatprep.subr.mxu0 0.0
        %2804 = vmatpush2.msra.mxu0 0.0
        %2805 = vmatprep.subr.mxu0 0.0
        %2806 = vmatpush2.msra.mxu0 0.0
        %2807 = vmatprep.subr.mxu0 0.0
        %2808 = vmatpush2.msra.mxu0 0.0
        %2809 = vmatprep.mubr.f32.mxu0 0.0
        %2810 = vmatmul.mubr.f32.gmra.mxu0 %v2721
        %v2811 = vpop.f32.mrf.mxu0
        %v2812 = vadd.f32 %v2743, %v2811
        %v2813 = vpop.f32.mrf.mxu0
        %2814 = vdwg.mxu0
        %v2815 = vadd.f32 %v2627, %v2812
        %v2816 = vld [vmem:[#allocation25] sm:$0x1]
        %v2817 = vld [vmem:[#allocation26] sm:$0x1]
        %2818 = vadd.xlane.f32.xlu0 %v2815
        %v2819 = vpop.xlane.xlu0 %2818
        %v2820 = vmul.f32 %v2819, 0.03125
        %v2821 = vsub.f32 %v2815, %v2820
        %v2822 = vsel %vm2604, %v2821, 0.0
        %v2823 = vmul.f32 %v2822, %v2822
        %2824 = vadd.xlane.f32.xlu0 %v2823
        %v2825 = vpop.xlane.xlu0 %2824
        %v2826 = vmul.f32 %v2825, 0.03125
        %v2827 = vadd.f32 %v2826, 1e-05
        %v2828 = vrsqrt.pop %v2827
        %v2829 = vmul.f32 %v2822, %v2828
        %v2831 = vlaneseq
        %v2832 = vshrl.u32 %v2831, 7
        %v2833 = vsub.s32 0, %v2832
        %v2834 = vrot.slane %v2816, %v2833
        %v2836 = vmul.f32 %v2829, %v2834
        %v2838 = vlaneseq
        %v2839 = vshrl.u32 %v2838, 7
        %v2840 = vsub.s32 0, %v2839
        %v2841 = vrot.slane %v2817, %v2840
        %v2843 = vadd.f32 %v2836, %v2841
        %s2844 = scalar_lea.vmem [#allocation10], 1536
        %v2845 = vld [vmem:[%s2844] sm:$0xff]
        %v2846 = vld [vmem:[%s2844 + $0x8] sm:$0xff]
        %v2847 = vld [vmem:[%s2844 + $0x10] sm:$0xff]
        %v2848 = vld [vmem:[%s2844 + $0x18] sm:$0xff]
        %v2849 = vld [vmem:[%s2844 + $0x20] sm:$0xff]
        %v2850 = vld [vmem:[%s2844 + $0x28] sm:$0xff]
        %v2851 = vld [vmem:[%s2844 + $0x30] sm:$0xff]
        %v2852 = vld [vmem:[%s2844 + $0x38] sm:$0xff]
        %v2853 = vld [vmem:[%s2844 + $0x40] sm:$0xff]
        %v2854 = vld [vmem:[%s2844 + $0x48] sm:$0xff]
        %v2855 = vld [vmem:[%s2844 + $0x50] sm:$0xff]
        %v2856 = vld [vmem:[%s2844 + $0x58] sm:$0xff]
        %v2857 = vld [vmem:[%s2844 + $0x60] sm:$0xff]
        %v2858 = vld [vmem:[%s2844 + $0x68] sm:$0xff]
        %v2859 = vld [vmem:[%s2844 + $0x70] sm:$0xff]
        %v2860 = vld [vmem:[%s2844 + $0x78] sm:$0xff]
        %v2861 = vld [vmem:[%s2844 + $0x80] sm:$0xff]
        %v2862 = vld [vmem:[%s2844 + $0x88] sm:$0xff]
        %v2863 = vld [vmem:[%s2844 + $0x90] sm:$0xff]
        %v2864 = vld [vmem:[%s2844 + $0x98] sm:$0xff]
        %v2865 = vld [vmem:[%s2844 + $0xa0] sm:$0xff]
        %v2866 = vld [vmem:[%s2844 + $0xa8] sm:$0xff]
        %v2867 = vld [vmem:[%s2844 + $0xb0] sm:$0xff]
        %v2868 = vld [vmem:[%s2844 + $0xb8] sm:$0xff]
        %v2869 = vld [vmem:[%s2844 + $0xc0] sm:$0xff]
        %v2870 = vld [vmem:[%s2844 + $0xc8] sm:$0xff]
        %v2871 = vld [vmem:[%s2844 + $0xd0] sm:$0xff]
        %v2872 = vld [vmem:[%s2844 + $0xd8] sm:$0xff]
        %v2873 = vld [vmem:[%s2844 + $0xe0] sm:$0xff]
        %v2874 = vld [vmem:[%s2844 + $0xe8] sm:$0xff]
        %v2875 = vld [vmem:[%s2844 + $0xf0] sm:$0xff]
        %v2876 = vld [vmem:[%s2844 + $0xf8] sm:$0xff]
        %v2877 = vld [vmem:[%s2844 + $0x100] sm:$0xff]
        %v2878 = vld [vmem:[%s2844 + $0x108] sm:$0xff]
        %v2879 = vld [vmem:[%s2844 + $0x110] sm:$0xff]
        %v2880 = vld [vmem:[%s2844 + $0x118] sm:$0xff]
        %v2881 = vld [vmem:[%s2844 + $0x120] sm:$0xff]
        %v2882 = vld [vmem:[%s2844 + $0x128] sm:$0xff]
        %v2883 = vld [vmem:[%s2844 + $0x130] sm:$0xff]
        %v2884 = vld [vmem:[%s2844 + $0x138] sm:$0xff]
        %v2885 = vld [vmem:[%s2844 + $0x140] sm:$0xff]
        %v2886 = vld [vmem:[%s2844 + $0x148] sm:$0xff]
        %v2887 = vld [vmem:[%s2844 + $0x150] sm:$0xff]
        %v2888 = vld [vmem:[%s2844 + $0x158] sm:$0xff]
        %v2889 = vld [vmem:[%s2844 + $0x160] sm:$0xff]
        %v2890 = vld [vmem:[%s2844 + $0x168] sm:$0xff]
        %v2891 = vld [vmem:[%s2844 + $0x170] sm:$0xff]
        %v2892 = vld [vmem:[%s2844 + $0x178] sm:$0xff]
        %v2893 = vld [vmem:[%s2844 + $0x180] sm:$0xff]
        %v2894 = vld [vmem:[%s2844 + $0x188] sm:$0xff]
        %v2895 = vld [vmem:[%s2844 + $0x190] sm:$0xff]
        %v2896 = vld [vmem:[%s2844 + $0x198] sm:$0xff]
        %v2897 = vld [vmem:[%s2844 + $0x1a0] sm:$0xff]
        %v2898 = vld [vmem:[%s2844 + $0x1a8] sm:$0xff]
        %v2899 = vld [vmem:[%s2844 + $0x1b0] sm:$0xff]
        %v2900 = vld [vmem:[%s2844 + $0x1b8] sm:$0xff]
        %v2901 = vld [vmem:[%s2844 + $0x1c0] sm:$0xff]
        %v2902 = vld [vmem:[%s2844 + $0x1c8] sm:$0xff]
        %v2903 = vld [vmem:[%s2844 + $0x1d0] sm:$0xff]
        %v2904 = vld [vmem:[%s2844 + $0x1d8] sm:$0xff]
        %v2905 = vld [vmem:[%s2844 + $0x1e0] sm:$0xff]
        %v2906 = vld [vmem:[%s2844 + $0x1e8] sm:$0xff]
        %v2907 = vld [vmem:[%s2844 + $0x1f0] sm:$0xff]
        %v2908 = vld [vmem:[%s2844 + $0x1f8] sm:$0xff]
        %v2909 = vld [vmem:[%s2844 + $0x200] sm:$0xff]
        %v2910 = vld [vmem:[%s2844 + $0x208] sm:$0xff]
        %v2911 = vld [vmem:[%s2844 + $0x210] sm:$0xff]
        %v2912 = vld [vmem:[%s2844 + $0x218] sm:$0xff]
        %v2913 = vld [vmem:[%s2844 + $0x220] sm:$0xff]
        %v2914 = vld [vmem:[%s2844 + $0x228] sm:$0xff]
        %v2915 = vld [vmem:[%s2844 + $0x230] sm:$0xff]
        %v2916 = vld [vmem:[%s2844 + $0x238] sm:$0xff]
        %v2917 = vld [vmem:[%s2844 + $0x240] sm:$0xff]
        %v2918 = vld [vmem:[%s2844 + $0x248] sm:$0xff]
        %v2919 = vld [vmem:[%s2844 + $0x250] sm:$0xff]
        %v2920 = vld [vmem:[%s2844 + $0x258] sm:$0xff]
        %v2921 = vld [vmem:[%s2844 + $0x260] sm:$0xff]
        %v2922 = vld [vmem:[%s2844 + $0x268] sm:$0xff]
        %v2923 = vld [vmem:[%s2844 + $0x270] sm:$0xff]
        %v2924 = vld [vmem:[%s2844 + $0x278] sm:$0xff]
        %v2925 = vld [vmem:[%s2844 + $0x280] sm:$0xff]
        %v2926 = vld [vmem:[%s2844 + $0x288] sm:$0xff]
        %v2927 = vld [vmem:[%s2844 + $0x290] sm:$0xff]
        %v2928 = vld [vmem:[%s2844 + $0x298] sm:$0xff]
        %v2929 = vld [vmem:[%s2844 + $0x2a0] sm:$0xff]
        %v2930 = vld [vmem:[%s2844 + $0x2a8] sm:$0xff]
        %v2931 = vld [vmem:[%s2844 + $0x2b0] sm:$0xff]
        %v2932 = vld [vmem:[%s2844 + $0x2b8] sm:$0xff]
        %v2933 = vld [vmem:[%s2844 + $0x2c0] sm:$0xff]
        %v2934 = vld [vmem:[%s2844 + $0x2c8] sm:$0xff]
        %v2935 = vld [vmem:[%s2844 + $0x2d0] sm:$0xff]
        %v2936 = vld [vmem:[%s2844 + $0x2d8] sm:$0xff]
        %v2937 = vld [vmem:[%s2844 + $0x2e0] sm:$0xff]
        %v2938 = vld [vmem:[%s2844 + $0x2e8] sm:$0xff]
        %v2939 = vld [vmem:[%s2844 + $0x2f0] sm:$0xff]
        %v2940 = vld [vmem:[%s2844 + $0x2f8] sm:$0xff]
        %v2941 = vld [vmem:[%s2844 + $0x300] sm:$0xff]
        %v2942 = vld [vmem:[%s2844 + $0x308] sm:$0xff]
        %v2943 = vld [vmem:[%s2844 + $0x310] sm:$0xff]
        %v2944 = vld [vmem:[%s2844 + $0x318] sm:$0xff]
        %v2945 = vld [vmem:[%s2844 + $0x320] sm:$0xff]
        %v2946 = vld [vmem:[%s2844 + $0x328] sm:$0xff]
        %v2947 = vld [vmem:[%s2844 + $0x330] sm:$0xff]
        %v2948 = vld [vmem:[%s2844 + $0x338] sm:$0xff]
        %v2949 = vld [vmem:[%s2844 + $0x340] sm:$0xff]
        %v2950 = vld [vmem:[%s2844 + $0x348] sm:$0xff]
        %v2951 = vld [vmem:[%s2844 + $0x350] sm:$0xff]
        %v2952 = vld [vmem:[%s2844 + $0x358] sm:$0xff]
        %v2953 = vld [vmem:[%s2844 + $0x360] sm:$0xff]
        %v2954 = vld [vmem:[%s2844 + $0x368] sm:$0xff]
        %v2955 = vld [vmem:[%s2844 + $0x370] sm:$0xff]
        %v2956 = vld [vmem:[%s2844 + $0x378] sm:$0xff]
        %v2957 = vld [vmem:[%s2844 + $0x380] sm:$0xff]
        %v2958 = vld [vmem:[%s2844 + $0x388] sm:$0xff]
        %v2959 = vld [vmem:[%s2844 + $0x390] sm:$0xff]
        %v2960 = vld [vmem:[%s2844 + $0x398] sm:$0xff]
        %v2961 = vld [vmem:[%s2844 + $0x3a0] sm:$0xff]
        %v2962 = vld [vmem:[%s2844 + $0x3a8] sm:$0xff]
        %v2963 = vld [vmem:[%s2844 + $0x3b0] sm:$0xff]
        %v2964 = vld [vmem:[%s2844 + $0x3b8] sm:$0xff]
        %v2965 = vld [vmem:[%s2844 + $0x3c0] sm:$0xff]
        %v2966 = vld [vmem:[%s2844 + $0x3c8] sm:$0xff]
        %v2967 = vld [vmem:[%s2844 + $0x3d0] sm:$0xff]
        %v2968 = vld [vmem:[%s2844 + $0x3d8] sm:$0xff]
        %v2969 = vld [vmem:[%s2844 + $0x3e0] sm:$0xff]
        %v2970 = vld [vmem:[%s2844 + $0x3e8] sm:$0xff]
        %v2971 = vld [vmem:[%s2844 + $0x3f0] sm:$0xff]
        %v2972 = vld [vmem:[%s2844 + $0x3f8] sm:$0xff]
        %v2973 = vld [vmem:[%s2844 + $0x400] sm:$0xff]
        %v2974 = vld [vmem:[%s2844 + $0x408] sm:$0xff]
        %v2975 = vld [vmem:[%s2844 + $0x410] sm:$0xff]
        %v2976 = vld [vmem:[%s2844 + $0x418] sm:$0xff]
        %v2977 = vld [vmem:[%s2844 + $0x420] sm:$0xff]
        %v2978 = vld [vmem:[%s2844 + $0x428] sm:$0xff]
        %v2979 = vld [vmem:[%s2844 + $0x430] sm:$0xff]
        %v2980 = vld [vmem:[%s2844 + $0x438] sm:$0xff]
        %v2981 = vld [vmem:[%s2844 + $0x440] sm:$0xff]
        %v2982 = vld [vmem:[%s2844 + $0x448] sm:$0xff]
        %v2983 = vld [vmem:[%s2844 + $0x450] sm:$0xff]
        %v2984 = vld [vmem:[%s2844 + $0x458] sm:$0xff]
        %v2985 = vld [vmem:[%s2844 + $0x460] sm:$0xff]
        %v2986 = vld [vmem:[%s2844 + $0x468] sm:$0xff]
        %v2987 = vld [vmem:[%s2844 + $0x470] sm:$0xff]
        %v2988 = vld [vmem:[%s2844 + $0x478] sm:$0xff]
        %v2989 = vld [vmem:[%s2844 + $0x480] sm:$0xff]
        %v2990 = vld [vmem:[%s2844 + $0x488] sm:$0xff]
        %v2991 = vld [vmem:[%s2844 + $0x490] sm:$0xff]
        %v2992 = vld [vmem:[%s2844 + $0x498] sm:$0xff]
        %v2993 = vld [vmem:[%s2844 + $0x4a0] sm:$0xff]
        %v2994 = vld [vmem:[%s2844 + $0x4a8] sm:$0xff]
        %v2995 = vld [vmem:[%s2844 + $0x4b0] sm:$0xff]
        %v2996 = vld [vmem:[%s2844 + $0x4b8] sm:$0xff]
        %v2997 = vld [vmem:[%s2844 + $0x4c0] sm:$0xff]
        %v2998 = vld [vmem:[%s2844 + $0x4c8] sm:$0xff]
        %v2999 = vld [vmem:[%s2844 + $0x4d0] sm:$0xff]
        %v3000 = vld [vmem:[%s2844 + $0x4d8] sm:$0xff]
        %v3001 = vld [vmem:[%s2844 + $0x4e0] sm:$0xff]
        %v3002 = vld [vmem:[%s2844 + $0x4e8] sm:$0xff]
        %v3003 = vld [vmem:[%s2844 + $0x4f0] sm:$0xff]
        %v3004 = vld [vmem:[%s2844 + $0x4f8] sm:$0xff]
        %v3005 = vld [vmem:[%s2844 + $0x500] sm:$0xff]
        %v3006 = vld [vmem:[%s2844 + $0x508] sm:$0xff]
        %v3007 = vld [vmem:[%s2844 + $0x510] sm:$0xff]
        %v3008 = vld [vmem:[%s2844 + $0x518] sm:$0xff]
        %v3009 = vld [vmem:[%s2844 + $0x520] sm:$0xff]
        %v3010 = vld [vmem:[%s2844 + $0x528] sm:$0xff]
        %v3011 = vld [vmem:[%s2844 + $0x530] sm:$0xff]
        %v3012 = vld [vmem:[%s2844 + $0x538] sm:$0xff]
        %v3013 = vld [vmem:[%s2844 + $0x540] sm:$0xff]
        %v3014 = vld [vmem:[%s2844 + $0x548] sm:$0xff]
        %v3015 = vld [vmem:[%s2844 + $0x550] sm:$0xff]
        %v3016 = vld [vmem:[%s2844 + $0x558] sm:$0xff]
        %v3017 = vld [vmem:[%s2844 + $0x560] sm:$0xff]
        %v3018 = vld [vmem:[%s2844 + $0x568] sm:$0xff]
        %v3019 = vld [vmem:[%s2844 + $0x570] sm:$0xff]
        %v3020 = vld [vmem:[%s2844 + $0x578] sm:$0xff]
        %v3021 = vld [vmem:[%s2844 + $0x580] sm:$0xff]
        %v3022 = vld [vmem:[%s2844 + $0x588] sm:$0xff]
        %v3023 = vld [vmem:[%s2844 + $0x590] sm:$0xff]
        %v3024 = vld [vmem:[%s2844 + $0x598] sm:$0xff]
        %v3025 = vld [vmem:[%s2844 + $0x5a0] sm:$0xff]
        %v3026 = vld [vmem:[%s2844 + $0x5a8] sm:$0xff]
        %v3027 = vld [vmem:[%s2844 + $0x5b0] sm:$0xff]
        %v3028 = vld [vmem:[%s2844 + $0x5b8] sm:$0xff]
        %v3029 = vld [vmem:[%s2844 + $0x5c0] sm:$0xff]
        %v3030 = vld [vmem:[%s2844 + $0x5c8] sm:$0xff]
        %v3031 = vld [vmem:[%s2844 + $0x5d0] sm:$0xff]
        %v3032 = vld [vmem:[%s2844 + $0x5d8] sm:$0xff]
        %v3033 = vld [vmem:[%s2844 + $0x5e0] sm:$0xff]
        %v3034 = vld [vmem:[%s2844 + $0x5e8] sm:$0xff]
        %v3035 = vld [vmem:[%s2844 + $0x5f0] sm:$0xff]
        %v3036 = vld [vmem:[%s2844 + $0x5f8] sm:$0xff]
        %s3037 = scalar_lea.vmem [#allocation11], 12
        %v3038 = vld [vmem:[%s3037] sm:$0xff]
        %v3039 = vld [vmem:[%s3037 + $0x8] sm:$0xf]
        %v3042 = vlaneseq
        %v3043 = vshrl.u32 %v3042, 7
        %v3044 = vsub.s32 0, %v3043
        %v3045 = vrot.slane %v3038, %v3044
        %v3046 = vlaneseq
        %v3047 = vshrl.u32 %v3046, 7
        %v3048 = vsub.s32 1, %v3047
        %v3049 = vrot.slane %v3038, %v3048
        %v3050 = vlaneseq
        %v3051 = vshrl.u32 %v3050, 7
        %v3052 = vsub.s32 2, %v3051
        %v3053 = vrot.slane %v3038, %v3052
        %v3054 = vlaneseq
        %v3055 = vshrl.u32 %v3054, 7
        %v3056 = vsub.s32 3, %v3055
        %v3057 = vrot.slane %v3038, %v3056
        %v3058 = vlaneseq
        %v3059 = vshrl.u32 %v3058, 7
        %v3060 = vsub.s32 4, %v3059
        %v3061 = vrot.slane %v3038, %v3060
        %v3062 = vlaneseq
        %v3063 = vshrl.u32 %v3062, 7
        %v3064 = vsub.s32 5, %v3063
        %v3065 = vrot.slane %v3038, %v3064
        %v3066 = vlaneseq
        %v3067 = vshrl.u32 %v3066, 7
        %v3068 = vsub.s32 6, %v3067
        %v3069 = vrot.slane %v3038, %v3068
        %v3070 = vlaneseq
        %v3071 = vshrl.u32 %v3070, 7
        %v3072 = vsub.s32 7, %v3071
        %v3073 = vrot.slane %v3038, %v3072
        %v3074 = vlaneseq
        %v3075 = vshrl.u32 %v3074, 7
        %v3076 = vsub.s32 0, %v3075
        %v3077 = vrot.slane %v3039, %v3076
        %v3078 = vlaneseq
        %v3079 = vshrl.u32 %v3078, 7
        %v3080 = vsub.s32 1, %v3079
        %v3081 = vrot.slane %v3039, %v3080
        %v3082 = vlaneseq
        %v3083 = vshrl.u32 %v3082, 7
        %v3084 = vsub.s32 2, %v3083
        %v3085 = vrot.slane %v3039, %v3084
        %v3086 = vlaneseq
        %v3087 = vshrl.u32 %v3086, 7
        %v3088 = vsub.s32 3, %v3087
        %v3089 = vrot.slane %v3039, %v3088
        %3102 = vmatprep.subr.mxu0 %v3026
        %3103 = vmatpush1.msra.mxu0 %v3025
        %3104 = vmatprep.subr.mxu0 %v3014
        %3105 = vmatpush1.msra.mxu0 %v3013
        %3106 = vmatprep.subr.mxu0 %v3002
        %3107 = vmatpush1.msra.mxu0 %v3001
        %3108 = vmatprep.subr.mxu0 %v2990
        %3109 = vmatpush1.msra.mxu0 %v2989
        %3110 = vmatprep.subr.mxu0 %v2978
        %3111 = vmatpush1.msra.mxu0 %v2977
        %3112 = vmatprep.subr.mxu0 %v2966
        %3113 = vmatpush1.msra.mxu0 %v2965
        %3114 = vmatprep.subr.mxu0 %v2954
        %3115 = vmatpush1.msra.mxu0 %v2953
        %3116 = vmatprep.subr.mxu0 %v2942
        %3117 = vmatpush1.msra.mxu0 %v2941
        %3118 = vmatprep.subr.mxu0 %v2930
        %3119 = vmatpush1.msra.mxu0 %v2929
        %3120 = vmatprep.subr.mxu0 %v2918
        %3121 = vmatpush1.msra.mxu0 %v2917
        %3122 = vmatprep.subr.mxu0 %v2906
        %3123 = vmatpush1.msra.mxu0 %v2905
        %3124 = vmatprep.subr.mxu0 %v2894
        %3125 = vmatpush1.msra.mxu0 %v2893
        %3126 = vmatprep.subr.mxu0 %v2882
        %3127 = vmatpush1.msra.mxu0 %v2881
        %3128 = vmatprep.subr.mxu0 %v2870
        %3129 = vmatpush1.msra.mxu0 %v2869
        %3130 = vmatprep.subr.mxu0 %v2858
        %3131 = vmatpush1.msra.mxu0 %v2857
        %3132 = vmatprep.subr.mxu0 %v2846
        %3133 = vmatpush1.msra.mxu0 %v2845
        %3134 = vmatprep.subr.mxu0 0.0
        %3135 = vmatpush2.msra.mxu0 0.0
        %3136 = vmatprep.subr.mxu0 0.0
        %3137 = vmatpush2.msra.mxu0 0.0
        %3138 = vmatprep.subr.mxu0 0.0
        %3139 = vmatpush2.msra.mxu0 0.0
        %3140 = vmatprep.subr.mxu0 0.0
        %3141 = vmatpush2.msra.mxu0 0.0
        %3142 = vmatprep.subr.mxu0 0.0
        %3143 = vmatpush2.msra.mxu0 0.0
        %3144 = vmatprep.subr.mxu0 0.0
        %3145 = vmatpush2.msra.mxu0 0.0
        %3146 = vmatprep.subr.mxu0 0.0
        %3147 = vmatpush2.msra.mxu0 0.0
        %3148 = vmatprep.subr.mxu0 0.0
        %3149 = vmatpush2.msra.mxu0 0.0
        %3150 = vmatprep.subr.mxu0 0.0
        %3151 = vmatpush2.msra.mxu0 0.0
        %3152 = vmatprep.subr.mxu0 0.0
        %3153 = vmatpush2.msra.mxu0 0.0
        %3154 = vmatprep.subr.mxu0 0.0
        %3155 = vmatpush2.msra.mxu0 0.0
        %3156 = vmatprep.subr.mxu0 0.0
        %3157 = vmatpush2.msra.mxu0 0.0
        %3158 = vmatprep.subr.mxu0 0.0
        %3159 = vmatpush2.msra.mxu0 0.0
        %3160 = vmatprep.subr.mxu0 0.0
        %3161 = vmatpush2.msra.mxu0 0.0
        %3162 = vmatprep.subr.mxu0 0.0
        %3163 = vmatpush2.msra.mxu0 0.0
        %3164 = vmatprep.subr.mxu0 0.0
        %3165 = vmatpush2.msra.mxu0 0.0
        %3166 = vmatprep.mubr.f32.mxu0 0.0
        %3167 = vmatmul.mubr.f32.gmra.mxu0 %v2843
        %v3168 = vpop.f32.mrf.mxu0
        %v3169 = vadd.f32 %v3045, %v3168
        %v3170 = vpop.f32.mrf.mxu0
        %v3171 = vadd.f32 %v3049, %v3170
        %3172 = vdwg.mxu0
        %3173 = vmatprep.subr.mxu0 %v3028
        %3174 = vmatpush1.msra.mxu0 %v3027
        %3175 = vmatprep.subr.mxu0 %v3016
        %3176 = vmatpush1.msra.mxu0 %v3015
        %3177 = vmatprep.subr.mxu0 %v3004
        %3178 = vmatpush1.msra.mxu0 %v3003
        %3179 = vmatprep.subr.mxu0 %v2992
        %3180 = vmatpush1.msra.mxu0 %v2991
        %3181 = vmatprep.subr.mxu0 %v2980
        %3182 = vmatpush1.msra.mxu0 %v2979
        %3183 = vmatprep.subr.mxu0 %v2968
        %3184 = vmatpush1.msra.mxu0 %v2967
        %3185 = vmatprep.subr.mxu0 %v2956
        %3186 = vmatpush1.msra.mxu0 %v2955
        %3187 = vmatprep.subr.mxu0 %v2944
        %3188 = vmatpush1.msra.mxu0 %v2943
        %3189 = vmatprep.subr.mxu0 %v2932
        %3190 = vmatpush1.msra.mxu0 %v2931
        %3191 = vmatprep.subr.mxu0 %v2920
        %3192 = vmatpush1.msra.mxu0 %v2919
        %3193 = vmatprep.subr.mxu0 %v2908
        %3194 = vmatpush1.msra.mxu0 %v2907
        %3195 = vmatprep.subr.mxu0 %v2896
        %3196 = vmatpush1.msra.mxu0 %v2895
        %3197 = vmatprep.subr.mxu0 %v2884
        %3198 = vmatpush1.msra.mxu0 %v2883
        %3199 = vmatprep.subr.mxu0 %v2872
        %3200 = vmatpush1.msra.mxu0 %v2871
        %3201 = vmatprep.subr.mxu0 %v2860
        %3202 = vmatpush1.msra.mxu0 %v2859
        %3203 = vmatprep.subr.mxu0 %v2848
        %3204 = vmatpush1.msra.mxu0 %v2847
        %3205 = vmatprep.subr.mxu0 0.0
        %3206 = vmatpush2.msra.mxu0 0.0
        %3207 = vmatprep.subr.mxu0 0.0
        %3208 = vmatpush2.msra.mxu0 0.0
        %3209 = vmatprep.subr.mxu0 0.0
        %3210 = vmatpush2.msra.mxu0 0.0
        %3211 = vmatprep.subr.mxu0 0.0
        %3212 = vmatpush2.msra.mxu0 0.0
        %3213 = vmatprep.subr.mxu0 0.0
        %3214 = vmatpush2.msra.mxu0 0.0
        %3215 = vmatprep.subr.mxu0 0.0
        %3216 = vmatpush2.msra.mxu0 0.0
        %3217 = vmatprep.subr.mxu0 0.0
        %3218 = vmatpush2.msra.mxu0 0.0
        %3219 = vmatprep.subr.mxu0 0.0
        %3220 = vmatpush2.msra.mxu0 0.0
        %3221 = vmatprep.subr.mxu0 0.0
        %3222 = vmatpush2.msra.mxu0 0.0
        %3223 = vmatprep.subr.mxu0 0.0
        %3224 = vmatpush2.msra.mxu0 0.0
        %3225 = vmatprep.subr.mxu0 0.0
        %3226 = vmatpush2.msra.mxu0 0.0
        %3227 = vmatprep.subr.mxu0 0.0
        %3228 = vmatpush2.msra.mxu0 0.0
        %3229 = vmatprep.subr.mxu0 0.0
        %3230 = vmatpush2.msra.mxu0 0.0
        %3231 = vmatprep.subr.mxu0 0.0
        %3232 = vmatpush2.msra.mxu0 0.0
        %3233 = vmatprep.subr.mxu0 0.0
        %3234 = vmatpush2.msra.mxu0 0.0
        %3235 = vmatprep.subr.mxu0 0.0
        %3236 = vmatpush2.msra.mxu0 0.0
        %3237 = vmatprep.mubr.f32.mxu0 0.0
        %3238 = vmatmul.mubr.f32.gmra.mxu0 %v2843
        %v3239 = vpop.f32.mrf.mxu0
        %v3240 = vadd.f32 %v3053, %v3239
        %v3241 = vpop.f32.mrf.mxu0
        %v3242 = vadd.f32 %v3057, %v3241
        %3243 = vdwg.mxu0
        %3244 = vmatprep.subr.mxu0 %v3030
        %3245 = vmatpush1.msra.mxu0 %v3029
        %3246 = vmatprep.subr.mxu0 %v3018
        %3247 = vmatpush1.msra.mxu0 %v3017
        %3248 = vmatprep.subr.mxu0 %v3006
        %3249 = vmatpush1.msra.mxu0 %v3005
        %3250 = vmatprep.subr.mxu0 %v2994
        %3251 = vmatpush1.msra.mxu0 %v2993
        %3252 = vmatprep.subr.mxu0 %v2982
        %3253 = vmatpush1.msra.mxu0 %v2981
        %3254 = vmatprep.subr.mxu0 %v2970
        %3255 = vmatpush1.msra.mxu0 %v2969
        %3256 = vmatprep.subr.mxu0 %v2958
        %3257 = vmatpush1.msra.mxu0 %v2957
        %3258 = vmatprep.subr.mxu0 %v2946
        %3259 = vmatpush1.msra.mxu0 %v2945
        %3260 = vmatprep.subr.mxu0 %v2934
        %3261 = vmatpush1.msra.mxu0 %v2933
        %3262 = vmatprep.subr.mxu0 %v2922
        %3263 = vmatpush1.msra.mxu0 %v2921
        %3264 = vmatprep.subr.mxu0 %v2910
        %3265 = vmatpush1.msra.mxu0 %v2909
        %3266 = vmatprep.subr.mxu0 %v2898
        %3267 = vmatpush1.msra.mxu0 %v2897
        %3268 = vmatprep.subr.mxu0 %v2886
        %3269 = vmatpush1.msra.mxu0 %v2885
        %3270 = vmatprep.subr.mxu0 %v2874
        %3271 = vmatpush1.msra.mxu0 %v2873
        %3272 = vmatprep.subr.mxu0 %v2862
        %3273 = vmatpush1.msra.mxu0 %v2861
        %3274 = vmatprep.subr.mxu0 %v2850
        %3275 = vmatpush1.msra.mxu0 %v2849
        %3276 = vmatprep.subr.mxu0 0.0
        %3277 = vmatpush2.msra.mxu0 0.0
        %3278 = vmatprep.subr.mxu0 0.0
        %3279 = vmatpush2.msra.mxu0 0.0
        %3280 = vmatprep.subr.mxu0 0.0
        %3281 = vmatpush2.msra.mxu0 0.0
        %3282 = vmatprep.subr.mxu0 0.0
        %3283 = vmatpush2.msra.mxu0 0.0
        %3284 = vmatprep.subr.mxu0 0.0
        %3285 = vmatpush2.msra.mxu0 0.0
        %3286 = vmatprep.subr.mxu0 0.0
        %3287 = vmatpush2.msra.mxu0 0.0
        %3288 = vmatprep.subr.mxu0 0.0
        %3289 = vmatpush2.msra.mxu0 0.0
        %3290 = vmatprep.subr.mxu0 0.0
        %3291 = vmatpush2.msra.mxu0 0.0
        %3292 = vmatprep.subr.mxu0 0.0
        %3293 = vmatpush2.msra.mxu0 0.0
        %3294 = vmatprep.subr.mxu0 0.0
        %3295 = vmatpush2.msra.mxu0 0.0
        %3296 = vmatprep.subr.mxu0 0.0
        %3297 = vmatpush2.msra.mxu0 0.0
        %3298 = vmatprep.subr.mxu0 0.0
        %3299 = vmatpush2.msra.mxu0 0.0
        %3300 = vmatprep.subr.mxu0 0.0
        %3301 = vmatpush2.msra.mxu0 0.0
        %3302 = vmatprep.subr.mxu0 0.0
        %3303 = vmatpush2.msra.mxu0 0.0
        %3304 = vmatprep.subr.mxu0 0.0
        %3305 = vmatpush2.msra.mxu0 0.0
        %3306 = vmatprep.subr.mxu0 0.0
        %3307 = vmatpush2.msra.mxu0 0.0
        %3308 = vmatprep.mubr.f32.mxu0 0.0
        %3309 = vmatmul.mubr.f32.gmra.mxu0 %v2843
        %v3310 = vpop.f32.mrf.mxu0
        %v3311 = vadd.f32 %v3061, %v3310
        %v3312 = vpop.f32.mrf.mxu0
        %v3313 = vadd.f32 %v3065, %v3312
        %3314 = vdwg.mxu0
        %3315 = vmatprep.subr.mxu0 %v3032
        %3316 = vmatpush1.msra.mxu0 %v3031
        %3317 = vmatprep.subr.mxu0 %v3020
        %3318 = vmatpush1.msra.mxu0 %v3019
        %3319 = vmatprep.subr.mxu0 %v3008
        %3320 = vmatpush1.msra.mxu0 %v3007
        %3321 = vmatprep.subr.mxu0 %v2996
        %3322 = vmatpush1.msra.mxu0 %v2995
        %3323 = vmatprep.subr.mxu0 %v2984
        %3324 = vmatpush1.msra.mxu0 %v2983
        %3325 = vmatprep.subr.mxu0 %v2972
        %3326 = vmatpush1.msra.mxu0 %v2971
        %3327 = vmatprep.subr.mxu0 %v2960
        %3328 = vmatpush1.msra.mxu0 %v2959
        %3329 = vmatprep.subr.mxu0 %v2948
        %3330 = vmatpush1.msra.mxu0 %v2947
        %3331 = vmatprep.subr.mxu0 %v2936
        %3332 = vmatpush1.msra.mxu0 %v2935
        %3333 = vmatprep.subr.mxu0 %v2924
        %3334 = vmatpush1.msra.mxu0 %v2923
        %3335 = vmatprep.subr.mxu0 %v2912
        %3336 = vmatpush1.msra.mxu0 %v2911
        %3337 = vmatprep.subr.mxu0 %v2900
        %3338 = vmatpush1.msra.mxu0 %v2899
        %3339 = vmatprep.subr.mxu0 %v2888
        %3340 = vmatpush1.msra.mxu0 %v2887
        %3341 = vmatprep.subr.mxu0 %v2876
        %3342 = vmatpush1.msra.mxu0 %v2875
        %3343 = vmatprep.subr.mxu0 %v2864
        %3344 = vmatpush1.msra.mxu0 %v2863
        %3345 = vmatprep.subr.mxu0 %v2852
        %3346 = vmatpush1.msra.mxu0 %v2851
        %3347 = vmatprep.subr.mxu0 0.0
        %3348 = vmatpush2.msra.mxu0 0.0
        %3349 = vmatprep.subr.mxu0 0.0
        %3350 = vmatpush2.msra.mxu0 0.0
        %3351 = vmatprep.subr.mxu0 0.0
        %3352 = vmatpush2.msra.mxu0 0.0
        %3353 = vmatprep.subr.mxu0 0.0
        %3354 = vmatpush2.msra.mxu0 0.0
        %3355 = vmatprep.subr.mxu0 0.0
        %3356 = vmatpush2.msra.mxu0 0.0
        %3357 = vmatprep.subr.mxu0 0.0
        %3358 = vmatpush2.msra.mxu0 0.0
        %3359 = vmatprep.subr.mxu0 0.0
        %3360 = vmatpush2.msra.mxu0 0.0
        %3361 = vmatprep.subr.mxu0 0.0
        %3362 = vmatpush2.msra.mxu0 0.0
        %3363 = vmatprep.subr.mxu0 0.0
        %3364 = vmatpush2.msra.mxu0 0.0
        %3365 = vmatprep.subr.mxu0 0.0
        %3366 = vmatpush2.msra.mxu0 0.0
        %3367 = vmatprep.subr.mxu0 0.0
        %3368 = vmatpush2.msra.mxu0 0.0
        %3369 = vmatprep.subr.mxu0 0.0
        %3370 = vmatpush2.msra.mxu0 0.0
        %3371 = vmatprep.subr.mxu0 0.0
        %3372 = vmatpush2.msra.mxu0 0.0
        %3373 = vmatprep.subr.mxu0 0.0
        %3374 = vmatpush2.msra.mxu0 0.0
        %3375 = vmatprep.subr.mxu0 0.0
        %3376 = vmatpush2.msra.mxu0 0.0
        %3377 = vmatprep.subr.mxu0 0.0
        %3378 = vmatpush2.msra.mxu0 0.0
        %3379 = vmatprep.mubr.f32.mxu0 0.0
        %3380 = vmatmul.mubr.f32.gmra.mxu0 %v2843
        %v3381 = vpop.f32.mrf.mxu0
        %v3382 = vadd.f32 %v3069, %v3381
        %v3383 = vpop.f32.mrf.mxu0
        %v3384 = vadd.f32 %v3073, %v3383
        %3385 = vdwg.mxu0
        %3386 = vmatprep.subr.mxu0 %v3034
        %3387 = vmatpush1.msra.mxu0 %v3033
        %3388 = vmatprep.subr.mxu0 %v3022
        %3389 = vmatpush1.msra.mxu0 %v3021
        %3390 = vmatprep.subr.mxu0 %v3010
        %3391 = vmatpush1.msra.mxu0 %v3009
        %3392 = vmatprep.subr.mxu0 %v2998
        %3393 = vmatpush1.msra.mxu0 %v2997
        %3394 = vmatprep.subr.mxu0 %v2986
        %3395 = vmatpush1.msra.mxu0 %v2985
        %3396 = vmatprep.subr.mxu0 %v2974
        %3397 = vmatpush1.msra.mxu0 %v2973
        %3398 = vmatprep.subr.mxu0 %v2962
        %3399 = vmatpush1.msra.mxu0 %v2961
        %3400 = vmatprep.subr.mxu0 %v2950
        %3401 = vmatpush1.msra.mxu0 %v2949
        %3402 = vmatprep.subr.mxu0 %v2938
        %3403 = vmatpush1.msra.mxu0 %v2937
        %3404 = vmatprep.subr.mxu0 %v2926
        %3405 = vmatpush1.msra.mxu0 %v2925
        %3406 = vmatprep.subr.mxu0 %v2914
        %3407 = vmatpush1.msra.mxu0 %v2913
        %3408 = vmatprep.subr.mxu0 %v2902
        %3409 = vmatpush1.msra.mxu0 %v2901
        %3410 = vmatprep.subr.mxu0 %v2890
        %3411 = vmatpush1.msra.mxu0 %v2889
        %3412 = vmatprep.subr.mxu0 %v2878
        %3413 = vmatpush1.msra.mxu0 %v2877
        %3414 = vmatprep.subr.mxu0 %v2866
        %3415 = vmatpush1.msra.mxu0 %v2865
        %3416 = vmatprep.subr.mxu0 %v2854
        %3417 = vmatpush1.msra.mxu0 %v2853
        %3418 = vmatprep.subr.mxu0 0.0
        %3419 = vmatpush2.msra.mxu0 0.0
        %3420 = vmatprep.subr.mxu0 0.0
        %3421 = vmatpush2.msra.mxu0 0.0
        %3422 = vmatprep.subr.mxu0 0.0
        %3423 = vmatpush2.msra.mxu0 0.0
        %3424 = vmatprep.subr.mxu0 0.0
        %3425 = vmatpush2.msra.mxu0 0.0
        %3426 = vmatprep.subr.mxu0 0.0
        %3427 = vmatpush2.msra.mxu0 0.0
        %3428 = vmatprep.subr.mxu0 0.0
        %3429 = vmatpush2.msra.mxu0 0.0
        %3430 = vmatprep.subr.mxu0 0.0
        %3431 = vmatpush2.msra.mxu0 0.0
        %3432 = vmatprep.subr.mxu0 0.0
        %3433 = vmatpush2.msra.mxu0 0.0
        %3434 = vmatprep.subr.mxu0 0.0
        %3435 = vmatpush2.msra.mxu0 0.0
        %3436 = vmatprep.subr.mxu0 0.0
        %3437 = vmatpush2.msra.mxu0 0.0
        %3438 = vmatprep.subr.mxu0 0.0
        %3439 = vmatpush2.msra.mxu0 0.0
        %3440 = vmatprep.subr.mxu0 0.0
        %3441 = vmatpush2.msra.mxu0 0.0
        %3442 = vmatprep.subr.mxu0 0.0
        %3443 = vmatpush2.msra.mxu0 0.0
        %3444 = vmatprep.subr.mxu0 0.0
        %3445 = vmatpush2.msra.mxu0 0.0
        %3446 = vmatprep.subr.mxu0 0.0
        %3447 = vmatpush2.msra.mxu0 0.0
        %3448 = vmatprep.subr.mxu0 0.0
        %3449 = vmatpush2.msra.mxu0 0.0
        %3450 = vmatprep.mubr.f32.mxu0 0.0
        %3451 = vmatmul.mubr.f32.gmra.mxu0 %v2843
        %v3452 = vpop.f32.mrf.mxu0
        %v3453 = vadd.f32 %v3077, %v3452
        %v3454 = vpop.f32.mrf.mxu0
        %v3455 = vadd.f32 %v3081, %v3454
        %3456 = vdwg.mxu0
        %3457 = vmatprep.subr.mxu0 %v3036
        %3458 = vmatpush1.msra.mxu0 %v3035
        %3459 = vmatprep.subr.mxu0 %v3024
        %3460 = vmatpush1.msra.mxu0 %v3023
        %3461 = vmatprep.subr.mxu0 %v3012
        %3462 = vmatpush1.msra.mxu0 %v3011
        %3463 = vmatprep.subr.mxu0 %v3000
        %3464 = vmatpush1.msra.mxu0 %v2999
        %3465 = vmatprep.subr.mxu0 %v2988
        %3466 = vmatpush1.msra.mxu0 %v2987
        %3467 = vmatprep.subr.mxu0 %v2976
        %3468 = vmatpush1.msra.mxu0 %v2975
        %3469 = vmatprep.subr.mxu0 %v2964
        %3470 = vmatpush1.msra.mxu0 %v2963
        %3471 = vmatprep.subr.mxu0 %v2952
        %3472 = vmatpush1.msra.mxu0 %v2951
        %3473 = vmatprep.subr.mxu0 %v2940
        %3474 = vmatpush1.msra.mxu0 %v2939
        %3475 = vmatprep.subr.mxu0 %v2928
        %3476 = vmatpush1.msra.mxu0 %v2927
        %3477 = vmatprep.subr.mxu0 %v2916
        %3478 = vmatpush1.msra.mxu0 %v2915
        %3479 = vmatprep.subr.mxu0 %v2904
        %3480 = vmatpush1.msra.mxu0 %v2903
        %3481 = vmatprep.subr.mxu0 %v2892
        %3482 = vmatpush1.msra.mxu0 %v2891
        %3483 = vmatprep.subr.mxu0 %v2880
        %3484 = vmatpush1.msra.mxu0 %v2879
        %3485 = vmatprep.subr.mxu0 %v2868
        %3486 = vmatpush1.msra.mxu0 %v2867
        %3487 = vmatprep.subr.mxu0 %v2856
        %3488 = vmatpush1.msra.mxu0 %v2855
        %3489 = vmatprep.subr.mxu0 0.0
        %3490 = vmatpush2.msra.mxu0 0.0
        %3491 = vmatprep.subr.mxu0 0.0
        %3492 = vmatpush2.msra.mxu0 0.0
        %3493 = vmatprep.subr.mxu0 0.0
        %3494 = vmatpush2.msra.mxu0 0.0
        %3495 = vmatprep.subr.mxu0 0.0
        %3496 = vmatpush2.msra.mxu0 0.0
        %3497 = vmatprep.subr.mxu0 0.0
        %3498 = vmatpush2.msra.mxu0 0.0
        %3499 = vmatprep.subr.mxu0 0.0
        %3500 = vmatpush2.msra.mxu0 0.0
        %3501 = vmatprep.subr.mxu0 0.0
        %3502 = vmatpush2.msra.mxu0 0.0
        %3503 = vmatprep.subr.mxu0 0.0
        %3504 = vmatpush2.msra.mxu0 0.0
        %3505 = vmatprep.subr.mxu0 0.0
        %3506 = vmatpush2.msra.mxu0 0.0
        %3507 = vmatprep.subr.mxu0 0.0
        %3508 = vmatpush2.msra.mxu0 0.0
        %3509 = vmatprep.subr.mxu0 0.0
        %3510 = vmatpush2.msra.mxu0 0.0
        %3511 = vmatprep.subr.mxu0 0.0
        %3512 = vmatpush2.msra.mxu0 0.0
        %3513 = vmatprep.subr.mxu0 0.0
        %3514 = vmatpush2.msra.mxu0 0.0
        %3515 = vmatprep.subr.mxu0 0.0
        %3516 = vmatpush2.msra.mxu0 0.0
        %3517 = vmatprep.subr.mxu0 0.0
        %3518 = vmatpush2.msra.mxu0 0.0
        %3519 = vmatprep.subr.mxu0 0.0
        %3520 = vmatpush2.msra.mxu0 0.0
        %3521 = vmatprep.mubr.f32.mxu0 0.0
        %3522 = vmatmul.mubr.f32.gmra.mxu0 %v2843
        %v3523 = vpop.f32.mrf.mxu0
        %v3524 = vadd.f32 %v3085, %v3523
        %v3525 = vpop.f32.mrf.mxu0
        %v3526 = vadd.f32 %v3089, %v3525
        %3527 = vdwg.mxu0
        %3528 = vmatprep.subr.mxu0 0.0
        %3529 = vmatpush1.xpose.msra.mxu0 0.0
        %3530 = vmatprep.subr.mxu0 0.0
        %3531 = vmatpush1.xpose.msra.mxu0 0.0
        %3532 = vmatprep.subr.mxu0 0.0
        %3533 = vmatpush1.xpose.msra.mxu0 0.0
        %3534 = vmatprep.subr.mxu0 0.0
        %3535 = vmatpush1.xpose.msra.mxu0 0.0
        %3536 = vmatprep.subr.mxu0 0.0
        %3537 = vmatpush1.xpose.msra.mxu0 0.0
        %3538 = vmatprep.subr.mxu0 0.0
        %3539 = vmatpush1.xpose.msra.mxu0 0.0
        %3540 = vmatprep.subr.mxu0 0.0
        %3541 = vmatpush1.xpose.msra.mxu0 0.0
        %3542 = vmatprep.subr.mxu0 0.0
        %3543 = vmatpush1.xpose.msra.mxu0 0.0
        %3544 = vmatprep.subr.mxu0 0.0
        %3545 = vmatpush1.xpose.msra.mxu0 0.0
        %3546 = vmatprep.subr.mxu0 0.0
        %3547 = vmatpush1.xpose.msra.mxu0 0.0
        %3548 = vmatprep.subr.mxu0 0.0
        %3549 = vmatpush1.xpose.msra.mxu0 0.0
        %3550 = vmatprep.subr.mxu0 0.0
        %3551 = vmatpush1.xpose.msra.mxu0 0.0
        %3552 = vmatprep.subr.mxu0 0.0
        %3553 = vmatpush1.xpose.msra.mxu0 0.0
        %3554 = vmatprep.subr.mxu0 0.0
        %3555 = vmatpush1.xpose.msra.mxu0 0.0
        %3556 = vmatprep.subr.mxu0 0.0
        %3557 = vmatpush1.xpose.msra.mxu0 0.0
        %3558 = vmatprep.subr.mxu0 0.0
        %3559 = vmatpush1.xpose.msra.mxu0 %v3311
        %3560 = vmatprep.subr.mxu0 0.0
        %3561 = vmatpush2.xpose.msra.mxu0 0.0
        %3562 = vmatprep.subr.mxu0 0.0
        %3563 = vmatpush2.xpose.msra.mxu0 0.0
        %3564 = vmatprep.subr.mxu0 0.0
        %3565 = vmatpush2.xpose.msra.mxu0 0.0
        %3566 = vmatprep.subr.mxu0 0.0
        %3567 = vmatpush2.xpose.msra.mxu0 0.0
        %3568 = vmatprep.subr.mxu0 0.0
        %3569 = vmatpush2.xpose.msra.mxu0 0.0
        %3570 = vmatprep.subr.mxu0 0.0
        %3571 = vmatpush2.xpose.msra.mxu0 0.0
        %3572 = vmatprep.subr.mxu0 0.0
        %3573 = vmatpush2.xpose.msra.mxu0 0.0
        %3574 = vmatprep.subr.mxu0 0.0
        %3575 = vmatpush2.xpose.msra.mxu0 0.0
        %3576 = vmatprep.subr.mxu0 0.0
        %3577 = vmatpush2.xpose.msra.mxu0 0.0
        %3578 = vmatprep.subr.mxu0 0.0
        %3579 = vmatpush2.xpose.msra.mxu0 0.0
        %3580 = vmatprep.subr.mxu0 0.0
        %3581 = vmatpush2.xpose.msra.mxu0 0.0
        %3582 = vmatprep.subr.mxu0 0.0
        %3583 = vmatpush2.xpose.msra.mxu0 0.0
        %3584 = vmatprep.subr.mxu0 0.0
        %3585 = vmatpush2.xpose.msra.mxu0 0.0
        %3586 = vmatprep.subr.mxu0 0.0
        %3587 = vmatpush2.xpose.msra.mxu0 0.0
        %3588 = vmatprep.subr.mxu0 0.0
        %3589 = vmatpush2.xpose.msra.mxu0 0.0
        %3590 = vmatprep.subr.mxu0 0.0
        %3591 = vmatpush2.xpose.msra.mxu0 0.0
        %3592 = vmatprep.mubr.f32.mxu0 0.0
        %3593 = vmatmul.mubr.f32.gmra.mxu0 %v3169
        %v3594 = vpop.f32.mrf.mxu0
        %v3595 = vadd.f32 0.0, %v3594
        %v3596 = vpop.f32.mrf.mxu0
        %3597 = vdwg.mxu0
        %v3598 = vmul.f32 %v3595, 0.35355338
        %v3599 = vsel %vm933, %v3598, -1e+30
        %v3600 = vsel %vm1688, %v3599, -inf
        %3601 = vmax.xlane.f32.xlu0 %v3600
        %v3602 = vpop.xlane.xlu0 %3601
        %v3603 = vsub.f32 %v3599, %v3602
        %v3604 = vmul.f32 %v3603, 1.442695
        %v3605 = vpow.pop %v3604
        %v3606 = vsel %vm1688, %v3605, 0.0
        %3607 = vadd.xlane.f32.xlu0 %v3606
        %v3608 = vpop.xlane.xlu0 %3607
        %v3609 = vrcp.pop %v3608
        %v3610 = vmul.f32 %v3605, %v3609
        %v3612 = vsel %vm1688, %v3610, 0
        %3614 = vmatprep.subr.mxu0 0.0
        %3615 = vmatpush1.msra.mxu0 0.0
        %3616 = vmatprep.subr.mxu0 0.0
        %3617 = vmatpush1.msra.mxu0 0.0
        %3618 = vmatprep.subr.mxu0 0.0
        %3619 = vmatpush1.msra.mxu0 0.0
        %3620 = vmatprep.subr.mxu0 0.0
        %3621 = vmatpush1.msra.mxu0 0.0
        %3622 = vmatprep.subr.mxu0 0.0
        %3623 = vmatpush1.msra.mxu0 0.0
        %3624 = vmatprep.subr.mxu0 0.0
        %3625 = vmatpush1.msra.mxu0 0.0
        %3626 = vmatprep.subr.mxu0 0.0
        %3627 = vmatpush1.msra.mxu0 0.0
        %3628 = vmatprep.subr.mxu0 0.0
        %3629 = vmatpush1.msra.mxu0 0.0
        %3630 = vmatprep.subr.mxu0 0.0
        %3631 = vmatpush1.msra.mxu0 0.0
        %3632 = vmatprep.subr.mxu0 0.0
        %3633 = vmatpush1.msra.mxu0 0.0
        %3634 = vmatprep.subr.mxu0 0.0
        %3635 = vmatpush1.msra.mxu0 0.0
        %3636 = vmatprep.subr.mxu0 0.0
        %3637 = vmatpush1.msra.mxu0 0.0
        %3638 = vmatprep.subr.mxu0 0.0
        %3639 = vmatpush1.msra.mxu0 0.0
        %3640 = vmatprep.subr.mxu0 0.0
        %3641 = vmatpush1.msra.mxu0 0.0
        %3642 = vmatprep.subr.mxu0 0.0
        %3643 = vmatpush1.msra.mxu0 0.0
        %3644 = vmatprep.subr.mxu0 0.0
        %3645 = vmatpush1.msra.mxu0 %v3453
        %3646 = vmatprep.subr.mxu0 0.0
        %3647 = vmatpush2.msra.mxu0 0.0
        %3648 = vmatprep.subr.mxu0 0.0
        %3649 = vmatpush2.msra.mxu0 0.0
        %3650 = vmatprep.subr.mxu0 0.0
        %3651 = vmatpush2.msra.mxu0 0.0
        %3652 = vmatprep.subr.mxu0 0.0
        %3653 = vmatpush2.msra.mxu0 0.0
        %3654 = vmatprep.subr.mxu0 0.0
        %3655 = vmatpush2.msra.mxu0 0.0
        %3656 = vmatprep.subr.mxu0 0.0
        %3657 = vmatpush2.msra.mxu0 0.0
        %3658 = vmatprep.subr.mxu0 0.0
        %3659 = vmatpush2.msra.mxu0 0.0
        %3660 = vmatprep.subr.mxu0 0.0
        %3661 = vmatpush2.msra.mxu0 0.0
        %3662 = vmatprep.subr.mxu0 0.0
        %3663 = vmatpush2.msra.mxu0 0.0
        %3664 = vmatprep.subr.mxu0 0.0
        %3665 = vmatpush2.msra.mxu0 0.0
        %3666 = vmatprep.subr.mxu0 0.0
        %3667 = vmatpush2.msra.mxu0 0.0
        %3668 = vmatprep.subr.mxu0 0.0
        %3669 = vmatpush2.msra.mxu0 0.0
        %3670 = vmatprep.subr.mxu0 0.0
        %3671 = vmatpush2.msra.mxu0 0.0
        %3672 = vmatprep.subr.mxu0 0.0
        %3673 = vmatpush2.msra.mxu0 0.0
        %3674 = vmatprep.subr.mxu0 0.0
        %3675 = vmatpush2.msra.mxu0 0.0
        %3676 = vmatprep.subr.mxu0 0.0
        %3677 = vmatpush2.msra.mxu0 0.0
        %3678 = vmatprep.mubr.f32.mxu0 0.0
        %3679 = vmatmul.mubr.f32.gmra.mxu0 %v3612
        %v3680 = vpop.f32.mrf.mxu0
        %v3681 = vadd.f32 0.0, %v3680
        %v3682 = vpop.f32.mrf.mxu0
        %3683 = vdwg.mxu0
        %s3684 = scalar_lea.vmem [#allocation13], 512
        %v3685 = vld [vmem:[%s3684] sm:$0xff]
        %v3686 = vld [vmem:[%s3684 + $0x8] sm:$0xff]
        %v3687 = vld [vmem:[%s3684 + $0x10] sm:$0xff]
        %v3688 = vld [vmem:[%s3684 + $0x18] sm:$0xff]
        %v3689 = vld [vmem:[%s3684 + $0x20] sm:$0xff]
        %v3690 = vld [vmem:[%s3684 + $0x28] sm:$0xff]
        %v3691 = vld [vmem:[%s3684 + $0x30] sm:$0xff]
        %v3692 = vld [vmem:[%s3684 + $0x38] sm:$0xff]
        %v3693 = vld [vmem:[%s3684 + $0x40] sm:$0xff]
        %v3694 = vld [vmem:[%s3684 + $0x48] sm:$0xff]
        %v3695 = vld [vmem:[%s3684 + $0x50] sm:$0xff]
        %v3696 = vld [vmem:[%s3684 + $0x58] sm:$0xff]
        %v3697 = vld [vmem:[%s3684 + $0x60] sm:$0xff]
        %v3698 = vld [vmem:[%s3684 + $0x68] sm:$0xff]
        %v3699 = vld [vmem:[%s3684 + $0x70] sm:$0xff]
        %v3700 = vld [vmem:[%s3684 + $0x78] sm:$0xff]
        %3701 = vmatprep.subr.mxu0 0.0
        %3702 = vmatpush1.xpose.msra.mxu0 0.0
        %3703 = vmatprep.subr.mxu0 0.0
        %3704 = vmatpush1.xpose.msra.mxu0 0.0
        %3705 = vmatprep.subr.mxu0 0.0
        %3706 = vmatpush1.xpose.msra.mxu0 0.0
        %3707 = vmatprep.subr.mxu0 0.0
        %3708 = vmatpush1.xpose.msra.mxu0 0.0
        %3709 = vmatprep.subr.mxu0 0.0
        %3710 = vmatpush1.xpose.msra.mxu0 0.0
        %3711 = vmatprep.subr.mxu0 0.0
        %3712 = vmatpush1.xpose.msra.mxu0 0.0
        %3713 = vmatprep.subr.mxu0 0.0
        %3714 = vmatpush1.xpose.msra.mxu0 0.0
        %3715 = vmatprep.subr.mxu0 0.0
        %3716 = vmatpush1.xpose.msra.mxu0 0.0
        %3717 = vmatprep.subr.mxu0 0.0
        %3718 = vmatpush1.xpose.msra.mxu0 0.0
        %3719 = vmatprep.subr.mxu0 0.0
        %3720 = vmatpush1.xpose.msra.mxu0 0.0
        %3721 = vmatprep.subr.mxu0 0.0
        %3722 = vmatpush1.xpose.msra.mxu0 0.0
        %3723 = vmatprep.subr.mxu0 0.0
        %3724 = vmatpush1.xpose.msra.mxu0 0.0
        %3725 = vmatprep.subr.mxu0 0.0
        %3726 = vmatpush1.xpose.msra.mxu0 0.0
        %3727 = vmatprep.subr.mxu0 0.0
        %3728 = vmatpush1.xpose.msra.mxu0 0.0
        %3729 = vmatprep.subr.mxu0 0.0
        %3730 = vmatpush1.xpose.msra.mxu0 0.0
        %3731 = vmatprep.subr.mxu0 0.0
        %3732 = vmatpush1.xpose.msra.mxu0 %v3313
        %3733 = vmatprep.subr.mxu0 0.0
        %3734 = vmatpush2.xpose.msra.mxu0 0.0
        %3735 = vmatprep.subr.mxu0 0.0
        %3736 = vmatpush2.xpose.msra.mxu0 0.0
        %3737 = vmatprep.subr.mxu0 0.0
        %3738 = vmatpush2.xpose.msra.mxu0 0.0
        %3739 = vmatprep.subr.mxu0 0.0
        %3740 = vmatpush2.xpose.msra.mxu0 0.0
        %3741 = vmatprep.subr.mxu0 0.0
        %3742 = vmatpush2.xpose.msra.mxu0 0.0
        %3743 = vmatprep.subr.mxu0 0.0
        %3744 = vmatpush2.xpose.msra.mxu0 0.0
        %3745 = vmatprep.subr.mxu0 0.0
        %3746 = vmatpush2.xpose.msra.mxu0 0.0
        %3747 = vmatprep.subr.mxu0 0.0
        %3748 = vmatpush2.xpose.msra.mxu0 0.0
        %3749 = vmatprep.subr.mxu0 0.0
        %3750 = vmatpush2.xpose.msra.mxu0 0.0
        %3751 = vmatprep.subr.mxu0 0.0
        %3752 = vmatpush2.xpose.msra.mxu0 0.0
        %3753 = vmatprep.subr.mxu0 0.0
        %3754 = vmatpush2.xpose.msra.mxu0 0.0
        %3755 = vmatprep.subr.mxu0 0.0
        %3756 = vmatpush2.xpose.msra.mxu0 0.0
        %3757 = vmatprep.subr.mxu0 0.0
        %3758 = vmatpush2.xpose.msra.mxu0 0.0
        %3759 = vmatprep.subr.mxu0 0.0
        %3760 = vmatpush2.xpose.msra.mxu0 0.0
        %3761 = vmatprep.subr.mxu0 0.0
        %3762 = vmatpush2.xpose.msra.mxu0 0.0
        %3763 = vmatprep.subr.mxu0 0.0
        %3764 = vmatpush2.xpose.msra.mxu0 0.0
        %3765 = vmatprep.mubr.f32.mxu0 0.0
        %3766 = vmatmul.mubr.f32.gmra.mxu0 %v3171
        %v3767 = vpop.f32.mrf.mxu0
        %v3768 = vadd.f32 0.0, %v3767
        %v3769 = vpop.f32.mrf.mxu0
        %3770 = vdwg.mxu0
        %v3771 = vmul.f32 %v3768, 0.35355338
        %v3772 = vsel %vm933, %v3771, -1e+30
        %v3773 = vsel %vm1688, %v3772, -inf
        %3774 = vmax.xlane.f32.xlu0 %v3773
        %v3775 = vpop.xlane.xlu0 %3774
        %v3776 = vsub.f32 %v3772, %v3775
        %v3777 = vmul.f32 %v3776, 1.442695
        %v3778 = vpow.pop %v3777
        %v3779 = vsel %vm1688, %v3778, 0.0
        %3780 = vadd.xlane.f32.xlu0 %v3779
        %v3781 = vpop.xlane.xlu0 %3780
        %v3782 = vrcp.pop %v3781
        %v3783 = vmul.f32 %v3778, %v3782
        %v3785 = vsel %vm1688, %v3783, 0
        %3787 = vmatprep.subr.mxu0 0.0
        %3788 = vmatpush1.msra.mxu0 0.0
        %3789 = vmatprep.subr.mxu0 0.0
        %3790 = vmatpush1.msra.mxu0 0.0
        %3791 = vmatprep.subr.mxu0 0.0
        %3792 = vmatpush1.msra.mxu0 0.0
        %3793 = vmatprep.subr.mxu0 0.0
        %3794 = vmatpush1.msra.mxu0 0.0
        %3795 = vmatprep.subr.mxu0 0.0
        %3796 = vmatpush1.msra.mxu0 0.0
        %3797 = vmatprep.subr.mxu0 0.0
        %3798 = vmatpush1.msra.mxu0 0.0
        %3799 = vmatprep.subr.mxu0 0.0
        %3800 = vmatpush1.msra.mxu0 0.0
        %3801 = vmatprep.subr.mxu0 0.0
        %3802 = vmatpush1.msra.mxu0 0.0
        %3803 = vmatprep.subr.mxu0 0.0
        %3804 = vmatpush1.msra.mxu0 0.0
        %3805 = vmatprep.subr.mxu0 0.0
        %3806 = vmatpush1.msra.mxu0 0.0
        %3807 = vmatprep.subr.mxu0 0.0
        %3808 = vmatpush1.msra.mxu0 0.0
        %3809 = vmatprep.subr.mxu0 0.0
        %3810 = vmatpush1.msra.mxu0 0.0
        %3811 = vmatprep.subr.mxu0 0.0
        %3812 = vmatpush1.msra.mxu0 0.0
        %3813 = vmatprep.subr.mxu0 0.0
        %3814 = vmatpush1.msra.mxu0 0.0
        %3815 = vmatprep.subr.mxu0 0.0
        %3816 = vmatpush1.msra.mxu0 0.0
        %3817 = vmatprep.subr.mxu0 0.0
        %3818 = vmatpush1.msra.mxu0 %v3455
        %3819 = vmatprep.subr.mxu0 0.0
        %3820 = vmatpush2.msra.mxu0 0.0
        %3821 = vmatprep.subr.mxu0 0.0
        %3822 = vmatpush2.msra.mxu0 0.0
        %3823 = vmatprep.subr.mxu0 0.0
        %3824 = vmatpush2.msra.mxu0 0.0
        %3825 = vmatprep.subr.mxu0 0.0
        %3826 = vmatpush2.msra.mxu0 0.0
        %3827 = vmatprep.subr.mxu0 0.0
        %3828 = vmatpush2.msra.mxu0 0.0
        %3829 = vmatprep.subr.mxu0 0.0
        %3830 = vmatpush2.msra.mxu0 0.0
        %3831 = vmatprep.subr.mxu0 0.0
        %3832 = vmatpush2.msra.mxu0 0.0
        %3833 = vmatprep.subr.mxu0 0.0
        %3834 = vmatpush2.msra.mxu0 0.0
        %3835 = vmatprep.subr.mxu0 0.0
        %3836 = vmatpush2.msra.mxu0 0.0
        %3837 = vmatprep.subr.mxu0 0.0
        %3838 = vmatpush2.msra.mxu0 0.0
        %3839 = vmatprep.subr.mxu0 0.0
        %3840 = vmatpush2.msra.mxu0 0.0
        %3841 = vmatprep.subr.mxu0 0.0
        %3842 = vmatpush2.msra.mxu0 0.0
        %3843 = vmatprep.subr.mxu0 0.0
        %3844 = vmatpush2.msra.mxu0 0.0
        %3845 = vmatprep.subr.mxu0 0.0
        %3846 = vmatpush2.msra.mxu0 0.0
        %3847 = vmatprep.subr.mxu0 0.0
        %3848 = vmatpush2.msra.mxu0 0.0
        %3849 = vmatprep.subr.mxu0 0.0
        %3850 = vmatpush2.msra.mxu0 0.0
        %3851 = vmatprep.mubr.f32.mxu0 0.0
        %3852 = vmatmul.mubr.f32.gmra.mxu0 %v3785
        %v3853 = vpop.f32.mrf.mxu0
        %v3854 = vadd.f32 0.0, %v3853
        %v3855 = vpop.f32.mrf.mxu0
        %3856 = vdwg.mxu0
        %s3857 = scalar_lea.vmem [#allocation13], 640
        %v3858 = vld [vmem:[%s3857] sm:$0xff]
        %v3859 = vld [vmem:[%s3857 + $0x8] sm:$0xff]
        %v3860 = vld [vmem:[%s3857 + $0x10] sm:$0xff]
        %v3861 = vld [vmem:[%s3857 + $0x18] sm:$0xff]
        %v3862 = vld [vmem:[%s3857 + $0x20] sm:$0xff]
        %v3863 = vld [vmem:[%s3857 + $0x28] sm:$0xff]
        %v3864 = vld [vmem:[%s3857 + $0x30] sm:$0xff]
        %v3865 = vld [vmem:[%s3857 + $0x38] sm:$0xff]
        %v3866 = vld [vmem:[%s3857 + $0x40] sm:$0xff]
        %v3867 = vld [vmem:[%s3857 + $0x48] sm:$0xff]
        %v3868 = vld [vmem:[%s3857 + $0x50] sm:$0xff]
        %v3869 = vld [vmem:[%s3857 + $0x58] sm:$0xff]
        %v3870 = vld [vmem:[%s3857 + $0x60] sm:$0xff]
        %v3871 = vld [vmem:[%s3857 + $0x68] sm:$0xff]
        %v3872 = vld [vmem:[%s3857 + $0x70] sm:$0xff]
        %v3873 = vld [vmem:[%s3857 + $0x78] sm:$0xff]
        %3874 = vmatprep.subr.mxu0 0.0
        %3875 = vmatpush1.msra.mxu0 %v3873
        %3876 = vmatprep.subr.mxu0 0.0
        %3877 = vmatpush1.msra.mxu0 %v3872
        %3878 = vmatprep.subr.mxu0 0.0
        %3879 = vmatpush1.msra.mxu0 %v3871
        %3880 = vmatprep.subr.mxu0 0.0
        %3881 = vmatpush1.msra.mxu0 %v3870
        %3882 = vmatprep.subr.mxu0 0.0
        %3883 = vmatpush1.msra.mxu0 %v3869
        %3884 = vmatprep.subr.mxu0 0.0
        %3885 = vmatpush1.msra.mxu0 %v3868
        %3886 = vmatprep.subr.mxu0 0.0
        %3887 = vmatpush1.msra.mxu0 %v3867
        %3888 = vmatprep.subr.mxu0 0.0
        %3889 = vmatpush1.msra.mxu0 %v3866
        %3890 = vmatprep.subr.mxu0 0.0
        %3891 = vmatpush1.msra.mxu0 %v3865
        %3892 = vmatprep.subr.mxu0 0.0
        %3893 = vmatpush1.msra.mxu0 %v3864
        %3894 = vmatprep.subr.mxu0 0.0
        %3895 = vmatpush1.msra.mxu0 %v3863
        %3896 = vmatprep.subr.mxu0 0.0
        %3897 = vmatpush1.msra.mxu0 %v3862
        %3898 = vmatprep.subr.mxu0 0.0
        %3899 = vmatpush1.msra.mxu0 %v3861
        %3900 = vmatprep.subr.mxu0 0.0
        %3901 = vmatpush1.msra.mxu0 %v3860
        %3902 = vmatprep.subr.mxu0 0.0
        %3903 = vmatpush1.msra.mxu0 %v3859
        %3904 = vmatprep.subr.mxu0 0.0
        %3905 = vmatpush1.msra.mxu0 %v3858
        %3906 = vmatprep.subr.mxu0 0.0
        %3907 = vmatpush2.msra.mxu0 0.0
        %3908 = vmatprep.subr.mxu0 0.0
        %3909 = vmatpush2.msra.mxu0 0.0
        %3910 = vmatprep.subr.mxu0 0.0
        %3911 = vmatpush2.msra.mxu0 0.0
        %3912 = vmatprep.subr.mxu0 0.0
        %3913 = vmatpush2.msra.mxu0 0.0
        %3914 = vmatprep.subr.mxu0 0.0
        %3915 = vmatpush2.msra.mxu0 0.0
        %3916 = vmatprep.subr.mxu0 0.0
        %3917 = vmatpush2.msra.mxu0 0.0
        %3918 = vmatprep.subr.mxu0 0.0
        %3919 = vmatpush2.msra.mxu0 0.0
        %3920 = vmatprep.subr.mxu0 0.0
        %3921 = vmatpush2.msra.mxu0 0.0
        %3922 = vmatprep.subr.mxu0 0.0
        %3923 = vmatpush2.msra.mxu0 0.0
        %3924 = vmatprep.subr.mxu0 0.0
        %3925 = vmatpush2.msra.mxu0 0.0
        %3926 = vmatprep.subr.mxu0 0.0
        %3927 = vmatpush2.msra.mxu0 0.0
        %3928 = vmatprep.subr.mxu0 0.0
        %3929 = vmatpush2.msra.mxu0 0.0
        %3930 = vmatprep.subr.mxu0 0.0
        %3931 = vmatpush2.msra.mxu0 0.0
        %3932 = vmatprep.subr.mxu0 0.0
        %3933 = vmatpush2.msra.mxu0 0.0
        %3934 = vmatprep.subr.mxu0 0.0
        %3935 = vmatpush2.msra.mxu0 0.0
        %3936 = vmatprep.subr.mxu0 0.0
        %3937 = vmatpush2.msra.mxu0 0.0
        %3938 = vmatprep.mubr.f32.mxu0 0.0
        %3939 = vmatmul.mubr.f32.gmra.mxu0 %v3854
        %v3940 = vpop.f32.mrf.mxu0
        %v3941 = vadd.f32 0.0, %v3940
        %v3942 = vpop.f32.mrf.mxu0
        %3943 = vdwg.mxu0
        %3944 = vmatprep.subr.mxu0 0.0
        %3945 = vmatpush1.msra.mxu0 %v3700
        %3946 = vmatprep.subr.mxu0 0.0
        %3947 = vmatpush1.msra.mxu0 %v3699
        %3948 = vmatprep.subr.mxu0 0.0
        %3949 = vmatpush1.msra.mxu0 %v3698
        %3950 = vmatprep.subr.mxu0 0.0
        %3951 = vmatpush1.msra.mxu0 %v3697
        %3952 = vmatprep.subr.mxu0 0.0
        %3953 = vmatpush1.msra.mxu0 %v3696
        %3954 = vmatprep.subr.mxu0 0.0
        %3955 = vmatpush1.msra.mxu0 %v3695
        %3956 = vmatprep.subr.mxu0 0.0
        %3957 = vmatpush1.msra.mxu0 %v3694
        %3958 = vmatprep.subr.mxu0 0.0
        %3959 = vmatpush1.msra.mxu0 %v3693
        %3960 = vmatprep.subr.mxu0 0.0
        %3961 = vmatpush1.msra.mxu0 %v3692
        %3962 = vmatprep.subr.mxu0 0.0
        %3963 = vmatpush1.msra.mxu0 %v3691
        %3964 = vmatprep.subr.mxu0 0.0
        %3965 = vmatpush1.msra.mxu0 %v3690
        %3966 = vmatprep.subr.mxu0 0.0
        %3967 = vmatpush1.msra.mxu0 %v3689
        %3968 = vmatprep.subr.mxu0 0.0
        %3969 = vmatpush1.msra.mxu0 %v3688
        %3970 = vmatprep.subr.mxu0 0.0
        %3971 = vmatpush1.msra.mxu0 %v3687
        %3972 = vmatprep.subr.mxu0 0.0
        %3973 = vmatpush1.msra.mxu0 %v3686
        %3974 = vmatprep.subr.mxu0 0.0
        %3975 = vmatpush1.msra.mxu0 %v3685
        %3976 = vmatprep.subr.mxu0 0.0
        %3977 = vmatpush2.msra.mxu0 0.0
        %3978 = vmatprep.subr.mxu0 0.0
        %3979 = vmatpush2.msra.mxu0 0.0
        %3980 = vmatprep.subr.mxu0 0.0
        %3981 = vmatpush2.msra.mxu0 0.0
        %3982 = vmatprep.subr.mxu0 0.0
        %3983 = vmatpush2.msra.mxu0 0.0
        %3984 = vmatprep.subr.mxu0 0.0
        %3985 = vmatpush2.msra.mxu0 0.0
        %3986 = vmatprep.subr.mxu0 0.0
        %3987 = vmatpush2.msra.mxu0 0.0
        %3988 = vmatprep.subr.mxu0 0.0
        %3989 = vmatpush2.msra.mxu0 0.0
        %3990 = vmatprep.subr.mxu0 0.0
        %3991 = vmatpush2.msra.mxu0 0.0
        %3992 = vmatprep.subr.mxu0 0.0
        %3993 = vmatpush2.msra.mxu0 0.0
        %3994 = vmatprep.subr.mxu0 0.0
        %3995 = vmatpush2.msra.mxu0 0.0
        %3996 = vmatprep.subr.mxu0 0.0
        %3997 = vmatpush2.msra.mxu0 0.0
        %3998 = vmatprep.subr.mxu0 0.0
        %3999 = vmatpush2.msra.mxu0 0.0
        %4000 = vmatprep.subr.mxu0 0.0
        %4001 = vmatpush2.msra.mxu0 0.0
        %4002 = vmatprep.subr.mxu0 0.0
        %4003 = vmatpush2.msra.mxu0 0.0
        %4004 = vmatprep.subr.mxu0 0.0
        %4005 = vmatpush2.msra.mxu0 0.0
        %4006 = vmatprep.subr.mxu0 0.0
        %4007 = vmatpush2.msra.mxu0 0.0
        %4008 = vmatprep.mubr.f32.mxu0 0.0
        %4009 = vmatmul.mubr.f32.gmra.mxu0 %v3681
        %v4010 = vpop.f32.mrf.mxu0
        %v4011 = vadd.f32 %v3941, %v4010
        %v4012 = vpop.f32.mrf.mxu0
        %4013 = vdwg.mxu0
        %4014 = vmatprep.subr.mxu0 0.0
        %4015 = vmatpush1.xpose.msra.mxu0 0.0
        %4016 = vmatprep.subr.mxu0 0.0
        %4017 = vmatpush1.xpose.msra.mxu0 0.0
        %4018 = vmatprep.subr.mxu0 0.0
        %4019 = vmatpush1.xpose.msra.mxu0 0.0
        %4020 = vmatprep.subr.mxu0 0.0
        %4021 = vmatpush1.xpose.msra.mxu0 0.0
        %4022 = vmatprep.subr.mxu0 0.0
        %4023 = vmatpush1.xpose.msra.mxu0 0.0
        %4024 = vmatprep.subr.mxu0 0.0
        %4025 = vmatpush1.xpose.msra.mxu0 0.0
        %4026 = vmatprep.subr.mxu0 0.0
        %4027 = vmatpush1.xpose.msra.mxu0 0.0
        %4028 = vmatprep.subr.mxu0 0.0
        %4029 = vmatpush1.xpose.msra.mxu0 0.0
        %4030 = vmatprep.subr.mxu0 0.0
        %4031 = vmatpush1.xpose.msra.mxu0 0.0
        %4032 = vmatprep.subr.mxu0 0.0
        %4033 = vmatpush1.xpose.msra.mxu0 0.0
        %4034 = vmatprep.subr.mxu0 0.0
        %4035 = vmatpush1.xpose.msra.mxu0 0.0
        %4036 = vmatprep.subr.mxu0 0.0
        %4037 = vmatpush1.xpose.msra.mxu0 0.0
        %4038 = vmatprep.subr.mxu0 0.0
        %4039 = vmatpush1.xpose.msra.mxu0 0.0
        %4040 = vmatprep.subr.mxu0 0.0
        %4041 = vmatpush1.xpose.msra.mxu0 0.0
        %4042 = vmatprep.subr.mxu0 0.0
        %4043 = vmatpush1.xpose.msra.mxu0 0.0
        %4044 = vmatprep.subr.mxu0 0.0
        %4045 = vmatpush1.xpose.msra.mxu0 %v3382
        %4046 = vmatprep.subr.mxu0 0.0
        %4047 = vmatpush2.xpose.msra.mxu0 0.0
        %4048 = vmatprep.subr.mxu0 0.0
        %4049 = vmatpush2.xpose.msra.mxu0 0.0
        %4050 = vmatprep.subr.mxu0 0.0
        %4051 = vmatpush2.xpose.msra.mxu0 0.0
        %4052 = vmatprep.subr.mxu0 0.0
        %4053 = vmatpush2.xpose.msra.mxu0 0.0
        %4054 = vmatprep.subr.mxu0 0.0
        %4055 = vmatpush2.xpose.msra.mxu0 0.0
        %4056 = vmatprep.subr.mxu0 0.0
        %4057 = vmatpush2.xpose.msra.mxu0 0.0
        %4058 = vmatprep.subr.mxu0 0.0
        %4059 = vmatpush2.xpose.msra.mxu0 0.0
        %4060 = vmatprep.subr.mxu0 0.0
        %4061 = vmatpush2.xpose.msra.mxu0 0.0
        %4062 = vmatprep.subr.mxu0 0.0
        %4063 = vmatpush2.xpose.msra.mxu0 0.0
        %4064 = vmatprep.subr.mxu0 0.0
        %4065 = vmatpush2.xpose.msra.mxu0 0.0
        %4066 = vmatprep.subr.mxu0 0.0
        %4067 = vmatpush2.xpose.msra.mxu0 0.0
        %4068 = vmatprep.subr.mxu0 0.0
        %4069 = vmatpush2.xpose.msra.mxu0 0.0
        %4070 = vmatprep.subr.mxu0 0.0
        %4071 = vmatpush2.xpose.msra.mxu0 0.0
        %4072 = vmatprep.subr.mxu0 0.0
        %4073 = vmatpush2.xpose.msra.mxu0 0.0
        %4074 = vmatprep.subr.mxu0 0.0
        %4075 = vmatpush2.xpose.msra.mxu0 0.0
        %4076 = vmatprep.subr.mxu0 0.0
        %4077 = vmatpush2.xpose.msra.mxu0 0.0
        %4078 = vmatprep.mubr.f32.mxu0 0.0
        %4079 = vmatmul.mubr.f32.gmra.mxu0 %v3240
        %v4080 = vpop.f32.mrf.mxu0
        %v4081 = vadd.f32 0.0, %v4080
        %v4082 = vpop.f32.mrf.mxu0
        %4083 = vdwg.mxu0
        %v4084 = vmul.f32 %v4081, 0.35355338
        %v4085 = vsel %vm933, %v4084, -1e+30
        %v4086 = vsel %vm1688, %v4085, -inf
        %4087 = vmax.xlane.f32.xlu0 %v4086
        %v4088 = vpop.xlane.xlu0 %4087
        %v4089 = vsub.f32 %v4085, %v4088
        %v4090 = vmul.f32 %v4089, 1.442695
        %v4091 = vpow.pop %v4090
        %v4092 = vsel %vm1688, %v4091, 0.0
        %4093 = vadd.xlane.f32.xlu0 %v4092
        %v4094 = vpop.xlane.xlu0 %4093
        %v4095 = vrcp.pop %v4094
        %v4096 = vmul.f32 %v4091, %v4095
        %v4098 = vsel %vm1688, %v4096, 0
        %4100 = vmatprep.subr.mxu0 0.0
        %4101 = vmatpush1.msra.mxu0 0.0
        %4102 = vmatprep.subr.mxu0 0.0
        %4103 = vmatpush1.msra.mxu0 0.0
        %4104 = vmatprep.subr.mxu0 0.0
        %4105 = vmatpush1.msra.mxu0 0.0
        %4106 = vmatprep.subr.mxu0 0.0
        %4107 = vmatpush1.msra.mxu0 0.0
        %4108 = vmatprep.subr.mxu0 0.0
        %4109 = vmatpush1.msra.mxu0 0.0
        %4110 = vmatprep.subr.mxu0 0.0
        %4111 = vmatpush1.msra.mxu0 0.0
        %4112 = vmatprep.subr.mxu0 0.0
        %4113 = vmatpush1.msra.mxu0 0.0
        %4114 = vmatprep.subr.mxu0 0.0
        %4115 = vmatpush1.msra.mxu0 0.0
        %4116 = vmatprep.subr.mxu0 0.0
        %4117 = vmatpush1.msra.mxu0 0.0
        %4118 = vmatprep.subr.mxu0 0.0
        %4119 = vmatpush1.msra.mxu0 0.0
        %4120 = vmatprep.subr.mxu0 0.0
        %4121 = vmatpush1.msra.mxu0 0.0
        %4122 = vmatprep.subr.mxu0 0.0
        %4123 = vmatpush1.msra.mxu0 0.0
        %4124 = vmatprep.subr.mxu0 0.0
        %4125 = vmatpush1.msra.mxu0 0.0
        %4126 = vmatprep.subr.mxu0 0.0
        %4127 = vmatpush1.msra.mxu0 0.0
        %4128 = vmatprep.subr.mxu0 0.0
        %4129 = vmatpush1.msra.mxu0 0.0
        %4130 = vmatprep.subr.mxu0 0.0
        %4131 = vmatpush1.msra.mxu0 %v3524
        %4132 = vmatprep.subr.mxu0 0.0
        %4133 = vmatpush2.msra.mxu0 0.0
        %4134 = vmatprep.subr.mxu0 0.0
        %4135 = vmatpush2.msra.mxu0 0.0
        %4136 = vmatprep.subr.mxu0 0.0
        %4137 = vmatpush2.msra.mxu0 0.0
        %4138 = vmatprep.subr.mxu0 0.0
        %4139 = vmatpush2.msra.mxu0 0.0
        %4140 = vmatprep.subr.mxu0 0.0
        %4141 = vmatpush2.msra.mxu0 0.0
        %4142 = vmatprep.subr.mxu0 0.0
        %4143 = vmatpush2.msra.mxu0 0.0
        %4144 = vmatprep.subr.mxu0 0.0
        %4145 = vmatpush2.msra.mxu0 0.0
        %4146 = vmatprep.subr.mxu0 0.0
        %4147 = vmatpush2.msra.mxu0 0.0
        %4148 = vmatprep.subr.mxu0 0.0
        %4149 = vmatpush2.msra.mxu0 0.0
        %4150 = vmatprep.subr.mxu0 0.0
        %4151 = vmatpush2.msra.mxu0 0.0
        %4152 = vmatprep.subr.mxu0 0.0
        %4153 = vmatpush2.msra.mxu0 0.0
        %4154 = vmatprep.subr.mxu0 0.0
        %4155 = vmatpush2.msra.mxu0 0.0
        %4156 = vmatprep.subr.mxu0 0.0
        %4157 = vmatpush2.msra.mxu0 0.0
        %4158 = vmatprep.subr.mxu0 0.0
        %4159 = vmatpush2.msra.mxu0 0.0
        %4160 = vmatprep.subr.mxu0 0.0
        %4161 = vmatpush2.msra.mxu0 0.0
        %4162 = vmatprep.subr.mxu0 0.0
        %4163 = vmatpush2.msra.mxu0 0.0
        %4164 = vmatprep.mubr.f32.mxu0 0.0
        %4165 = vmatmul.mubr.f32.gmra.mxu0 %v4098
        %v4166 = vpop.f32.mrf.mxu0
        %v4167 = vadd.f32 0.0, %v4166
        %v4168 = vpop.f32.mrf.mxu0
        %4169 = vdwg.mxu0
        %s4170 = scalar_lea.vmem [#allocation13], 768
        %v4171 = vld [vmem:[%s4170] sm:$0xff]
        %v4172 = vld [vmem:[%s4170 + $0x8] sm:$0xff]
        %v4173 = vld [vmem:[%s4170 + $0x10] sm:$0xff]
        %v4174 = vld [vmem:[%s4170 + $0x18] sm:$0xff]
        %v4175 = vld [vmem:[%s4170 + $0x20] sm:$0xff]
        %v4176 = vld [vmem:[%s4170 + $0x28] sm:$0xff]
        %v4177 = vld [vmem:[%s4170 + $0x30] sm:$0xff]
        %v4178 = vld [vmem:[%s4170 + $0x38] sm:$0xff]
        %v4179 = vld [vmem:[%s4170 + $0x40] sm:$0xff]
        %v4180 = vld [vmem:[%s4170 + $0x48] sm:$0xff]
        %v4181 = vld [vmem:[%s4170 + $0x50] sm:$0xff]
        %v4182 = vld [vmem:[%s4170 + $0x58] sm:$0xff]
        %v4183 = vld [vmem:[%s4170 + $0x60] sm:$0xff]
        %v4184 = vld [vmem:[%s4170 + $0x68] sm:$0xff]
        %v4185 = vld [vmem:[%s4170 + $0x70] sm:$0xff]
        %v4186 = vld [vmem:[%s4170 + $0x78] sm:$0xff]
        %4187 = vmatprep.subr.mxu0 0.0
        %4188 = vmatpush1.msra.mxu0 %v4186
        %4189 = vmatprep.subr.mxu0 0.0
        %4190 = vmatpush1.msra.mxu0 %v4185
        %4191 = vmatprep.subr.mxu0 0.0
        %4192 = vmatpush1.msra.mxu0 %v4184
        %4193 = vmatprep.subr.mxu0 0.0
        %4194 = vmatpush1.msra.mxu0 %v4183
        %4195 = vmatprep.subr.mxu0 0.0
        %4196 = vmatpush1.msra.mxu0 %v4182
        %4197 = vmatprep.subr.mxu0 0.0
        %4198 = vmatpush1.msra.mxu0 %v4181
        %4199 = vmatprep.subr.mxu0 0.0
        %4200 = vmatpush1.msra.mxu0 %v4180
        %4201 = vmatprep.subr.mxu0 0.0
        %4202 = vmatpush1.msra.mxu0 %v4179
        %4203 = vmatprep.subr.mxu0 0.0
        %4204 = vmatpush1.msra.mxu0 %v4178
        %4205 = vmatprep.subr.mxu0 0.0
        %4206 = vmatpush1.msra.mxu0 %v4177
        %4207 = vmatprep.subr.mxu0 0.0
        %4208 = vmatpush1.msra.mxu0 %v4176
        %4209 = vmatprep.subr.mxu0 0.0
        %4210 = vmatpush1.msra.mxu0 %v4175
        %4211 = vmatprep.subr.mxu0 0.0
        %4212 = vmatpush1.msra.mxu0 %v4174
        %4213 = vmatprep.subr.mxu0 0.0
        %4214 = vmatpush1.msra.mxu0 %v4173
        %4215 = vmatprep.subr.mxu0 0.0
        %4216 = vmatpush1.msra.mxu0 %v4172
        %4217 = vmatprep.subr.mxu0 0.0
        %4218 = vmatpush1.msra.mxu0 %v4171
        %4219 = vmatprep.subr.mxu0 0.0
        %4220 = vmatpush2.msra.mxu0 0.0
        %4221 = vmatprep.subr.mxu0 0.0
        %4222 = vmatpush2.msra.mxu0 0.0
        %4223 = vmatprep.subr.mxu0 0.0
        %4224 = vmatpush2.msra.mxu0 0.0
        %4225 = vmatprep.subr.mxu0 0.0
        %4226 = vmatpush2.msra.mxu0 0.0
        %4227 = vmatprep.subr.mxu0 0.0
        %4228 = vmatpush2.msra.mxu0 0.0
        %4229 = vmatprep.subr.mxu0 0.0
        %4230 = vmatpush2.msra.mxu0 0.0
        %4231 = vmatprep.subr.mxu0 0.0
        %4232 = vmatpush2.msra.mxu0 0.0
        %4233 = vmatprep.subr.mxu0 0.0
        %4234 = vmatpush2.msra.mxu0 0.0
        %4235 = vmatprep.subr.mxu0 0.0
        %4236 = vmatpush2.msra.mxu0 0.0
        %4237 = vmatprep.subr.mxu0 0.0
        %4238 = vmatpush2.msra.mxu0 0.0
        %4239 = vmatprep.subr.mxu0 0.0
        %4240 = vmatpush2.msra.mxu0 0.0
        %4241 = vmatprep.subr.mxu0 0.0
        %4242 = vmatpush2.msra.mxu0 0.0
        %4243 = vmatprep.subr.mxu0 0.0
        %4244 = vmatpush2.msra.mxu0 0.0
        %4245 = vmatprep.subr.mxu0 0.0
        %4246 = vmatpush2.msra.mxu0 0.0
        %4247 = vmatprep.subr.mxu0 0.0
        %4248 = vmatpush2.msra.mxu0 0.0
        %4249 = vmatprep.subr.mxu0 0.0
        %4250 = vmatpush2.msra.mxu0 0.0
        %4251 = vmatprep.mubr.f32.mxu0 0.0
        %4252 = vmatmul.mubr.f32.gmra.mxu0 %v4167
        %v4253 = vpop.f32.mrf.mxu0
        %v4254 = vadd.f32 0.0, %v4253
        %v4255 = vpop.f32.mrf.mxu0
        %4256 = vdwg.mxu0
        %v4257 = vadd.f32 %v4011, %v4254
        %4258 = vmatprep.subr.mxu0 0.0
        %4259 = vmatpush1.xpose.msra.mxu0 0.0
        %4260 = vmatprep.subr.mxu0 0.0
        %4261 = vmatpush1.xpose.msra.mxu0 0.0
        %4262 = vmatprep.subr.mxu0 0.0
        %4263 = vmatpush1.xpose.msra.mxu0 0.0
        %4264 = vmatprep.subr.mxu0 0.0
        %4265 = vmatpush1.xpose.msra.mxu0 0.0
        %4266 = vmatprep.subr.mxu0 0.0
        %4267 = vmatpush1.xpose.msra.mxu0 0.0
        %4268 = vmatprep.subr.mxu0 0.0
        %4269 = vmatpush1.xpose.msra.mxu0 0.0
        %4270 = vmatprep.subr.mxu0 0.0
        %4271 = vmatpush1.xpose.msra.mxu0 0.0
        %4272 = vmatprep.subr.mxu0 0.0
        %4273 = vmatpush1.xpose.msra.mxu0 0.0
        %4274 = vmatprep.subr.mxu0 0.0
        %4275 = vmatpush1.xpose.msra.mxu0 0.0
        %4276 = vmatprep.subr.mxu0 0.0
        %4277 = vmatpush1.xpose.msra.mxu0 0.0
        %4278 = vmatprep.subr.mxu0 0.0
        %4279 = vmatpush1.xpose.msra.mxu0 0.0
        %4280 = vmatprep.subr.mxu0 0.0
        %4281 = vmatpush1.xpose.msra.mxu0 0.0
        %4282 = vmatprep.subr.mxu0 0.0
        %4283 = vmatpush1.xpose.msra.mxu0 0.0
        %4284 = vmatprep.subr.mxu0 0.0
        %4285 = vmatpush1.xpose.msra.mxu0 0.0
        %4286 = vmatprep.subr.mxu0 0.0
        %4287 = vmatpush1.xpose.msra.mxu0 0.0
        %4288 = vmatprep.subr.mxu0 0.0
        %4289 = vmatpush1.xpose.msra.mxu0 %v3384
        %4290 = vmatprep.subr.mxu0 0.0
        %4291 = vmatpush2.xpose.msra.mxu0 0.0
        %4292 = vmatprep.subr.mxu0 0.0
        %4293 = vmatpush2.xpose.msra.mxu0 0.0
        %4294 = vmatprep.subr.mxu0 0.0
        %4295 = vmatpush2.xpose.msra.mxu0 0.0
        %4296 = vmatprep.subr.mxu0 0.0
        %4297 = vmatpush2.xpose.msra.mxu0 0.0
        %4298 = vmatprep.subr.mxu0 0.0
        %4299 = vmatpush2.xpose.msra.mxu0 0.0
        %4300 = vmatprep.subr.mxu0 0.0
        %4301 = vmatpush2.xpose.msra.mxu0 0.0
        %4302 = vmatprep.subr.mxu0 0.0
        %4303 = vmatpush2.xpose.msra.mxu0 0.0
        %4304 = vmatprep.subr.mxu0 0.0
        %4305 = vmatpush2.xpose.msra.mxu0 0.0
        %4306 = vmatprep.subr.mxu0 0.0
        %4307 = vmatpush2.xpose.msra.mxu0 0.0
        %4308 = vmatprep.subr.mxu0 0.0
        %4309 = vmatpush2.xpose.msra.mxu0 0.0
        %4310 = vmatprep.subr.mxu0 0.0
        %4311 = vmatpush2.xpose.msra.mxu0 0.0
        %4312 = vmatprep.subr.mxu0 0.0
        %4313 = vmatpush2.xpose.msra.mxu0 0.0
        %4314 = vmatprep.subr.mxu0 0.0
        %4315 = vmatpush2.xpose.msra.mxu0 0.0
        %4316 = vmatprep.subr.mxu0 0.0
        %4317 = vmatpush2.xpose.msra.mxu0 0.0
        %4318 = vmatprep.subr.mxu0 0.0
        %4319 = vmatpush2.xpose.msra.mxu0 0.0
        %4320 = vmatprep.subr.mxu0 0.0
        %4321 = vmatpush2.xpose.msra.mxu0 0.0
        %4322 = vmatprep.mubr.f32.mxu0 0.0
        %4323 = vmatmul.mubr.f32.gmra.mxu0 %v3242
        %v4324 = vpop.f32.mrf.mxu0
        %v4325 = vadd.f32 0.0, %v4324
        %v4326 = vpop.f32.mrf.mxu0
        %4327 = vdwg.mxu0
        %v4328 = vmul.f32 %v4325, 0.35355338
        %v4329 = vsel %vm933, %v4328, -1e+30
        %v4330 = vsel %vm1688, %v4329, -inf
        %4331 = vmax.xlane.f32.xlu0 %v4330
        %v4332 = vpop.xlane.xlu0 %4331
        %v4333 = vsub.f32 %v4329, %v4332
        %v4334 = vmul.f32 %v4333, 1.442695
        %v4335 = vpow.pop %v4334
        %v4336 = vsel %vm1688, %v4335, 0.0
        %4337 = vadd.xlane.f32.xlu0 %v4336
        %v4338 = vpop.xlane.xlu0 %4337
        %v4339 = vrcp.pop %v4338
        %v4340 = vmul.f32 %v4335, %v4339
        %v4342 = vsel %vm1688, %v4340, 0
        %4344 = vmatprep.subr.mxu0 0.0
        %4345 = vmatpush1.msra.mxu0 0.0
        %4346 = vmatprep.subr.mxu0 0.0
        %4347 = vmatpush1.msra.mxu0 0.0
        %4348 = vmatprep.subr.mxu0 0.0
        %4349 = vmatpush1.msra.mxu0 0.0
        %4350 = vmatprep.subr.mxu0 0.0
        %4351 = vmatpush1.msra.mxu0 0.0
        %4352 = vmatprep.subr.mxu0 0.0
        %4353 = vmatpush1.msra.mxu0 0.0
        %4354 = vmatprep.subr.mxu0 0.0
        %4355 = vmatpush1.msra.mxu0 0.0
        %4356 = vmatprep.subr.mxu0 0.0
        %4357 = vmatpush1.msra.mxu0 0.0
        %4358 = vmatprep.subr.mxu0 0.0
        %4359 = vmatpush1.msra.mxu0 0.0
        %4360 = vmatprep.subr.mxu0 0.0
        %4361 = vmatpush1.msra.mxu0 0.0
        %4362 = vmatprep.subr.mxu0 0.0
        %4363 = vmatpush1.msra.mxu0 0.0
        %4364 = vmatprep.subr.mxu0 0.0
        %4365 = vmatpush1.msra.mxu0 0.0
        %4366 = vmatprep.subr.mxu0 0.0
        %4367 = vmatpush1.msra.mxu0 0.0
        %4368 = vmatprep.subr.mxu0 0.0
        %4369 = vmatpush1.msra.mxu0 0.0
        %4370 = vmatprep.subr.mxu0 0.0
        %4371 = vmatpush1.msra.mxu0 0.0
        %4372 = vmatprep.subr.mxu0 0.0
        %4373 = vmatpush1.msra.mxu0 0.0
        %4374 = vmatprep.subr.mxu0 0.0
        %4375 = vmatpush1.msra.mxu0 %v3526
        %4376 = vmatprep.subr.mxu0 0.0
        %4377 = vmatpush2.msra.mxu0 0.0
        %4378 = vmatprep.subr.mxu0 0.0
        %4379 = vmatpush2.msra.mxu0 0.0
        %4380 = vmatprep.subr.mxu0 0.0
        %4381 = vmatpush2.msra.mxu0 0.0
        %4382 = vmatprep.subr.mxu0 0.0
        %4383 = vmatpush2.msra.mxu0 0.0
        %4384 = vmatprep.subr.mxu0 0.0
        %4385 = vmatpush2.msra.mxu0 0.0
        %4386 = vmatprep.subr.mxu0 0.0
        %4387 = vmatpush2.msra.mxu0 0.0
        %4388 = vmatprep.subr.mxu0 0.0
        %4389 = vmatpush2.msra.mxu0 0.0
        %4390 = vmatprep.subr.mxu0 0.0
        %4391 = vmatpush2.msra.mxu0 0.0
        %4392 = vmatprep.subr.mxu0 0.0
        %4393 = vmatpush2.msra.mxu0 0.0
        %4394 = vmatprep.subr.mxu0 0.0
        %4395 = vmatpush2.msra.mxu0 0.0
        %4396 = vmatprep.subr.mxu0 0.0
        %4397 = vmatpush2.msra.mxu0 0.0
        %4398 = vmatprep.subr.mxu0 0.0
        %4399 = vmatpush2.msra.mxu0 0.0
        %4400 = vmatprep.subr.mxu0 0.0
        %4401 = vmatpush2.msra.mxu0 0.0
        %4402 = vmatprep.subr.mxu0 0.0
        %4403 = vmatpush2.msra.mxu0 0.0
        %4404 = vmatprep.subr.mxu0 0.0
        %4405 = vmatpush2.msra.mxu0 0.0
        %4406 = vmatprep.subr.mxu0 0.0
        %4407 = vmatpush2.msra.mxu0 0.0
        %4408 = vmatprep.mubr.f32.mxu0 0.0
        %4409 = vmatmul.mubr.f32.gmra.mxu0 %v4342
        %v4410 = vpop.f32.mrf.mxu0
        %v4411 = vadd.f32 0.0, %v4410
        %v4412 = vpop.f32.mrf.mxu0
        %4413 = vdwg.mxu0
        %s4414 = scalar_lea.vmem [#allocation13], 896
        %v4415 = vld [vmem:[%s4414] sm:$0xff]
        %v4416 = vld [vmem:[%s4414 + $0x8] sm:$0xff]
        %v4417 = vld [vmem:[%s4414 + $0x10] sm:$0xff]
        %v4418 = vld [vmem:[%s4414 + $0x18] sm:$0xff]
        %v4419 = vld [vmem:[%s4414 + $0x20] sm:$0xff]
        %v4420 = vld [vmem:[%s4414 + $0x28] sm:$0xff]
        %v4421 = vld [vmem:[%s4414 + $0x30] sm:$0xff]
        %v4422 = vld [vmem:[%s4414 + $0x38] sm:$0xff]
        %v4423 = vld [vmem:[%s4414 + $0x40] sm:$0xff]
        %v4424 = vld [vmem:[%s4414 + $0x48] sm:$0xff]
        %v4425 = vld [vmem:[%s4414 + $0x50] sm:$0xff]
        %v4426 = vld [vmem:[%s4414 + $0x58] sm:$0xff]
        %v4427 = vld [vmem:[%s4414 + $0x60] sm:$0xff]
        %v4428 = vld [vmem:[%s4414 + $0x68] sm:$0xff]
        %v4429 = vld [vmem:[%s4414 + $0x70] sm:$0xff]
        %v4430 = vld [vmem:[%s4414 + $0x78] sm:$0xff]
        %4431 = vmatprep.subr.mxu0 0.0
        %4432 = vmatpush1.msra.mxu0 %v4430
        %4433 = vmatprep.subr.mxu0 0.0
        %4434 = vmatpush1.msra.mxu0 %v4429
        %4435 = vmatprep.subr.mxu0 0.0
        %4436 = vmatpush1.msra.mxu0 %v4428
        %4437 = vmatprep.subr.mxu0 0.0
        %4438 = vmatpush1.msra.mxu0 %v4427
        %4439 = vmatprep.subr.mxu0 0.0
        %4440 = vmatpush1.msra.mxu0 %v4426
        %4441 = vmatprep.subr.mxu0 0.0
        %4442 = vmatpush1.msra.mxu0 %v4425
        %4443 = vmatprep.subr.mxu0 0.0
        %4444 = vmatpush1.msra.mxu0 %v4424
        %4445 = vmatprep.subr.mxu0 0.0
        %4446 = vmatpush1.msra.mxu0 %v4423
        %4447 = vmatprep.subr.mxu0 0.0
        %4448 = vmatpush1.msra.mxu0 %v4422
        %4449 = vmatprep.subr.mxu0 0.0
        %4450 = vmatpush1.msra.mxu0 %v4421
        %4451 = vmatprep.subr.mxu0 0.0
        %4452 = vmatpush1.msra.mxu0 %v4420
        %4453 = vmatprep.subr.mxu0 0.0
        %4454 = vmatpush1.msra.mxu0 %v4419
        %4455 = vmatprep.subr.mxu0 0.0
        %4456 = vmatpush1.msra.mxu0 %v4418
        %4457 = vmatprep.subr.mxu0 0.0
        %4458 = vmatpush1.msra.mxu0 %v4417
        %4459 = vmatprep.subr.mxu0 0.0
        %4460 = vmatpush1.msra.mxu0 %v4416
        %4461 = vmatprep.subr.mxu0 0.0
        %4462 = vmatpush1.msra.mxu0 %v4415
        %4463 = vmatprep.subr.mxu0 0.0
        %4464 = vmatpush2.msra.mxu0 0.0
        %4465 = vmatprep.subr.mxu0 0.0
        %4466 = vmatpush2.msra.mxu0 0.0
        %4467 = vmatprep.subr.mxu0 0.0
        %4468 = vmatpush2.msra.mxu0 0.0
        %4469 = vmatprep.subr.mxu0 0.0
        %4470 = vmatpush2.msra.mxu0 0.0
        %4471 = vmatprep.subr.mxu0 0.0
        %4472 = vmatpush2.msra.mxu0 0.0
        %4473 = vmatprep.subr.mxu0 0.0
        %4474 = vmatpush2.msra.mxu0 0.0
        %4475 = vmatprep.subr.mxu0 0.0
        %4476 = vmatpush2.msra.mxu0 0.0
        %4477 = vmatprep.subr.mxu0 0.0
        %4478 = vmatpush2.msra.mxu0 0.0
        %4479 = vmatprep.subr.mxu0 0.0
        %4480 = vmatpush2.msra.mxu0 0.0
        %4481 = vmatprep.subr.mxu0 0.0
        %4482 = vmatpush2.msra.mxu0 0.0
        %4483 = vmatprep.subr.mxu0 0.0
        %4484 = vmatpush2.msra.mxu0 0.0
        %4485 = vmatprep.subr.mxu0 0.0
        %4486 = vmatpush2.msra.mxu0 0.0
        %4487 = vmatprep.subr.mxu0 0.0
        %4488 = vmatpush2.msra.mxu0 0.0
        %4489 = vmatprep.subr.mxu0 0.0
        %4490 = vmatpush2.msra.mxu0 0.0
        %4491 = vmatprep.subr.mxu0 0.0
        %4492 = vmatpush2.msra.mxu0 0.0
        %4493 = vmatprep.subr.mxu0 0.0
        %4494 = vmatpush2.msra.mxu0 0.0
        %4495 = vmatprep.mubr.f32.mxu0 0.0
        %4496 = vmatmul.mubr.f32.gmra.mxu0 %v4411
        %v4497 = vpop.f32.mrf.mxu0
        %v4498 = vadd.f32 0.0, %v4497
        %v4499 = vpop.f32.mrf.mxu0
        %4500 = vdwg.mxu0
        %v4501 = vadd.f32 %v4257, %v4498
        %s4502 = scalar_lea.vmem [#allocation14], 1
        %v4503 = vld [vmem:[%s4502] sm:$0x1]
        %v4505 = vlaneseq
        %v4506 = vshrl.u32 %v4505, 7
        %v4507 = vsub.s32 0, %v4506
        %v4508 = vrot.slane %v4503, %v4507
        %v4510 = vadd.f32 %v4501, %v4508
        %v4511 = vadd.f32 %v2843, %v4510
        %s4512 = scalar_lea.vmem [#allocation16], 1
        %v4513 = vld [vmem:[%s4512] sm:$0x1]
        %s4514 = scalar_lea.vmem [#allocation17], 1
        %v4515 = vld [vmem:[%s4514] sm:$0x1]
        %4516 = vadd.xlane.f32.xlu0 %v4511
        %v4517 = vpop.xlane.xlu0 %4516
        %v4518 = vmul.f32 %v4517, 0.03125
        %v4519 = vsub.f32 %v4511, %v4518
        %v4520 = vsel %vm2604, %v4519, 0.0
        %v4521 = vmul.f32 %v4520, %v4520
        %4522 = vadd.xlane.f32.xlu0 %v4521
        %v4523 = vpop.xlane.xlu0 %4522
        %v4524 = vmul.f32 %v4523, 0.03125
        %v4525 = vadd.f32 %v4524, 1e-05
        %v4526 = vrsqrt.pop %v4525
        %v4527 = vmul.f32 %v4520, %v4526
        %v4529 = vlaneseq
        %v4530 = vshrl.u32 %v4529, 7
        %v4531 = vsub.s32 0, %v4530
        %v4532 = vrot.slane %v4513, %v4531
        %v4534 = vmul.f32 %v4527, %v4532
        %v4536 = vlaneseq
        %v4537 = vshrl.u32 %v4536, 7
        %v4538 = vsub.s32 0, %v4537
        %v4539 = vrot.slane %v4515, %v4538
        %v4541 = vadd.f32 %v4534, %v4539
        %s4542 = scalar_lea.vmem [#allocation19], 128
        %v4543 = vld [vmem:[%s4542] sm:$0xff]
        %v4544 = vld [vmem:[%s4542 + $0x8] sm:$0xff]
        %v4545 = vld [vmem:[%s4542 + $0x10] sm:$0xff]
        %v4546 = vld [vmem:[%s4542 + $0x18] sm:$0xff]
        %v4547 = vld [vmem:[%s4542 + $0x20] sm:$0xff]
        %v4548 = vld [vmem:[%s4542 + $0x28] sm:$0xff]
        %v4549 = vld [vmem:[%s4542 + $0x30] sm:$0xff]
        %v4550 = vld [vmem:[%s4542 + $0x38] sm:$0xff]
        %v4551 = vld [vmem:[%s4542 + $0x40] sm:$0xff]
        %v4552 = vld [vmem:[%s4542 + $0x48] sm:$0xff]
        %v4553 = vld [vmem:[%s4542 + $0x50] sm:$0xff]
        %v4554 = vld [vmem:[%s4542 + $0x58] sm:$0xff]
        %v4555 = vld [vmem:[%s4542 + $0x60] sm:$0xff]
        %v4556 = vld [vmem:[%s4542 + $0x68] sm:$0xff]
        %v4557 = vld [vmem:[%s4542 + $0x70] sm:$0xff]
        %v4558 = vld [vmem:[%s4542 + $0x78] sm:$0xff]
        %s4559 = scalar_lea.vmem [#allocation20], 1
        %v4560 = vld [vmem:[%s4559] sm:$0x1]
        %v4562 = vlaneseq
        %v4563 = vshrl.u32 %v4562, 7
        %v4564 = vsub.s32 0, %v4563
        %v4565 = vrot.slane %v4560, %v4564
        %4567 = vmatprep.subr.mxu0 0.0
        %4568 = vmatpush1.msra.mxu0 %v4558
        %4569 = vmatprep.subr.mxu0 0.0
        %4570 = vmatpush1.msra.mxu0 %v4557
        %4571 = vmatprep.subr.mxu0 0.0
        %4572 = vmatpush1.msra.mxu0 %v4556
        %4573 = vmatprep.subr.mxu0 0.0
        %4574 = vmatpush1.msra.mxu0 %v4555
        %4575 = vmatprep.subr.mxu0 0.0
        %4576 = vmatpush1.msra.mxu0 %v4554
        %4577 = vmatprep.subr.mxu0 0.0
        %4578 = vmatpush1.msra.mxu0 %v4553
        %4579 = vmatprep.subr.mxu0 0.0
        %4580 = vmatpush1.msra.mxu0 %v4552
        %4581 = vmatprep.subr.mxu0 0.0
        %4582 = vmatpush1.msra.mxu0 %v4551
        %4583 = vmatprep.subr.mxu0 0.0
        %4584 = vmatpush1.msra.mxu0 %v4550
        %4585 = vmatprep.subr.mxu0 0.0
        %4586 = vmatpush1.msra.mxu0 %v4549
        %4587 = vmatprep.subr.mxu0 0.0
        %4588 = vmatpush1.msra.mxu0 %v4548
        %4589 = vmatprep.subr.mxu0 0.0
        %4590 = vmatpush1.msra.mxu0 %v4547
        %4591 = vmatprep.subr.mxu0 0.0
        %4592 = vmatpush1.msra.mxu0 %v4546
        %4593 = vmatprep.subr.mxu0 0.0
        %4594 = vmatpush1.msra.mxu0 %v4545
        %4595 = vmatprep.subr.mxu0 0.0
        %4596 = vmatpush1.msra.mxu0 %v4544
        %4597 = vmatprep.subr.mxu0 0.0
        %4598 = vmatpush1.msra.mxu0 %v4543
        %4599 = vmatprep.subr.mxu0 0.0
        %4600 = vmatpush2.msra.mxu0 0.0
        %4601 = vmatprep.subr.mxu0 0.0
        %4602 = vmatpush2.msra.mxu0 0.0
        %4603 = vmatprep.subr.mxu0 0.0
        %4604 = vmatpush2.msra.mxu0 0.0
        %4605 = vmatprep.subr.mxu0 0.0
        %4606 = vmatpush2.msra.mxu0 0.0
        %4607 = vmatprep.subr.mxu0 0.0
        %4608 = vmatpush2.msra.mxu0 0.0
        %4609 = vmatprep.subr.mxu0 0.0
        %4610 = vmatpush2.msra.mxu0 0.0
        %4611 = vmatprep.subr.mxu0 0.0
        %4612 = vmatpush2.msra.mxu0 0.0
        %4613 = vmatprep.subr.mxu0 0.0
        %4614 = vmatpush2.msra.mxu0 0.0
        %4615 = vmatprep.subr.mxu0 0.0
        %4616 = vmatpush2.msra.mxu0 0.0
        %4617 = vmatprep.subr.mxu0 0.0
        %4618 = vmatpush2.msra.mxu0 0.0
        %4619 = vmatprep.subr.mxu0 0.0
        %4620 = vmatpush2.msra.mxu0 0.0
        %4621 = vmatprep.subr.mxu0 0.0
        %4622 = vmatpush2.msra.mxu0 0.0
        %4623 = vmatprep.subr.mxu0 0.0
        %4624 = vmatpush2.msra.mxu0 0.0
        %4625 = vmatprep.subr.mxu0 0.0
        %4626 = vmatpush2.msra.mxu0 0.0
        %4627 = vmatprep.subr.mxu0 0.0
        %4628 = vmatpush2.msra.mxu0 0.0
        %4629 = vmatprep.subr.mxu0 0.0
        %4630 = vmatpush2.msra.mxu0 0.0
        %4631 = vmatprep.mubr.f32.mxu0 0.0
        %4632 = vmatmul.mubr.f32.gmra.mxu0 %v4541
        %v4633 = vpop.f32.mrf.mxu0
        %v4634 = vadd.f32 %v4565, %v4633
        %v4635 = vpop.f32.mrf.mxu0
        %4636 = vdwg.mxu0
        %v4637 = vmax.f32 %v4634, 0.0
        %s4638 = scalar_lea.vmem [#allocation22], 128
        %v4639 = vld [vmem:[%s4638] sm:$0xff]
        %v4640 = vld [vmem:[%s4638 + $0x8] sm:$0xff]
        %v4641 = vld [vmem:[%s4638 + $0x10] sm:$0xff]
        %v4642 = vld [vmem:[%s4638 + $0x18] sm:$0xff]
        %v4643 = vld [vmem:[%s4638 + $0x20] sm:$0xff]
        %v4644 = vld [vmem:[%s4638 + $0x28] sm:$0xff]
        %v4645 = vld [vmem:[%s4638 + $0x30] sm:$0xff]
        %v4646 = vld [vmem:[%s4638 + $0x38] sm:$0xff]
        %v4647 = vld [vmem:[%s4638 + $0x40] sm:$0xff]
        %v4648 = vld [vmem:[%s4638 + $0x48] sm:$0xff]
        %v4649 = vld [vmem:[%s4638 + $0x50] sm:$0xff]
        %v4650 = vld [vmem:[%s4638 + $0x58] sm:$0xff]
        %v4651 = vld [vmem:[%s4638 + $0x60] sm:$0xff]
        %v4652 = vld [vmem:[%s4638 + $0x68] sm:$0xff]
        %v4653 = vld [vmem:[%s4638 + $0x70] sm:$0xff]
        %v4654 = vld [vmem:[%s4638 + $0x78] sm:$0xff]
        %s4655 = scalar_lea.vmem [#allocation23], 1
        %v4656 = vld [vmem:[%s4655] sm:$0x1]
        %v4658 = vlaneseq
        %v4659 = vshrl.u32 %v4658, 7
        %v4660 = vsub.s32 0, %v4659
        %v4661 = vrot.slane %v4656, %v4660
        %4663 = vmatprep.subr.mxu0 0.0
        %4664 = vmatpush1.msra.mxu0 %v4654
        %4665 = vmatprep.subr.mxu0 0.0
        %4666 = vmatpush1.msra.mxu0 %v4653
        %4667 = vmatprep.subr.mxu0 0.0
        %4668 = vmatpush1.msra.mxu0 %v4652
        %4669 = vmatprep.subr.mxu0 0.0
        %4670 = vmatpush1.msra.mxu0 %v4651
        %4671 = vmatprep.subr.mxu0 0.0
        %4672 = vmatpush1.msra.mxu0 %v4650
        %4673 = vmatprep.subr.mxu0 0.0
        %4674 = vmatpush1.msra.mxu0 %v4649
        %4675 = vmatprep.subr.mxu0 0.0
        %4676 = vmatpush1.msra.mxu0 %v4648
        %4677 = vmatprep.subr.mxu0 0.0
        %4678 = vmatpush1.msra.mxu0 %v4647
        %4679 = vmatprep.subr.mxu0 0.0
        %4680 = vmatpush1.msra.mxu0 %v4646
        %4681 = vmatprep.subr.mxu0 0.0
        %4682 = vmatpush1.msra.mxu0 %v4645
        %4683 = vmatprep.subr.mxu0 0.0
        %4684 = vmatpush1.msra.mxu0 %v4644
        %4685 = vmatprep.subr.mxu0 0.0
        %4686 = vmatpush1.msra.mxu0 %v4643
        %4687 = vmatprep.subr.mxu0 0.0
        %4688 = vmatpush1.msra.mxu0 %v4642
        %4689 = vmatprep.subr.mxu0 0.0
        %4690 = vmatpush1.msra.mxu0 %v4641
        %4691 = vmatprep.subr.mxu0 0.0
        %4692 = vmatpush1.msra.mxu0 %v4640
        %4693 = vmatprep.subr.mxu0 0.0
        %4694 = vmatpush1.msra.mxu0 %v4639
        %4695 = vmatprep.subr.mxu0 0.0
        %4696 = vmatpush2.msra.mxu0 0.0
        %4697 = vmatprep.subr.mxu0 0.0
        %4698 = vmatpush2.msra.mxu0 0.0
        %4699 = vmatprep.subr.mxu0 0.0
        %4700 = vmatpush2.msra.mxu0 0.0
        %4701 = vmatprep.subr.mxu0 0.0
        %4702 = vmatpush2.msra.mxu0 0.0
        %4703 = vmatprep.subr.mxu0 0.0
        %4704 = vmatpush2.msra.mxu0 0.0
        %4705 = vmatprep.subr.mxu0 0.0
        %4706 = vmatpush2.msra.mxu0 0.0
        %4707 = vmatprep.subr.mxu0 0.0
        %4708 = vmatpush2.msra.mxu0 0.0
        %4709 = vmatprep.subr.mxu0 0.0
        %4710 = vmatpush2.msra.mxu0 0.0
        %4711 = vmatprep.subr.mxu0 0.0
        %4712 = vmatpush2.msra.mxu0 0.0
        %4713 = vmatprep.subr.mxu0 0.0
        %4714 = vmatpush2.msra.mxu0 0.0
        %4715 = vmatprep.subr.mxu0 0.0
        %4716 = vmatpush2.msra.mxu0 0.0
        %4717 = vmatprep.subr.mxu0 0.0
        %4718 = vmatpush2.msra.mxu0 0.0
        %4719 = vmatprep.subr.mxu0 0.0
        %4720 = vmatpush2.msra.mxu0 0.0
        %4721 = vmatprep.subr.mxu0 0.0
        %4722 = vmatpush2.msra.mxu0 0.0
        %4723 = vmatprep.subr.mxu0 0.0
        %4724 = vmatpush2.msra.mxu0 0.0
        %4725 = vmatprep.subr.mxu0 0.0
        %4726 = vmatpush2.msra.mxu0 0.0
        %4727 = vmatprep.mubr.f32.mxu0 0.0
        %4728 = vmatmul.mubr.f32.gmra.mxu0 %v4637
        %v4729 = vpop.f32.mrf.mxu0
        %v4730 = vadd.f32 %v4661, %v4729
        %v4731 = vpop.f32.mrf.mxu0
        %4732 = vdwg.mxu0
        %v4733 = vadd.f32 %v4541, %v4730
        %s4734 = scalar_lea.vmem [#allocation25], 1
        %v4735 = vld [vmem:[%s4734] sm:$0x1]
        %s4736 = scalar_lea.vmem [#allocation26], 1
        %v4737 = vld [vmem:[%s4736] sm:$0x1]
        %4738 = vadd.xlane.f32.xlu0 %v4733
        %v4739 = vpop.xlane.xlu0 %4738
        %v4740 = vmul.f32 %v4739, 0.03125
        %v4741 = vsub.f32 %v4733, %v4740
        %v4742 = vsel %vm2604, %v4741, 0.0
        %v4743 = vmul.f32 %v4742, %v4742
        %4744 = vadd.xlane.f32.xlu0 %v4743
        %v4745 = vpop.xlane.xlu0 %4744
        %v4746 = vmul.f32 %v4745, 0.03125
        %v4747 = vadd.f32 %v4746, 1e-05
        %v4748 = vrsqrt.pop %v4747
        %v4749 = vmul.f32 %v4742, %v4748
        %v4751 = vlaneseq
        %v4752 = vshrl.u32 %v4751, 7
        %v4753 = vsub.s32 0, %v4752
        %v4754 = vrot.slane %v4735, %v4753
        %v4756 = vmul.f32 %v4749, %v4754
        %v4758 = vlaneseq
        %v4759 = vshrl.u32 %v4758, 7
        %v4760 = vsub.s32 0, %v4759
        %v4761 = vrot.slane %v4737, %v4760
        %v4763 = vadd.f32 %v4756, %v4761
        %v4764 = vld [vmem:[#allocation28] sm:$0xff]
        %v4765 = vld [vmem:[#allocation28 + $0x8] sm:$0xff]
        %v4766 = vld [vmem:[#allocation28 + $0x10] sm:$0xff]
        %v4767 = vld [vmem:[#allocation28 + $0x18] sm:$0xff]
        %v4768 = vld [vmem:[#allocation28 + $0x20] sm:$0xff]
        %v4769 = vld [vmem:[#allocation28 + $0x28] sm:$0xff]
        %v4770 = vld [vmem:[#allocation28 + $0x30] sm:$0xff]
        %v4771 = vld [vmem:[#allocation28 + $0x38] sm:$0xff]
        %v4772 = vld [vmem:[#allocation28 + $0x40] sm:$0xff]
        %v4773 = vld [vmem:[#allocation28 + $0x48] sm:$0xff]
        %v4774 = vld [vmem:[#allocation28 + $0x50] sm:$0xff]
        %v4775 = vld [vmem:[#allocation28 + $0x58] sm:$0xff]
        %v4776 = vld [vmem:[#allocation28 + $0x60] sm:$0xff]
        %v4777 = vld [vmem:[#allocation28 + $0x68] sm:$0xff]
        %v4778 = vld [vmem:[#allocation28 + $0x70] sm:$0xff]
        %v4779 = vld [vmem:[#allocation28 + $0x78] sm:$0xff]
        %v4780 = vld [vmem:[#allocation29] sm:$0x1]
        %v4782 = vlaneseq
        %v4783 = vshrl.u32 %v4782, 7
        %v4784 = vsub.s32 0, %v4783
        %v4785 = vrot.slane %v4780, %v4784
        %4787 = vmatprep.subr.mxu0 0.0
        %4788 = vmatpush1.msra.mxu0 %v4779
        %4789 = vmatprep.subr.mxu0 0.0
        %4790 = vmatpush1.msra.mxu0 %v4778
        %4791 = vmatprep.subr.mxu0 0.0
        %4792 = vmatpush1.msra.mxu0 %v4777
        %4793 = vmatprep.subr.mxu0 0.0
        %4794 = vmatpush1.msra.mxu0 %v4776
        %4795 = vmatprep.subr.mxu0 0.0
        %4796 = vmatpush1.msra.mxu0 %v4775
        %4797 = vmatprep.subr.mxu0 0.0
        %4798 = vmatpush1.msra.mxu0 %v4774
        %4799 = vmatprep.subr.mxu0 0.0
        %4800 = vmatpush1.msra.mxu0 %v4773
        %4801 = vmatprep.subr.mxu0 0.0
        %4802 = vmatpush1.msra.mxu0 %v4772
        %4803 = vmatprep.subr.mxu0 0.0
        %4804 = vmatpush1.msra.mxu0 %v4771
        %4805 = vmatprep.subr.mxu0 0.0
        %4806 = vmatpush1.msra.mxu0 %v4770
        %4807 = vmatprep.subr.mxu0 0.0
        %4808 = vmatpush1.msra.mxu0 %v4769
        %4809 = vmatprep.subr.mxu0 0.0
        %4810 = vmatpush1.msra.mxu0 %v4768
        %4811 = vmatprep.subr.mxu0 0.0
        %4812 = vmatpush1.msra.mxu0 %v4767
        %4813 = vmatprep.subr.mxu0 0.0
        %4814 = vmatpush1.msra.mxu0 %v4766
        %4815 = vmatprep.subr.mxu0 0.0
        %4816 = vmatpush1.msra.mxu0 %v4765
        %4817 = vmatprep.subr.mxu0 0.0
        %4818 = vmatpush1.msra.mxu0 %v4764
        %4819 = vmatprep.subr.mxu0 0.0
        %4820 = vmatpush2.msra.mxu0 0.0
        %4821 = vmatprep.subr.mxu0 0.0
        %4822 = vmatpush2.msra.mxu0 0.0
        %4823 = vmatprep.subr.mxu0 0.0
        %4824 = vmatpush2.msra.mxu0 0.0
        %4825 = vmatprep.subr.mxu0 0.0
        %4826 = vmatpush2.msra.mxu0 0.0
        %4827 = vmatprep.subr.mxu0 0.0
        %4828 = vmatpush2.msra.mxu0 0.0
        %4829 = vmatprep.subr.mxu0 0.0
        %4830 = vmatpush2.msra.mxu0 0.0
        %4831 = vmatprep.subr.mxu0 0.0
        %4832 = vmatpush2.msra.mxu0 0.0
        %4833 = vmatprep.subr.mxu0 0.0
        %4834 = vmatpush2.msra.mxu0 0.0
        %4835 = vmatprep.subr.mxu0 0.0
        %4836 = vmatpush2.msra.mxu0 0.0
        %4837 = vmatprep.subr.mxu0 0.0
        %4838 = vmatpush2.msra.mxu0 0.0
        %4839 = vmatprep.subr.mxu0 0.0
        %4840 = vmatpush2.msra.mxu0 0.0
        %4841 = vmatprep.subr.mxu0 0.0
        %4842 = vmatpush2.msra.mxu0 0.0
        %4843 = vmatprep.subr.mxu0 0.0
        %4844 = vmatpush2.msra.mxu0 0.0
        %4845 = vmatprep.subr.mxu0 0.0
        %4846 = vmatpush2.msra.mxu0 0.0
        %4847 = vmatprep.subr.mxu0 0.0
        %4848 = vmatpush2.msra.mxu0 0.0
        %4849 = vmatprep.subr.mxu0 0.0
        %4850 = vmatpush2.msra.mxu0 0.0
        %4851 = vmatprep.mubr.f32.mxu0 0.0
        %4852 = vmatmul.mubr.f32.gmra.mxu0 %v4763
        %v4853 = vpop.f32.mrf.mxu0
        %v4854 = vadd.f32 %v4785, %v4853
        %v4855 = vpop.f32.mrf.mxu0
        %4856 = vdwg.mxu0
        %4857 = vst [vmem:[%s831] sm:$0xff] %v4854
        %s4858 = sand.u32 %s435, 1
        %s4859 = scalar_lea.sflag [#allocation4], %s4858
        %s4860 = sand.u32 %s435, 1
        %s4861 = smul.addr %s4860, 8
        %s4862 = scalar_lea.vmem [#allocation31], %s4861
        // Predicated region
        $region165: #{tpu_custom_call.1} parent=91 // pred_check
          %p4863 = pneg %p445
        $region166: #{tpu_custom_call.1} parent=91 // pred_check_branch
          %4865 = sbr.rel (%p4863) target = $region168
        $region167: #{tpu_custom_call.1} parent=91 // pred_region
          %s4867 = ssub.s32 128, 128
          %4868 = vsyncadd %s4859, %s4867
          %s4869 = smul.addr %s44, 128
          %s4870 = scalar_lea.hbm %s18, %s4869
          %s4872 = sshll.u32 %s4862, 4
          %s4873 = int_to_ptr.vmem [resolvable:$true] %s4872
          %4875 = dma.vmem_to_hbm [thread:$0]  %s4873, 128, %s4870, %s4859
        $region168: #{tpu_custom_call.1} parent=91 // pred_fallthru
          _
      $region92: #{tpu_custom_call.1} parent=5 // pred_fallthru
        _
      %p4876 = scmp.le.s32.totalorder 2, %s39
      // Predicated region
      $region169: #{tpu_custom_call.1} parent=5 // pred_check
        %p4877 = pneg %p4876
      $region170: #{tpu_custom_call.1} parent=5 // pred_check_branch
        %4879 = sbr.rel (%p4877) target = $region172
      $region171: #{tpu_custom_call.1} parent=5 // pred_region
        %s4880 = ssub.s32 %s39, 2
        // Predicated region
        $region173: #{tpu_custom_call.1} parent=171 // pred_check
          %p4881 = pneg %p451
        $region174: #{tpu_custom_call.1} parent=171 // pred_check_branch
          %4883 = sbr.rel (%p4881) target = $region176
        $region175: #{tpu_custom_call.1} parent=171 // pred_region
          %s4884 = sand.u32 %s436, 1
          %s4885 = scalar_lea.sflag [#allocation4], %s4884
          %s4886 = sand.u32 %s436, 1
          %s4887 = smul.addr %s4886, 8
          %s4888 = scalar_lea.vmem [#allocation31], %s4887
          %4889 = dma.done %s4885, 128
        $region176: #{tpu_custom_call.1} parent=171 // pred_fallthru
          _
      $region172: #{tpu_custom_call.1} parent=5 // pred_fallthru
        _
    $region6: #{tpu_custom_call.1} parent=1 // loop_footer
      %s43 = sadd.s32 1, %s39
    $region7: #{tpu_custom_call.1} parent=1 // loop_footer_branch
      %38 = sbr.rel target = $region3
    $region8: #{tpu_custom_call.1} parent=1 // loop_exit
      _
    %4890 = vsyncpa [#allocation3], 1
    %s4891 = scalar_lea.sflag [#allocation3], 1
    %4892 = vsyncpa %s4891, 1
    %4893 = vsyncpa [#allocation6], 1
    %4894 = vsyncpa [#allocation9], 1
    %4895 = vsyncpa [#allocation12], 1
    %4896 = vsyncpa [#allocation15], 1
    %4897 = vsyncpa [#allocation18], 1
    %4898 = vsyncpa [#allocation21], 1
    %4899 = vsyncpa [#allocation24], 1
    %4900 = vsyncpa [#allocation27], 1
    %4901 = vsyncpa [#allocation30], 1
    %4902 = vsyncpa [#allocation4], 1
    %s4903 = scalar_lea.sflag [#allocation4], 1
    %4904 = vsyncpa %s4903, 1

</llo_original>
